<compile_context>
chip_gen: v6e
topology: v6e:2x2x1
jax: 0.10.0
libtpu: 0.0.40
codegen_flags: <defaults>
</compile_context>

<pallas_src>
import functools

import numpy as np
import jax
import jax.numpy as jnp
from jax.experimental import pallas as pl
from jax.experimental.pallas import tpu as pltpu

_EPS = 1e-6


def _gelu_tanh(x):
    # tanh GELU (runs on the EUP); |gelu_tanh - gelu_exact| <= ~1e-3.
    c = 0.7978845608028654  # sqrt(2/pi)
    return 0.5 * x * (1.0 + jnp.tanh(c * (x + 0.044715 * x * x * x)))


@functools.lru_cache(maxsize=None)
def _roll_mode(rows, lanes):
    """Probe pltpu.roll once, in bf16, at the kernel's roll shape.

    Returns ("pltpu", +1) if pltpu.roll(x, s) == np.roll(x, s), ("pltpu", -1)
    if it rotates the other way, and ("jnp", 1) if the bf16 roll fails to
    lower (the fallback uses jnp.roll, which lowers via concat + slice).
    """
    def probe(x_ref, o_ref):
        o_ref[...] = pltpu.roll(x_ref[...], 3, axis=1)

    try:
        lane = (np.arange(lanes) % 239).astype(np.float32)      # bf16-exact values
        x = jnp.asarray(np.tile(lane, (rows, 1))).astype(jnp.bfloat16)
        out = pl.pallas_call(
            probe, out_shape=jax.ShapeDtypeStruct((rows, lanes), jnp.bfloat16))(x)
        row = np.asarray(jax.block_until_ready(out)).astype(np.float32)[0]
        if np.array_equal(row, np.roll(lane, 3)):
            return ("pltpu", 1)
        if np.array_equal(row, np.roll(lane, -3)):
            return ("pltpu", -1)
    except Exception:
        pass
    return ("jnp", 1)


def _lkb_kernel(x_ref, rowm_ref, wI_ref, wtap_ref, mask_ref, w3a_ref, w3b_ref,
                colD_ref, colC2_ref, o_ref, *,
                W, halo, masked, roll_mode, roll_sign):
    f32, bf16 = jnp.float32, jnp.bfloat16
    Lb = int(x_ref.shape[-1])                 # block length (includes halo rows)
    Li = int(o_ref.shape[-1])                 # interior (output) length
    off = halo * W                            # static interior offset inside the block

    colD = colD_ref[...]
    ln1w, ln1b = colD[:, 0:1], colD[:, 1:2]
    bfold = colD[:, 2:3]
    ln3w, ln3b = colD[:, 3:4], colD[:, 4:5]
    b3b = colD[:, 5:6]
    colC2 = colC2_ref[...]
    bI, b3a = colC2[:, 0:1], colC2[:, 1:2]

    xb = x_ref[0, 0]                          # (D, Lb) f32

    def layernorm(v, w, b):                   # channel (sublane) LayerNorm2d
        mu = jnp.mean(v, axis=0, keepdims=True)
        vc = v - mu
        var = jnp.mean(vc * vc, axis=0, keepdims=True)
        return vc * jax.lax.rsqrt(var + _EPS) * w + b

    def mm(wv, v):                            # bf16 MXU matmul, f32 accumulation
        return jnp.dot(wv, v.astype(bf16), preferred_element_type=f32)

    # ---- layer_I: LayerNorm2d(D) -> 1x1 conv (D -> 2D) ------------------------
    x0 = mm(wI_ref[...], layernorm(xb, ln1w, ln1b)) + bI          # (2D, Lb) f32
    if halo:
        # The zero-padded halo rows pass through LN+bias as a nonzero constant;
        # re-zero them so the depthwise taps see true zero padding.
        x0 = x0 * rowm_ref[0]
    x0b = x0.astype(bf16)                     # cast once: all rolls / MXU feeds in bf16

    def shift_cols(v, s):                     # out[:, p] = v[:, p + s] (cyclic)
        s = s % Lb
        if s == 0:
            # identity rotation; the host masks still zero any invalid tap,
            # so this is correct even for degenerate shapes.
            return v
        if roll_mode == "pltpu":
            return pltpu.roll(v, (-roll_sign * s) % Lb, axis=1)
        return jnp.roll(v, -s, axis=1)

    # ---- 49 depthwise taps as (D, 2D) MXU matmuls -----------------------------
    # Per tap: one lane roll (XLU) + one small matmul (MXU) + an optional (1,Lb)
    # boundary-mask multiply on the (D,Lb) result (the per-column mask commutes
    # with the channel matmul) + one add.
    # TODO(synk): on v7x the unmasked taps could accumulate in the MRB via
    # pltpu.matmul_push_rhs / matmul_acc_lhs / matmul_pop instead of VPU adds.
    acc = None
    for di in range(-3, 4):
        for dj in range(-3, 4):
            t = (di + 3) * 7 + (dj + 3)
            patch = shift_cols(x0b, di * W + dj)
            contrib = jnp.dot(wtap_ref[t], patch, preferred_element_type=f32)
            if masked[t]:
                contrib = contrib * mask_ref[pl.ds(t, 1), :]
            acc = contrib if acc is None else acc + contrib

    xmid = acc[:, off:off + Li] + xb[:, off:off + Li] + bfold     # (D, Li)

    # ---- layer_III: LN -> 1x1 (D->2D) -> GELU(tanh) -> 1x1 (2D->D), residual --
    h = mm(w3a_ref[...], layernorm(xmid, ln3w, ln3b)) + b3a
    out = mm(w3b_ref[...], _gelu_tanh(h)) + b3b + xmid
    o_ref[0] = out


def _fold_params(params, D):
    """Host-side refactor of PyTorch-layout params into the kernel layout.

    Every 1x1 conv becomes a (Cout, Cin) bf16 matrix acting on channel columns.
    For each of the 49 depthwise taps, the k=3/5/7 (and k=1 center) depthwise
    weights are folded with the branch MLPs (wm_k) and the corresponding
    layer_II row block into a single (D, 2D) matrix, so the whole depthwise +
    branch-MLP + layer_II stage is 49 small MXU matmuls.  All db/bm/bII biases
    fold into one bias column; LN / bias columns are stacked into two tables.
    """
    C2, Dh = 2 * D, D // 2
    f32, bf16 = jnp.float32, jnp.bfloat16
    hp = jax.lax.Precision.HIGHEST
    p = {k: jnp.asarray(v, f32) for k, v in params.items()}

    wf = {}
    bfold = p["bII"].reshape(D)
    for idx, k in enumerate((1, 3, 5, 7)):
        blk = p["wII"][idx * Dh:(idx + 1) * Dh, :]                  # (Dh, D)
        w = jnp.dot(p[f"wm{k}"], blk, precision=hp).T               # (D, C2)
        bfold = bfold + jnp.dot(blk.T, p[f"bm{k}"].reshape(Dh), precision=hp)
        bfold = bfold + jnp.dot(w, p[f"db{k}"].reshape(C2), precision=hp)
        wf[k] = w

    dw = {k: p[f"dw{k}"] for k in (3, 5, 7)}                        # (k*k, C2)
    dw1 = p["dw1"].reshape(C2)
    wtap = []
    for di in range(-3, 4):
        for dj in range(-3, 4):
            Wt = wf[7] * dw[7][(di + 3) * 7 + (dj + 3)][None, :]
            if abs(di) <= 2 and abs(dj) <= 2:
                Wt = Wt + wf[5] * dw[5][(di + 2) * 5 + (dj + 2)][None, :]
            if abs(di) <= 1 and abs(dj) <= 1:
                Wt = Wt + wf[3] * dw[3][(di + 1) * 3 + (dj + 1)][None, :]
            if di == 0 and dj == 0:
                Wt = Wt + wf[1] * dw1[None, :]                      # fold 1x1 dwconv
            wtap.append(Wt)
    wtap = jnp.stack(wtap, axis=0).astype(bf16)                     # (49, D, C2)

    colD = jnp.stack([p["ln1w"].reshape(D), p["ln1b"].reshape(D), bfold,
                      p["ln3w"].reshape(D), p["ln3b"].reshape(D),
                      p["b3b"].reshape(D)], axis=1)                 # (D, 6)
    colC2 = jnp.stack([p["bI"].reshape(C2), p["b3a"].reshape(C2)], axis=1)  # (C2, 2)

    return {
        "wI": p["wI"].T.astype(bf16),        # (C2, D)
        "wtap": wtap,                        # (49, D, C2)
        "w3a": p["w3a"].T.astype(bf16),      # (C2, D)
        "w3b": p["w3b"].T.astype(bf16),      # (D, C2)
        "colD": colD, "colC2": colC2,
    }


def _vmem_cap_bytes():
    """~75% of physical VMEM: never request the full 64 MiB on v7x."""
    try:
        return (int(pltpu.get_tpu_info().vmem_capacity_bytes) * 3) // 4
    except Exception:
        return 48 << 20


def _block_vmem_bytes(Lb, Li, D):
    C2 = 2 * D
    return (2 * 4 * D * Lb + 2 * 4 * D * Li           # double-buffered x / out blocks
            + 2 * 4 * 50 * Lb                         # tap-mask + row-mask blocks
            + 4 * Lb * (2 * C2 + 3 * D)               # x0 / x0b+patch / contrib / acc
            + 4 * Li * (2 * C2 + 3 * D))              # xmid / h / gelu / out


def _choose_tiling(H, W, D, budget):
    if _block_vmem_bytes(H * W, H * W, D) <= budget:
        return H, 0                                   # whole image per grid step
    for th in range(H - 1, 0, -1):
        if H % th == 0 and (th * W) % 128 == 0 and \
           _block_vmem_bytes((th + 6) * W, th * W, D) <= budget:
            return th, 3
    # TODO(synk): images whose single padded row group still bursts the budget
    # would also need a W-tile axis with a 3-column halo.
    return H, 0


def lkb_pallas(x_nchw, params, *, tile_h=None):
    N, D, H, W = map(int, x_nchw.shape)
    C2, HW = 2 * D, H * W

    cap = _vmem_cap_bytes()
    if tile_h is None:
        tile_h, halo = _choose_tiling(H, W, D, max(8 << 20, cap // 3))
    else:
        tile_h = int(tile_h)
        if tile_h >= H:
            tile_h, halo = H, 0
        else:
            if H % tile_h != 0 or (tile_h * W) % 128 != 0:
                raise ValueError("tile_h must divide H with tile_h*W a multiple of 128")
            halo = 3
    T = H // tile_h
    Lb = (tile_h + 2 * halo) * W
    Li = tile_h * W

    x = x_nchw.astype(jnp.float32)
    if halo == 0:
        xw = x.reshape(N, 1, D, HW)
    else:
        xpad = jnp.pad(x, ((0, 0), (0, 0), (halo, halo), (0, 0)))
        xw = jnp.stack(
            [xpad[:, :, t * tile_h:t * tile_h + tile_h + 2 * halo, :]
             for t in range(T)], axis=1).reshape(N, T, D, Lb)

    # Host-built per-tap boundary masks (col validity; + row validity when no halo).
    masks_np = np.ones((49, Lb), np.float32)
    ww = np.arange(Lb) % W
    hh = np.arange(Lb) // W
    for di in range(-3, 4):
        for dj in range(-3, 4):
            t = (di + 3) * 7 + (dj + 3)
            ok = (ww + dj >= 0) & (ww + dj < W)
            if halo == 0:
                ok = ok & (hh + di >= 0) & (hh + di < H)
            masks_np[t] = ok.astype(np.float32)
    masked = tuple(bool(not np.all(masks_np[t] == 1.0)) for t in range(49))

    if halo == 0:
        rowm_np = np.ones((1, 1, Lb), np.float32)
    else:
        rowm_np = np.zeros((T, 1, Lb), np.float32)
        rr = np.arange(Lb) // W
        for t in range(T):
            img_row = t * tile_h + rr - halo
            rowm_np[t, 0] = ((img_row >= 0) & (img_row < H)).astype(np.float32)

    folded = _fold_params(params, D)
    wbytes = sum(int(a.size) * a.dtype.itemsize for a in folded.values())

    roll_mode, roll_sign = _roll_mode(C2, Lb)
    kernel = functools.partial(_lkb_kernel, W=W, halo=halo, masked=masked,
                               roll_mode=roll_mode, roll_sign=roll_sign)

    def pspec(shape):
        r = len(shape)
        return pl.BlockSpec(shape, lambda n, t, _r=r: (0,) * _r)

    in_specs = [
        pl.BlockSpec((1, 1, D, Lb), lambda n, t: (n, t, 0, 0)),   # x window (+halo)
        pl.BlockSpec((1, 1, Lb), lambda n, t: (t, 0, 0)),         # per-tile row mask
        pspec((C2, D)),                                           # layer_I weight
        pspec((49, D, C2)),                                       # folded tap weights
        pspec((49, Lb)),                                          # tap boundary masks
        pspec((C2, D)),                                           # layer_III weight a
        pspec((D, C2)),                                           # layer_III weight b
        pspec((D, 6)),                                            # LN / bias columns (D)
        pspec((C2, 2)),                                           # bias columns (2D)
    ]
    out_specs = pl.BlockSpec((1, D, Li), lambda n, t: (n, 0, t))

    est = _block_vmem_bytes(Lb, Li, D) + 2 * wbytes + (8 << 20)
    vmem_limit = int(min(cap, max(32 << 20, est)))

    steps = N * T
    cost = pl.CostEstimate(
        flops=int(steps * (2 * D * C2 * Lb * 50 + 2 * D * C2 * Li * 2
                           + Lb * (10 * C2 + 100 * D) + Li * (8 * C2 + 16 * D))),
        transcendentals=int(steps * (C2 * Li + 2 * Lb + 2 * Li)),
        bytes_accessed=int(xw.size * 4 + N * D * HW * 4
                           + (masks_np.size + rowm_np.size) * 4 + wbytes),
    )

    out = pl.pallas_call(
        kernel,
        out_shape=jax.ShapeDtypeStruct((N, D, HW), jnp.float32),
        grid=(N, T),
        in_specs=in_specs,
        out_specs=out_specs,
        compiler_params=pltpu.CompilerParams(
            dimension_semantics=("parallel", "parallel"),
            vmem_limit_bytes=vmem_limit),
        cost_estimate=cost,
    )(xw, jnp.asarray(rowm_np), folded["wI"], folded["wtap"], jnp.asarray(masks_np),
      folded["w3a"], folded["w3b"], folded["colD"], folded["colC2"])

    return out.reshape(N, D, H, W)


def init_params(key, D):
    """Deterministic synthetic parameters with the shapes LKB.__init__ implies."""
    C2, Dh = 2 * D, D // 2
    keys = jax.random.split(key, 32)
    ki = iter(keys)

    def rnd(shape, scale=0.2):
        return scale * jax.random.normal(next(ki), shape, dtype=jnp.float32)

    p = {}
    p["ln1w"] = 1.0 + rnd((1, D), 0.1)
    p["ln1b"] = rnd((1, D), 0.1)
    p["wI"] = rnd((D, C2))          # 1x1 conv D -> 2D (as (Cin, Cout) matrix)
    p["bI"] = rnd((1, C2), 0.05)
    for k in (1, 3, 5, 7):
        p[f"dw{k}"] = rnd((k * k, C2))     # depthwise weights, (k*k, C) layout
        p[f"db{k}"] = rnd((1, C2), 0.05)
        p[f"wm{k}"] = rnd((C2, Dh))        # 1x1 conv 2D -> D/2
        p[f"bm{k}"] = rnd((1, Dh), 0.05)
    p["wII"] = rnd((C2, D))
    p["bII"] = rnd((1, D), 0.05)
    p["ln3w"] = 1.0 + rnd((1, D), 0.1)
    p["ln3b"] = rnd((1, D), 0.1)
    p["w3a"] = rnd((D, C2))
    p["b3a"] = rnd((1, C2), 0.05)
    p["w3b"] = rnd((C2, D))
    p["b3b"] = rnd((1, D), 0.05)
    return p


def lkb_reference(x_nchw, params):
    """Pure-JAX NCHW reference mirroring the PyTorch module."""
    hp = jax.lax.Precision.HIGHEST

    def ln(x, w, b):
        mu = jnp.mean(x, axis=1, keepdims=True)
        var = jnp.mean((x - mu) ** 2, axis=1, keepdims=True)
        y = (x - mu) / jnp.sqrt(var + _EPS)
        return w[0][None, :, None, None] * y + b[0][None, :, None, None]

    def conv1x1(x, wmat, b):
        return (jnp.einsum("nchw,cd->ndhw", x, wmat, precision=hp)
                + b[0][None, :, None, None])

    def dwconv(x, w, b, k):
        C = x.shape[1]
        wk = jnp.transpose(w.reshape(k, k, C), (2, 0, 1))[:, None, :, :]
        y = jax.lax.conv_general_dilated(
            x, wk, window_strides=(1, 1),
            padding=[(k // 2, k // 2), (k // 2, k // 2)],
            dimension_numbers=("NCHW", "OIHW", "NCHW"),
            feature_group_count=C, precision=hp)
        return y + b[0][None, :, None, None]

    p = params
    x0 = conv1x1(ln(x_nchw, p["ln1w"], p["ln1b"]), p["wI"], p["bI"])
    branches = []
    for k in (1, 3, 5, 7):
        z = dwconv(x0, p[f"dw{k}"], p[f"db{k}"], k)
        branches.append(conv1x1(z, p[f"wm{k}"], p[f"bm{k}"]))
    xcat = jnp.concatenate(branches, axis=1)
    xmid = conv1x1(xcat, p["wII"], p["bII"]) + x_nchw
    y = conv1x1(ln(xmid, p["ln3w"], p["ln3b"]), p["w3a"], p["b3a"])
    y = jax.nn.gelu(y, approximate=False)
    y = conv1x1(y, p["w3b"], p["b3b"]) + xmid
    return y


if __name__ == "__main__":
    N, D, H, W = 2, 4, 16, 16
    key = jax.random.PRNGKey(0)
    kx, kp = jax.random.split(key)
    x = jax.random.normal(kx, (N, D, H, W), dtype=jnp.float32)
    params = init_params(kp, D)

    ref = lkb_reference(x, params)

    # Single-block path (whole image per grid step).
    out = jax.block_until_ready(lkb_pallas(x, params))
    # Kernel runs bf16 MXU matmuls (f32 accumulation) and tanh-GELU; deliberate
    # deviation from the exact-f32 reference is ~1e-3..5e-3.
    np.testing.assert_allclose(np.asarray(out), np.asarray(ref),
                               rtol=5e-3, atol=1e-2)

    # H-tiled path with a 3-row zero halo (exercises the large-image tiling).
    out_tiled = jax.block_until_ready(lkb_pallas(x, params, tile_h=8))
    np.testing.assert_allclose(np.asarray(out_tiled), np.asarray(ref),
                               rtol=5e-3, atol=1e-2)

    print("KERNEL_OK")
</pallas_src>

<mosaic_0001>
module attributes {stable_mosaic.version = 11 : i64} {
  func.func @probe(%arg0: memref<8x256xbf16, #tpu.memory_space<vmem>>, %arg1: memref<8x256xbf16, #tpu.memory_space<vmem>>) attributes {dimension_semantics = [], scalar_prefetch = 0 : i64, scratch_operands = 0 : i64, tpu.core_type = #tpu.core_type<tc>} {
    %c0 = arith.constant 0 : index
    %c0_0 = arith.constant 0 : index
    %0 = vector.load %arg0[%c0, %c0_0] : memref<8x256xbf16, #tpu.memory_space<vmem>>, vector<8x256xbf16>
    %c3_i32 = arith.constant 3 : i32
    %1 = tpu.dynamic_rotate %0 by %c3_i32 dim 1 : vector<8x256xbf16>, i32 -> vector<8x256xbf16>
    %c0_1 = arith.constant 0 : index
    %c0_2 = arith.constant 0 : index
    %2 = vector.load %arg1[%c0_1, %c0_2] : memref<8x256xbf16, #tpu.memory_space<vmem>>, vector<8x256xbf16>
    tpu.vector_store %arg1[%c0_1, %c0_2], %1 {strides = array<i32>} : memref<8x256xbf16, #tpu.memory_space<vmem>>, vector<8x256xbf16>,
    return
  }
}

module attributes {stable_mosaic.version = 11 : i64} {
  func.func @_lkb_kernel(%arg0: i32, %arg1: i32, %arg2: memref<1x1x4x256xf32, #tpu.memory_space<vmem>>, %arg3: memref<1x1x256xf32, #tpu.memory_space<vmem>>, %arg4: memref<8x4xbf16, #tpu.memory_space<vmem>>, %arg5: memref<49x4x8xbf16, #tpu.memory_space<vmem>>, %arg6: memref<49x256xf32, #tpu.memory_space<vmem>>, %arg7: memref<8x4xbf16, #tpu.memory_space<vmem>>, %arg8: memref<4x8xbf16, #tpu.memory_space<vmem>>, %arg9: memref<4x6xf32, #tpu.memory_space<vmem>>, %arg10: memref<8x2xf32, #tpu.memory_space<vmem>>, %arg11: memref<1x4x256xf32, #tpu.memory_space<vmem>>) attributes {dimension_semantics = [#tpu.dimension_semantics<parallel>, #tpu.dimension_semantics<parallel>], iteration_bounds = array<i64: 2, 1>, scalar_prefetch = 0 : i64, scratch_operands = 0 : i64, tpu.core_type = #tpu.core_type<tc>, window_params = [{transform_indices = @transform_0, window_bounds = array<i64: 1, 1, 4, 256>}, {transform_indices = @transform_1, window_bounds = array<i64: 1, 1, 256>}, {pipeline_mode = #tpu.pipeline_mode<synchronous>, transform_indices = @transform_2, window_bounds = array<i64: 8, 4>}, {pipeline_mode = #tpu.pipeline_mode<synchronous>, transform_indices = @transform_3, window_bounds = array<i64: 49, 4, 8>}, {pipeline_mode = #tpu.pipeline_mode<synchronous>, transform_indices = @transform_4, window_bounds = array<i64: 49, 256>}, {pipeline_mode = #tpu.pipeline_mode<synchronous>, transform_indices = @transform_5, window_bounds = array<i64: 8, 4>}, {pipeline_mode = #tpu.pipeline_mode<synchronous>, transform_indices = @transform_6, window_bounds = array<i64: 4, 8>}, {pipeline_mode = #tpu.pipeline_mode<synchronous>, transform_indices = @transform_7, window_bounds = array<i64: 4, 6>}, {pipeline_mode = #tpu.pipeline_mode<synchronous>, transform_indices = @transform_8, window_bounds = array<i64: 8, 2>}, {transform_indices = @transform_9, window_bounds = array<i64: 1, 4, 256>}]} {
    %c0 = arith.constant 0 : index
    %c0_0 = arith.constant 0 : index
    %0 = vector.load %arg9[%c0, %c0_0] : memref<4x6xf32, #tpu.memory_space<vmem>>, vector<4x6xf32>
    %1 = vector.extract_strided_slice %0 {offsets = [0, 0], sizes = [4, 1], strides = [1, 1]} : vector<4x6xf32> to vector<4x1xf32>
    %2 = vector.extract_strided_slice %0 {offsets = [0, 1], sizes = [4, 1], strides = [1, 1]} : vector<4x6xf32> to vector<4x1xf32>
    %3 = vector.extract_strided_slice %0 {offsets = [0, 2], sizes = [4, 1], strides = [1, 1]} : vector<4x6xf32> to vector<4x1xf32>
    %4 = vector.extract_strided_slice %0 {offsets = [0, 3], sizes = [4, 1], strides = [1, 1]} : vector<4x6xf32> to vector<4x1xf32>
    %5 = vector.extract_strided_slice %0 {offsets = [0, 4], sizes = [4, 1], strides = [1, 1]} : vector<4x6xf32> to vector<4x1xf32>
    %6 = vector.extract_strided_slice %0 {offsets = [0, 5], sizes = [4, 1], strides = [1, 1]} : vector<4x6xf32> to vector<4x1xf32>
    %c0_1 = arith.constant 0 : index
    %c0_2 = arith.constant 0 : index
    %7 = vector.load %arg10[%c0_1, %c0_2] : memref<8x2xf32, #tpu.memory_space<vmem>>, vector<8x2xf32>
    %8 = vector.extract_strided_slice %7 {offsets = [0, 0], sizes = [8, 1], strides = [1, 1]} : vector<8x2xf32> to vector<8x1xf32>
    %9 = vector.extract_strided_slice %7 {offsets = [0, 1], sizes = [8, 1], strides = [1, 1]} : vector<8x2xf32> to vector<8x1xf32>
    %c0_3 = arith.constant 0 : index
    %c0_4 = arith.constant 0 : index
    %c0_5 = arith.constant 0 : index
    %c0_6 = arith.constant 0 : index
    %10 = vector.load %arg2[%c0_3, %c0_4, %c0_5, %c0_6] : memref<1x1x4x256xf32, #tpu.memory_space<vmem>>, vector<1x1x4x256xf32>
    %11 = vector.shape_cast %10 : vector<1x1x4x256xf32> to vector<4x256xf32>
    %c0_7 = arith.constant 0 : index
    %c0_8 = arith.constant 0 : index
    %12 = vector.load %arg4[%c0_7, %c0_8] : memref<8x4xbf16, #tpu.memory_space<vmem>>, vector<8x4xbf16>
    %cst = arith.constant dense<0.000000e+00> : vector<256xf32>
    %13 = vector.multi_reduction <add>, %11, %cst [0] : vector<4x256xf32> to vector<256xf32>
    %14 = vector.shape_cast %13 : vector<256xf32> to vector<1x256xf32>
    %cst_9 = arith.constant 4.000000e+00 : f32
    %15 = vector.broadcast %cst_9 : f32 to vector<1x256xf32>
    %16 = arith.divf %14, %15 : vector<1x256xf32>
    %17 = vector.broadcast %16 : vector<1x256xf32> to vector<4x256xf32>
    %18 = arith.subf %11, %17 : vector<4x256xf32>
    %19 = arith.mulf %18, %18 : vector<4x256xf32>
    %cst_10 = arith.constant dense<0.000000e+00> : vector<256xf32>
    %20 = vector.multi_reduction <add>, %19, %cst_10 [0] : vector<4x256xf32> to vector<256xf32>
    %21 = vector.shape_cast %20 : vector<256xf32> to vector<1x256xf32>
    %cst_11 = arith.constant 4.000000e+00 : f32
    %22 = vector.broadcast %cst_11 : f32 to vector<1x256xf32>
    %23 = arith.divf %21, %22 : vector<1x256xf32>
    %cst_12 = arith.constant 9.99999997E-7 : f32
    %24 = vector.broadcast %cst_12 : f32 to vector<1x256xf32>
    %25 = arith.addf %23, %24 : vector<1x256xf32>
    %26 = math.rsqrt %25 : vector<1x256xf32>
    %27 = vector.broadcast %26 : vector<1x256xf32> to vector<4x256xf32>
    %28 = arith.mulf %18, %27 : vector<4x256xf32>
    %29 = vector.broadcast %1 : vector<4x1xf32> to vector<4x256xf32>
    %30 = arith.mulf %28, %29 : vector<4x256xf32>
    %31 = vector.broadcast %2 : vector<4x1xf32> to vector<4x256xf32>
    %32 = arith.addf %30, %31 : vector<4x256xf32>
    %33 = arith.truncf %32 : vector<4x256xf32> to vector<4x256xbf16>
    %cst_13 = arith.constant dense<0.000000e+00> : vector<8x256xf32>
    %34 = tpu.matmul %12, %33, %cst_13 {dimension_numbers = #tpu.dot_dimension_numbers<[1], [0], [0], [1], [0, 0, 1, 1], [], []>} : vector<8x4xbf16>, vector<4x256xbf16>, vector<8x256xf32> -> vector<8x256xf32>
    %35 = vector.broadcast %8 : vector<8x1xf32> to vector<8x256xf32>
    %36 = arith.addf %34, %35 : vector<8x256xf32>
    %37 = arith.truncf %36 : vector<8x256xf32> to vector<8x256xbf16>
    %38 = vector.extract_strided_slice %37 {offsets = [0, 205], sizes = [8, 51], strides = [1, 1]} : vector<8x256xbf16> to vector<8x51xbf16>
    %39 = vector.extract_strided_slice %37 {offsets = [0, 0], sizes = [8, 205], strides = [1, 1]} : vector<8x256xbf16> to vector<8x205xbf16>
    %40 = tpu.concatenate %38, %39 in 1 : vector<8x51xbf16>, vector<8x205xbf16> -> vector<8x256xbf16>
    %c0_14 = arith.constant 0 : index
    %c0_15 = arith.constant 0 : index
    %c0_16 = arith.constant 0 : index
    %41 = vector.load %arg5[%c0_14, %c0_15, %c0_16] : memref<49x4x8xbf16, #tpu.memory_space<vmem>>, vector<1x4x8xbf16>
    %42 = vector.shape_cast %41 : vector<1x4x8xbf16> to vector<4x8xbf16>
    %cst_17 = arith.constant dense<0.000000e+00> : vector<4x256xf32>
    %43 = tpu.matmul %42, %40, %cst_17 {dimension_numbers = #tpu.dot_dimension_numbers<[1], [0], [0], [1], [0, 0, 1, 1], [], []>} : vector<4x8xbf16>, vector<8x256xbf16>, vector<4x256xf32> -> vector<4x256xf32>
    %c0_18 = arith.constant 0 : index
    %c0_19 = arith.constant 0 : index
    %44 = vector.load %arg6[%c0_18, %c0_19] : memref<49x256xf32, #tpu.memory_space<vmem>>, vector<1x256xf32>
    %45 = vector.broadcast %44 : vector<1x256xf32> to vector<4x256xf32>
    %46 = arith.mulf %43, %45 : vector<4x256xf32>
    %47 = vector.extract_strided_slice %37 {offsets = [0, 206], sizes = [8, 50], strides = [1, 1]} : vector<8x256xbf16> to vector<8x50xbf16>
    %48 = vector.extract_strided_slice %37 {offsets = [0, 0], sizes = [8, 206], strides = [1, 1]} : vector<8x256xbf16> to vector<8x206xbf16>
    %49 = tpu.concatenate %47, %48 in 1 : vector<8x50xbf16>, vector<8x206xbf16> -> vector<8x256xbf16>
    %c1 = arith.constant 1 : index
    %c0_20 = arith.constant 0 : index
    %c0_21 = arith.constant 0 : index
    %50 = vector.load %arg5[%c1, %c0_20, %c0_21] : memref<49x4x8xbf16, #tpu.memory_space<vmem>>, vector<1x4x8xbf16>
    %51 = vector.shape_cast %50 : vector<1x4x8xbf16> to vector<4x8xbf16>
    %cst_22 = arith.constant dense<0.000000e+00> : vector<4x256xf32>
    %52 = tpu.matmul %51, %49, %cst_22 {dimension_numbers = #tpu.dot_dimension_numbers<[1], [0], [0], [1], [0, 0, 1, 1], [], []>} : vector<4x8xbf16>, vector<8x256xbf16>, vector<4x256xf32> -> vector<4x256xf32>
    %c1_23 = arith.constant 1 : index
    %c0_24 = arith.constant 0 : index
    %53 = vector.load %arg6[%c1_23, %c0_24] : memref<49x256xf32, #tpu.memory_space<vmem>>, vector<1x256xf32>
    %54 = vector.broadcast %53 : vector<1x256xf32> to vector<4x256xf32>
    %55 = arith.mulf %52, %54 : vector<4x256xf32>
    %56 = arith.addf %46, %55 : vector<4x256xf32>
    %57 = vector.extract_strided_slice %37 {offsets = [0, 207], sizes = [8, 49], strides = [1, 1]} : vector<8x256xbf16> to vector<8x49xbf16>
    %58 = vector.extract_strided_slice %37 {offsets = [0, 0], sizes = [8, 207], strides = [1, 1]} : vector<8x256xbf16> to vector<8x207xbf16>
    %59 = tpu.concatenate %57, %58 in 1 : vector<8x49xbf16>, vector<8x207xbf16> -> vector<8x256xbf16>
    %c2 = arith.constant 2 : index
    %c0_25 = arith.constant 0 : index
    %c0_26 = arith.constant 0 : index
    %60 = vector.load %arg5[%c2, %c0_25, %c0_26] : memref<49x4x8xbf16, #tpu.memory_space<vmem>>, vector<1x4x8xbf16>
    %61 = vector.shape_cast %60 : vector<1x4x8xbf16> to vector<4x8xbf16>
    %cst_27 = arith.constant dense<0.000000e+00> : vector<4x256xf32>
    %62 = tpu.matmul %61, %59, %cst_27 {dimension_numbers = #tpu.dot_dimension_numbers<[1], [0], [0], [1], [0, 0, 1, 1], [], []>} : vector<4x8xbf16>, vector<8x256xbf16>, vector<4x256xf32> -> vector<4x256xf32>
    %c2_28 = arith.constant 2 : index
    %c0_29 = arith.constant 0 : index
    %63 = vector.load %arg6[%c2_28, %c0_29] : memref<49x256xf32, #tpu.memory_space<vmem>>, vector<1x256xf32>
    %64 = vector.broadcast %63 : vector<1x256xf32> to vector<4x256xf32>
    %65 = arith.mulf %62, %64 : vector<4x256xf32>
    %66 = arith.addf %56, %65 : vector<4x256xf32>
    %67 = vector.extract_strided_slice %37 {offsets = [0, 208], sizes = [8, 48], strides = [1, 1]} : vector<8x256xbf16> to vector<8x48xbf16>
    %68 = vector.extract_strided_slice %37 {offsets = [0, 0], sizes = [8, 208], strides = [1, 1]} : vector<8x256xbf16> to vector<8x208xbf16>
    %69 = tpu.concatenate %67, %68 in 1 : vector<8x48xbf16>, vector<8x208xbf16> -> vector<8x256xbf16>
    %c3 = arith.constant 3 : index
    %c0_30 = arith.constant 0 : index
    %c0_31 = arith.constant 0 : index
    %70 = vector.load %arg5[%c3, %c0_30, %c0_31] : memref<49x4x8xbf16, #tpu.memory_space<vmem>>, vector<1x4x8xbf16>
    %71 = vector.shape_cast %70 : vector<1x4x8xbf16> to vector<4x8xbf16>
    %cst_32 = arith.constant dense<0.000000e+00> : vector<4x256xf32>
    %72 = tpu.matmul %71, %69, %cst_32 {dimension_numbers = #tpu.dot_dimension_numbers<[1], [0], [0], [1], [0, 0, 1, 1], [], []>} : vector<4x8xbf16>, vector<8x256xbf16>, vector<4x256xf32> -> vector<4x256xf32>
    %c3_33 = arith.constant 3 : index
    %c0_34 = arith.constant 0 : index
    %73 = vector.load %arg6[%c3_33, %c0_34] : memref<49x256xf32, #tpu.memory_space<vmem>>, vector<1x256xf32>
    %74 = vector.broadcast %73 : vector<1x256xf32> to vector<4x256xf32>
    %75 = arith.mulf %72, %74 : vector<4x256xf32>
    %76 = arith.addf %66, %75 : vector<4x256xf32>
    %77 = vector.extract_strided_slice %37 {offsets = [0, 209], sizes = [8, 47], strides = [1, 1]} : vector<8x256xbf16> to vector<8x47xbf16>
    %78 = vector.extract_strided_slice %37 {offsets = [0, 0], sizes = [8, 209], strides = [1, 1]} : vector<8x256xbf16> to vector<8x209xbf16>
    %79 = tpu.concatenate %77, %78 in 1 : vector<8x47xbf16>, vector<8x209xbf16> -> vector<8x256xbf16>
    %c4 = arith.constant 4 : index
    %c0_35 = arith.constant 0 : index
    %c0_36 = arith.constant 0 : index
    %80 = vector.load %arg5[%c4, %c0_35, %c0_36] : memref<49x4x8xbf16, #tpu.memory_space<vmem>>, vector<1x4x8xbf16>
    %81 = vector.shape_cast %80 : vector<1x4x8xbf16> to vector<4x8xbf16>
    %cst_37 = arith.constant dense<0.000000e+00> : vector<4x256xf32>
    %82 = tpu.matmul %81, %79, %cst_37 {dimension_numbers = #tpu.dot_dimension_numbers<[1], [0], [0], [1], [0, 0, 1, 1], [], []>} : vector<4x8xbf16>, vector<8x256xbf16>, vector<4x256xf32> -> vector<4x256xf32>
    %c4_38 = arith.constant 4 : index
    %c0_39 = arith.constant 0 : index
    %83 = vector.load %arg6[%c4_38, %c0_39] : memref<49x256xf32, #tpu.memory_space<vmem>>, vector<1x256xf32>
    %84 = vector.broadcast %83 : vector<1x256xf32> to vector<4x256xf32>
    %85 = arith.mulf %82, %84 : vector<4x256xf32>
    %86 = arith.addf %76, %85 : vector<4x256xf32>
    %87 = vector.extract_strided_slice %37 {offsets = [0, 210], sizes = [8, 46], strides = [1, 1]} : vector<8x256xbf16> to vector<8x46xbf16>
    %88 = vector.extract_strided_slice %37 {offsets = [0, 0], sizes = [8, 210], strides = [1, 1]} : vector<8x256xbf16> to vector<8x210xbf16>
    %89 = tpu.concatenate %87, %88 in 1 : vector<8x46xbf16>, vector<8x210xbf16> -> vector<8x256xbf16>
    %c5 = arith.constant 5 : index
    %c0_40 = arith.constant 0 : index
    %c0_41 = arith.constant 0 : index
    %90 = vector.load %arg5[%c5, %c0_40, %c0_41] : memref<49x4x8xbf16, #tpu.memory_space<vmem>>, vector<1x4x8xbf16>
    %91 = vector.shape_cast %90 : vector<1x4x8xbf16> to vector<4x8xbf16>
    %cst_42 = arith.constant dense<0.000000e+00> : vector<4x256xf32>
    %92 = tpu.matmul %91, %89, %cst_42 {dimension_numbers = #tpu.dot_dimension_numbers<[1], [0], [0], [1], [0, 0, 1, 1], [], []>} : vector<4x8xbf16>, vector<8x256xbf16>, vector<4x256xf32> -> vector<4x256xf32>
    %c5_43 = arith.constant 5 : index
    %c0_44 = arith.constant 0 : index
    %93 = vector.load %arg6[%c5_43, %c0_44] : memref<49x256xf32, #tpu.memory_space<vmem>>, vector<1x256xf32>
    %94 = vector.broadcast %93 : vector<1x256xf32> to vector<4x256xf32>
    %95 = arith.mulf %92, %94 : vector<4x256xf32>
    %96 = arith.addf %86, %95 : vector<4x256xf32>
    %97 = vector.extract_strided_slice %37 {offsets = [0, 211], sizes = [8, 45], strides = [1, 1]} : vector<8x256xbf16> to vector<8x45xbf16>
    %98 = vector.extract_strided_slice %37 {offsets = [0, 0], sizes = [8, 211], strides = [1, 1]} : vector<8x256xbf16> to vector<8x211xbf16>
    %99 = tpu.concatenate %97, %98 in 1 : vector<8x45xbf16>, vector<8x211xbf16> -> vector<8x256xbf16>
    %c6 = arith.constant 6 : index
    %c0_45 = arith.constant 0 : index
    %c0_46 = arith.constant 0 : index
    %100 = vector.load %arg5[%c6, %c0_45, %c0_46] : memref<49x4x8xbf16, #tpu.memory_space<vmem>>, vector<1x4x8xbf16>
    %101 = vector.shape_cast %100 : vector<1x4x8xbf16> to vector<4x8xbf16>
    %cst_47 = arith.constant dense<0.000000e+00> : vector<4x256xf32>
    %102 = tpu.matmul %101, %99, %cst_47 {dimension_numbers = #tpu.dot_dimension_numbers<[1], [0], [0], [1], [0, 0, 1, 1], [], []>} : vector<4x8xbf16>, vector<8x256xbf16>, vector<4x256xf32> -> vector<4x256xf32>
    %c6_48 = arith.constant 6 : index
    %c0_49 = arith.constant 0 : index
    %103 = vector.load %arg6[%c6_48, %c0_49] : memref<49x256xf32, #tpu.memory_space<vmem>>, vector<1x256xf32>
    %104 = vector.broadcast %103 : vector<1x256xf32> to vector<4x256xf32>
    %105 = arith.mulf %102, %104 : vector<4x256xf32>
    %106 = arith.addf %96, %105 : vector<4x256xf32>
    %107 = vector.extract_strided_slice %37 {offsets = [0, 221], sizes = [8, 35], strides = [1, 1]} : vector<8x256xbf16> to vector<8x35xbf16>
    %108 = vector.extract_strided_slice %37 {offsets = [0, 0], sizes = [8, 221], strides = [1, 1]} : vector<8x256xbf16> to vector<8x221xbf16>
    %109 = tpu.concatenate %107, %108 in 1 : vector<8x35xbf16>, vector<8x221xbf16> -> vector<8x256xbf16>
    %c7 = arith.constant 7 : index
    %c0_50 = arith.constant 0 : index
    %c0_51 = arith.constant 0 : index
    %110 = vector.load %arg5[%c7, %c0_50, %c0_51] : memref<49x4x8xbf16, #tpu.memory_space<vmem>>, vector<1x4x8xbf16>
    %111 = vector.shape_cast %110 : vector<1x4x8xbf16> to vector<4x8xbf16>
    %cst_52 = arith.constant dense<0.000000e+00> : vector<4x256xf32>
    %112 = tpu.matmul %111, %109, %cst_52 {dimension_numbers = #tpu.dot_dimension_numbers<[1], [0], [0], [1], [0, 0, 1, 1], [], []>} : vector<4x8xbf16>, vector<8x256xbf16>, vector<4x256xf32> -> vector<4x256xf32>
    %c7_53 = arith.constant 7 : index
    %c0_54 = arith.constant 0 : index
    %113 = vector.load %arg6[%c7_53, %c0_54] : memref<49x256xf32, #tpu.memory_space<vmem>>, vector<1x256xf32>
    %114 = vector.broadcast %113 : vector<1x256xf32> to vector<4x256xf32>
    %115 = arith.mulf %112, %114 : vector<4x256xf32>
    %116 = arith.addf %106, %115 : vector<4x256xf32>
    %117 = vector.extract_strided_slice %37 {offsets = [0, 222], sizes = [8, 34], strides = [1, 1]} : vector<8x256xbf16> to vector<8x34xbf16>
    %118 = vector.extract_strided_slice %37 {offsets = [0, 0], sizes = [8, 222], strides = [1, 1]} : vector<8x256xbf16> to vector<8x222xbf16>
    %119 = tpu.concatenate %117, %118 in 1 : vector<8x34xbf16>, vector<8x222xbf16> -> vector<8x256xbf16>
    %c8 = arith.constant 8 : index
    %c0_55 = arith.constant 0 : index
    %c0_56 = arith.constant 0 : index
    %120 = vector.load %arg5[%c8, %c0_55, %c0_56] : memref<49x4x8xbf16, #tpu.memory_space<vmem>>, vector<1x4x8xbf16>
    %121 = vector.shape_cast %120 : vector<1x4x8xbf16> to vector<4x8xbf16>
    %cst_57 = arith.constant dense<0.000000e+00> : vector<4x256xf32>
    %122 = tpu.matmul %121, %119, %cst_57 {dimension_numbers = #tpu.dot_dimension_numbers<[1], [0], [0], [1], [0, 0, 1, 1], [], []>} : vector<4x8xbf16>, vector<8x256xbf16>, vector<4x256xf32> -> vector<4x256xf32>
    %c8_58 = arith.constant 8 : index
    %c0_59 = arith.constant 0 : index
    %123 = vector.load %arg6[%c8_58, %c0_59] : memref<49x256xf32, #tpu.memory_space<vmem>>, vector<1x256xf32>
    %124 = vector.broadcast %123 : vector<1x256xf32> to vector<4x256xf32>
    %125 = arith.mulf %122, %124 : vector<4x256xf32>
    %126 = arith.addf %116, %125 : vector<4x256xf32>
    %127 = vector.extract_strided_slice %37 {offsets = [0, 223], sizes = [8, 33], strides = [1, 1]} : vector<8x256xbf16> to vector<8x33xbf16>
    %128 = vector.extract_strided_slice %37 {offsets = [0, 0], sizes = [8, 223], strides = [1, 1]} : vector<8x256xbf16> to vector<8x223xbf16>
    %129 = tpu.concatenate %127, %128 in 1 : vector<8x33xbf16>, vector<8x223xbf16> -> vector<8x256xbf16>
    %c9 = arith.constant 9 : index
    %c0_60 = arith.constant 0 : index
    %c0_61 = arith.constant 0 : index
    %130 = vector.load %arg5[%c9, %c0_60, %c0_61] : memref<49x4x8xbf16, #tpu.memory_space<vmem>>, vector<1x4x8xbf16>
    %131 = vector.shape_cast %130 : vector<1x4x8xbf16> to vector<4x8xbf16>
    %cst_62 = arith.constant dense<0.000000e+00> : vector<4x256xf32>
    %132 = tpu.matmul %131, %129, %cst_62 {dimension_numbers = #tpu.dot_dimension_numbers<[1], [0], [0], [1], [0, 0, 1, 1], [], []>} : vector<4x8xbf16>, vector<8x256xbf16>, vector<4x256xf32> -> vector<4x256xf32>
    %c9_63 = arith.constant 9 : index
    %c0_64 = arith.constant 0 : index
    %133 = vector.load %arg6[%c9_63, %c0_64] : memref<49x256xf32, #tpu.memory_space<vmem>>, vector<1x256xf32>
    %134 = vector.broadcast %133 : vector<1x256xf32> to vector<4x256xf32>
    %135 = arith.mulf %132, %134 : vector<4x256xf32>
    %136 = arith.addf %126, %135 : vector<4x256xf32>
    %137 = vector.extract_strided_slice %37 {offsets = [0, 224], sizes = [8, 32], strides = [1, 1]} : vector<8x256xbf16> to vector<8x32xbf16>
    %138 = vector.extract_strided_slice %37 {offsets = [0, 0], sizes = [8, 224], strides = [1, 1]} : vector<8x256xbf16> to vector<8x224xbf16>
    %139 = tpu.concatenate %137, %138 in 1 : vector<8x32xbf16>, vector<8x224xbf16> -> vector<8x256xbf16>
    %c10 = arith.constant 10 : index
    %c0_65 = arith.constant 0 : index
    %c0_66 = arith.constant 0 : index
    %140 = vector.load %arg5[%c10, %c0_65, %c0_66] : memref<49x4x8xbf16, #tpu.memory_space<vmem>>, vector<1x4x8xbf16>
    %141 = vector.shape_cast %140 : vector<1x4x8xbf16> to vector<4x8xbf16>
    %cst_67 = arith.constant dense<0.000000e+00> : vector<4x256xf32>
    %142 = tpu.matmul %141, %139, %cst_67 {dimension_numbers = #tpu.dot_dimension_numbers<[1], [0], [0], [1], [0, 0, 1, 1], [], []>} : vector<4x8xbf16>, vector<8x256xbf16>, vector<4x256xf32> -> vector<4x256xf32>
    %c10_68 = arith.constant 10 : index
    %c0_69 = arith.constant 0 : index
    %143 = vector.load %arg6[%c10_68, %c0_69] : memref<49x256xf32, #tpu.memory_space<vmem>>, vector<1x256xf32>
    %144 = vector.broadcast %143 : vector<1x256xf32> to vector<4x256xf32>
    %145 = arith.mulf %142, %144 : vector<4x256xf32>
    %146 = arith.addf %136, %145 : vector<4x256xf32>
    %147 = vector.extract_strided_slice %37 {offsets = [0, 225], sizes = [8, 31], strides = [1, 1]} : vector<8x256xbf16> to vector<8x31xbf16>
    %148 = vector.extract_strided_slice %37 {offsets = [0, 0], sizes = [8, 225], strides = [1, 1]} : vector<8x256xbf16> to vector<8x225xbf16>
    %149 = tpu.concatenate %147, %148 in 1 : vector<8x31xbf16>, vector<8x225xbf16> -> vector<8x256xbf16>
    %c11 = arith.constant 11 : index
    %c0_70 = arith.constant 0 : index
    %c0_71 = arith.constant 0 : index
    %150 = vector.load %arg5[%c11, %c0_70, %c0_71] : memref<49x4x8xbf16, #tpu.memory_space<vmem>>, vector<1x4x8xbf16>
    %151 = vector.shape_cast %150 : vector<1x4x8xbf16> to vector<4x8xbf16>
    %cst_72 = arith.constant dense<0.000000e+00> : vector<4x256xf32>
    %152 = tpu.matmul %151, %149, %cst_72 {dimension_numbers = #tpu.dot_dimension_numbers<[1], [0], [0], [1], [0, 0, 1, 1], [], []>} : vector<4x8xbf16>, vector<8x256xbf16>, vector<4x256xf32> -> vector<4x256xf32>
    %c11_73 = arith.constant 11 : index
    %c0_74 = arith.constant 0 : index
    %153 = vector.load %arg6[%c11_73, %c0_74] : memref<49x256xf32, #tpu.memory_space<vmem>>, vector<1x256xf32>
    %154 = vector.broadcast %153 : vector<1x256xf32> to vector<4x256xf32>
    %155 = arith.mulf %152, %154 : vector<4x256xf32>
    %156 = arith.addf %146, %155 : vector<4x256xf32>
    %157 = vector.extract_strided_slice %37 {offsets = [0, 226], sizes = [8, 30], strides = [1, 1]} : vector<8x256xbf16> to vector<8x30xbf16>
    %158 = vector.extract_strided_slice %37 {offsets = [0, 0], sizes = [8, 226], strides = [1, 1]} : vector<8x256xbf16> to vector<8x226xbf16>
    %159 = tpu.concatenate %157, %158 in 1 : vector<8x30xbf16>, vector<8x226xbf16> -> vector<8x256xbf16>
    %c12 = arith.constant 12 : index
    %c0_75 = arith.constant 0 : index
    %c0_76 = arith.constant 0 : index
    %160 = vector.load %arg5[%c12, %c0_75, %c0_76] : memref<49x4x8xbf16, #tpu.memory_space<vmem>>, vector<1x4x8xbf16>
    %161 = vector.shape_cast %160 : vector<1x4x8xbf16> to vector<4x8xbf16>
    %cst_77 = arith.constant dense<0.000000e+00> : vector<4x256xf32>
    %162 = tpu.matmul %161, %159, %cst_77 {dimension_numbers = #tpu.dot_dimension_numbers<[1], [0], [0], [1], [0, 0, 1, 1], [], []>} : vector<4x8xbf16>, vector<8x256xbf16>, vector<4x256xf32> -> vector<4x256xf32>
    %c12_78 = arith.constant 12 : index
    %c0_79 = arith.constant 0 : index
    %163 = vector.load %arg6[%c12_78, %c0_79] : memref<49x256xf32, #tpu.memory_space<vmem>>, vector<1x256xf32>
    %164 = vector.broadcast %163 : vector<1x256xf32> to vector<4x256xf32>
    %165 = arith.mulf %162, %164 : vector<4x256xf32>
    %166 = arith.addf %156, %165 : vector<4x256xf32>
    %167 = vector.extract_strided_slice %37 {offsets = [0, 227], sizes = [8, 29], strides = [1, 1]} : vector<8x256xbf16> to vector<8x29xbf16>
    %168 = vector.extract_strided_slice %37 {offsets = [0, 0], sizes = [8, 227], strides = [1, 1]} : vector<8x256xbf16> to vector<8x227xbf16>
    %169 = tpu.concatenate %167, %168 in 1 : vector<8x29xbf16>, vector<8x227xbf16> -> vector<8x256xbf16>
    %c13 = arith.constant 13 : index
    %c0_80 = arith.constant 0 : index
    %c0_81 = arith.constant 0 : index
    %170 = vector.load %arg5[%c13, %c0_80, %c0_81] : memref<49x4x8xbf16, #tpu.memory_space<vmem>>, vector<1x4x8xbf16>
    %171 = vector.shape_cast %170 : vector<1x4x8xbf16> to vector<4x8xbf16>
    %cst_82 = arith.constant dense<0.000000e+00> : vector<4x256xf32>
    %172 = tpu.matmul %171, %169, %cst_82 {dimension_numbers = #tpu.dot_dimension_numbers<[1], [0], [0], [1], [0, 0, 1, 1], [], []>} : vector<4x8xbf16>, vector<8x256xbf16>, vector<4x256xf32> -> vector<4x256xf32>
    %c13_83 = arith.constant 13 : index
    %c0_84 = arith.constant 0 : index
    %173 = vector.load %arg6[%c13_83, %c0_84] : memref<49x256xf32, #tpu.memory_space<vmem>>, vector<1x256xf32>
    %174 = vector.broadcast %173 : vector<1x256xf32> to vector<4x256xf32>
    %175 = arith.mulf %172, %174 : vector<4x256xf32>
    %176 = arith.addf %166, %175 : vector<4x256xf32>
    %177 = vector.extract_strided_slice %37 {offsets = [0, 237], sizes = [8, 19], strides = [1, 1]} : vector<8x256xbf16> to vector<8x19xbf16>
    %178 = vector.extract_strided_slice %37 {offsets = [0, 0], sizes = [8, 237], strides = [1, 1]} : vector<8x256xbf16> to vector<8x237xbf16>
    %179 = tpu.concatenate %177, %178 in 1 : vector<8x19xbf16>, vector<8x237xbf16> -> vector<8x256xbf16>
    %c14 = arith.constant 14 : index
    %c0_85 = arith.constant 0 : index
    %c0_86 = arith.constant 0 : index
    %180 = vector.load %arg5[%c14, %c0_85, %c0_86] : memref<49x4x8xbf16, #tpu.memory_space<vmem>>, vector<1x4x8xbf16>
    %181 = vector.shape_cast %180 : vector<1x4x8xbf16> to vector<4x8xbf16>
    %cst_87 = arith.constant dense<0.000000e+00> : vector<4x256xf32>
    %182 = tpu.matmul %181, %179, %cst_87 {dimension_numbers = #tpu.dot_dimension_numbers<[1], [0], [0], [1], [0, 0, 1, 1], [], []>} : vector<4x8xbf16>, vector<8x256xbf16>, vector<4x256xf32> -> vector<4x256xf32>
    %c14_88 = arith.constant 14 : index
    %c0_89 = arith.constant 0 : index
    %183 = vector.load %arg6[%c14_88, %c0_89] : memref<49x256xf32, #tpu.memory_space<vmem>>, vector<1x256xf32>
    %184 = vector.broadcast %183 : vector<1x256xf32> to vector<4x256xf32>
    %185 = arith.mulf %182, %184 : vector<4x256xf32>
    %186 = arith.addf %176, %185 : vector<4x256xf32>
    %187 = vector.extract_strided_slice %37 {offsets = [0, 238], sizes = [8, 18], strides = [1, 1]} : vector<8x256xbf16> to vector<8x18xbf16>
    %188 = vector.extract_strided_slice %37 {offsets = [0, 0], sizes = [8, 238], strides = [1, 1]} : vector<8x256xbf16> to vector<8x238xbf16>
    %189 = tpu.concatenate %187, %188 in 1 : vector<8x18xbf16>, vector<8x238xbf16> -> vector<8x256xbf16>
    %c15 = arith.constant 15 : index
    %c0_90 = arith.constant 0 : index
    %c0_91 = arith.constant 0 : index
    %190 = vector.load %arg5[%c15, %c0_90, %c0_91] : memref<49x4x8xbf16, #tpu.memory_space<vmem>>, vector<1x4x8xbf16>
    %191 = vector.shape_cast %190 : vector<1x4x8xbf16> to vector<4x8xbf16>
    %cst_92 = arith.constant dense<0.000000e+00> : vector<4x256xf32>
    %192 = tpu.matmul %191, %189, %cst_92 {dimension_numbers = #tpu.dot_dimension_numbers<[1], [0], [0], [1], [0, 0, 1, 1], [], []>} : vector<4x8xbf16>, vector<8x256xbf16>, vector<4x256xf32> -> vector<4x256xf32>
    %c15_93 = arith.constant 15 : index
    %c0_94 = arith.constant 0 : index
    %193 = vector.load %arg6[%c15_93, %c0_94] : memref<49x256xf32, #tpu.memory_space<vmem>>, vector<1x256xf32>
    %194 = vector.broadcast %193 : vector<1x256xf32> to vector<4x256xf32>
    %195 = arith.mulf %192, %194 : vector<4x256xf32>
    %196 = arith.addf %186, %195 : vector<4x256xf32>
    %197 = vector.extract_strided_slice %37 {offsets = [0, 239], sizes = [8, 17], strides = [1, 1]} : vector<8x256xbf16> to vector<8x17xbf16>
    %198 = vector.extract_strided_slice %37 {offsets = [0, 0], sizes = [8, 239], strides = [1, 1]} : vector<8x256xbf16> to vector<8x239xbf16>
    %199 = tpu.concatenate %197, %198 in 1 : vector<8x17xbf16>, vector<8x239xbf16> -> vector<8x256xbf16>
    %c16 = arith.constant 16 : index
    %c0_95 = arith.constant 0 : index
    %c0_96 = arith.constant 0 : index
    %200 = vector.load %arg5[%c16, %c0_95, %c0_96] : memref<49x4x8xbf16, #tpu.memory_space<vmem>>, vector<1x4x8xbf16>
    %201 = vector.shape_cast %200 : vector<1x4x8xbf16> to vector<4x8xbf16>
    %cst_97 = arith.constant dense<0.000000e+00> : vector<4x256xf32>
    %202 = tpu.matmul %201, %199, %cst_97 {dimension_numbers = #tpu.dot_dimension_numbers<[1], [0], [0], [1], [0, 0, 1, 1], [], []>} : vector<4x8xbf16>, vector<8x256xbf16>, vector<4x256xf32> -> vector<4x256xf32>
    %c16_98 = arith.constant 16 : index
    %c0_99 = arith.constant 0 : index
    %203 = vector.load %arg6[%c16_98, %c0_99] : memref<49x256xf32, #tpu.memory_space<vmem>>, vector<1x256xf32>
    %204 = vector.broadcast %203 : vector<1x256xf32> to vector<4x256xf32>
    %205 = arith.mulf %202, %204 : vector<4x256xf32>
    %206 = arith.addf %196, %205 : vector<4x256xf32>
    %207 = vector.extract_strided_slice %37 {offsets = [0, 240], sizes = [8, 16], strides = [1, 1]} : vector<8x256xbf16> to vector<8x16xbf16>
    %208 = vector.extract_strided_slice %37 {offsets = [0, 0], sizes = [8, 240], strides = [1, 1]} : vector<8x256xbf16> to vector<8x240xbf16>
    %209 = tpu.concatenate %207, %208 in 1 : vector<8x16xbf16>, vector<8x240xbf16> -> vector<8x256xbf16>
    %c17 = arith.constant 17 : index
    %c0_100 = arith.constant 0 : index
    %c0_101 = arith.constant 0 : index
    %210 = vector.load %arg5[%c17, %c0_100, %c0_101] : memref<49x4x8xbf16, #tpu.memory_space<vmem>>, vector<1x4x8xbf16>
    %211 = vector.shape_cast %210 : vector<1x4x8xbf16> to vector<4x8xbf16>
    %cst_102 = arith.constant dense<0.000000e+00> : vector<4x256xf32>
    %212 = tpu.matmul %211, %209, %cst_102 {dimension_numbers = #tpu.dot_dimension_numbers<[1], [0], [0], [1], [0, 0, 1, 1], [], []>} : vector<4x8xbf16>, vector<8x256xbf16>, vector<4x256xf32> -> vector<4x256xf32>
    %c17_103 = arith.constant 17 : index
    %c0_104 = arith.constant 0 : index
    %213 = vector.load %arg6[%c17_103, %c0_104] : memref<49x256xf32, #tpu.memory_space<vmem>>, vector<1x256xf32>
    %214 = vector.broadcast %213 : vector<1x256xf32> to vector<4x256xf32>
    %215 = arith.mulf %212, %214 : vector<4x256xf32>
    %216 = arith.addf %206, %215 : vector<4x256xf32>
    %217 = vector.extract_strided_slice %37 {offsets = [0, 241], sizes = [8, 15], strides = [1, 1]} : vector<8x256xbf16> to vector<8x15xbf16>
    %218 = vector.extract_strided_slice %37 {offsets = [0, 0], sizes = [8, 241], strides = [1, 1]} : vector<8x256xbf16> to vector<8x241xbf16>
    %219 = tpu.concatenate %217, %218 in 1 : vector<8x15xbf16>, vector<8x241xbf16> -> vector<8x256xbf16>
    %c18 = arith.constant 18 : index
    %c0_105 = arith.constant 0 : index
    %c0_106 = arith.constant 0 : index
    %220 = vector.load %arg5[%c18, %c0_105, %c0_106] : memref<49x4x8xbf16, #tpu.memory_space<vmem>>, vector<1x4x8xbf16>
    %221 = vector.shape_cast %220 : vector<1x4x8xbf16> to vector<4x8xbf16>
    %cst_107 = arith.constant dense<0.000000e+00> : vector<4x256xf32>
    %222 = tpu.matmul %221, %219, %cst_107 {dimension_numbers = #tpu.dot_dimension_numbers<[1], [0], [0], [1], [0, 0, 1, 1], [], []>} : vector<4x8xbf16>, vector<8x256xbf16>, vector<4x256xf32> -> vector<4x256xf32>
    %c18_108 = arith.constant 18 : index
    %c0_109 = arith.constant 0 : index
    %223 = vector.load %arg6[%c18_108, %c0_109] : memref<49x256xf32, #tpu.memory_space<vmem>>, vector<1x256xf32>
    %224 = vector.broadcast %223 : vector<1x256xf32> to vector<4x256xf32>
    %225 = arith.mulf %222, %224 : vector<4x256xf32>
    %226 = arith.addf %216, %225 : vector<4x256xf32>
    %227 = vector.extract_strided_slice %37 {offsets = [0, 242], sizes = [8, 14], strides = [1, 1]} : vector<8x256xbf16> to vector<8x14xbf16>
    %228 = vector.extract_strided_slice %37 {offsets = [0, 0], sizes = [8, 242], strides = [1, 1]} : vector<8x256xbf16> to vector<8x242xbf16>
    %229 = tpu.concatenate %227, %228 in 1 : vector<8x14xbf16>, vector<8x242xbf16> -> vector<8x256xbf16>
    %c19 = arith.constant 19 : index
    %c0_110 = arith.constant 0 : index
    %c0_111 = arith.constant 0 : index
    %230 = vector.load %arg5[%c19, %c0_110, %c0_111] : memref<49x4x8xbf16, #tpu.memory_space<vmem>>, vector<1x4x8xbf16>
    %231 = vector.shape_cast %230 : vector<1x4x8xbf16> to vector<4x8xbf16>
    %cst_112 = arith.constant dense<0.000000e+00> : vector<4x256xf32>
    %232 = tpu.matmul %231, %229, %cst_112 {dimension_numbers = #tpu.dot_dimension_numbers<[1], [0], [0], [1], [0, 0, 1, 1], [], []>} : vector<4x8xbf16>, vector<8x256xbf16>, vector<4x256xf32> -> vector<4x256xf32>
    %c19_113 = arith.constant 19 : index
    %c0_114 = arith.constant 0 : index
    %233 = vector.load %arg6[%c19_113, %c0_114] : memref<49x256xf32, #tpu.memory_space<vmem>>, vector<1x256xf32>
    %234 = vector.broadcast %233 : vector<1x256xf32> to vector<4x256xf32>
    %235 = arith.mulf %232, %234 : vector<4x256xf32>
    %236 = arith.addf %226, %235 : vector<4x256xf32>
    %237 = vector.extract_strided_slice %37 {offsets = [0, 243], sizes = [8, 13], strides = [1, 1]} : vector<8x256xbf16> to vector<8x13xbf16>
    %238 = vector.extract_strided_slice %37 {offsets = [0, 0], sizes = [8, 243], strides = [1, 1]} : vector<8x256xbf16> to vector<8x243xbf16>
    %239 = tpu.concatenate %237, %238 in 1 : vector<8x13xbf16>, vector<8x243xbf16> -> vector<8x256xbf16>
    %c20 = arith.constant 20 : index
    %c0_115 = arith.constant 0 : index
    %c0_116 = arith.constant 0 : index
    %240 = vector.load %arg5[%c20, %c0_115, %c0_116] : memref<49x4x8xbf16, #tpu.memory_space<vmem>>, vector<1x4x8xbf16>
    %241 = vector.shape_cast %240 : vector<1x4x8xbf16> to vector<4x8xbf16>
    %cst_117 = arith.constant dense<0.000000e+00> : vector<4x256xf32>
    %242 = tpu.matmul %241, %239, %cst_117 {dimension_numbers = #tpu.dot_dimension_numbers<[1], [0], [0], [1], [0, 0, 1, 1], [], []>} : vector<4x8xbf16>, vector<8x256xbf16>, vector<4x256xf32> -> vector<4x256xf32>
    %c20_118 = arith.constant 20 : index
    %c0_119 = arith.constant 0 : index
    %243 = vector.load %arg6[%c20_118, %c0_119] : memref<49x256xf32, #tpu.memory_space<vmem>>, vector<1x256xf32>
    %244 = vector.broadcast %243 : vector<1x256xf32> to vector<4x256xf32>
    %245 = arith.mulf %242, %244 : vector<4x256xf32>
    %246 = arith.addf %236, %245 : vector<4x256xf32>
    %247 = vector.extract_strided_slice %37 {offsets = [0, 253], sizes = [8, 3], strides = [1, 1]} : vector<8x256xbf16> to vector<8x3xbf16>
    %248 = vector.extract_strided_slice %37 {offsets = [0, 0], sizes = [8, 253], strides = [1, 1]} : vector<8x256xbf16> to vector<8x253xbf16>
    %249 = tpu.concatenate %247, %248 in 1 : vector<8x3xbf16>, vector<8x253xbf16> -> vector<8x256xbf16>
    %c21 = arith.constant 21 : index
    %c0_120 = arith.constant 0 : index
    %c0_121 = arith.constant 0 : index
    %250 = vector.load %arg5[%c21, %c0_120, %c0_121] : memref<49x4x8xbf16, #tpu.memory_space<vmem>>, vector<1x4x8xbf16>
    %251 = vector.shape_cast %250 : vector<1x4x8xbf16> to vector<4x8xbf16>
    %cst_122 = arith.constant dense<0.000000e+00> : vector<4x256xf32>
    %252 = tpu.matmul %251, %249, %cst_122 {dimension_numbers = #tpu.dot_dimension_numbers<[1], [0], [0], [1], [0, 0, 1, 1], [], []>} : vector<4x8xbf16>, vector<8x256xbf16>, vector<4x256xf32> -> vector<4x256xf32>
    %c21_123 = arith.constant 21 : index
    %c0_124 = arith.constant 0 : index
    %253 = vector.load %arg6[%c21_123, %c0_124] : memref<49x256xf32, #tpu.memory_space<vmem>>, vector<1x256xf32>
    %254 = vector.broadcast %253 : vector<1x256xf32> to vector<4x256xf32>
    %255 = arith.mulf %252, %254 : vector<4x256xf32>
    %256 = arith.addf %246, %255 : vector<4x256xf32>
    %257 = vector.extract_strided_slice %37 {offsets = [0, 254], sizes = [8, 2], strides = [1, 1]} : vector<8x256xbf16> to vector<8x2xbf16>
    %258 = vector.extract_strided_slice %37 {offsets = [0, 0], sizes = [8, 254], strides = [1, 1]} : vector<8x256xbf16> to vector<8x254xbf16>
    %259 = tpu.concatenate %257, %258 in 1 : vector<8x2xbf16>, vector<8x254xbf16> -> vector<8x256xbf16>
    %c22 = arith.constant 22 : index
    %c0_125 = arith.constant 0 : index
    %c0_126 = arith.constant 0 : index
    %260 = vector.load %arg5[%c22, %c0_125, %c0_126] : memref<49x4x8xbf16, #tpu.memory_space<vmem>>, vector<1x4x8xbf16>
    %261 = vector.shape_cast %260 : vector<1x4x8xbf16> to vector<4x8xbf16>
    %cst_127 = arith.constant dense<0.000000e+00> : vector<4x256xf32>
    %262 = tpu.matmul %261, %259, %cst_127 {dimension_numbers = #tpu.dot_dimension_numbers<[1], [0], [0], [1], [0, 0, 1, 1], [], []>} : vector<4x8xbf16>, vector<8x256xbf16>, vector<4x256xf32> -> vector<4x256xf32>
    %c22_128 = arith.constant 22 : index
    %c0_129 = arith.constant 0 : index
    %263 = vector.load %arg6[%c22_128, %c0_129] : memref<49x256xf32, #tpu.memory_space<vmem>>, vector<1x256xf32>
    %264 = vector.broadcast %263 : vector<1x256xf32> to vector<4x256xf32>
    %265 = arith.mulf %262, %264 : vector<4x256xf32>
    %266 = arith.addf %256, %265 : vector<4x256xf32>
    %267 = vector.extract_strided_slice %37 {offsets = [0, 255], sizes = [8, 1], strides = [1, 1]} : vector<8x256xbf16> to vector<8x1xbf16>
    %268 = vector.extract_strided_slice %37 {offsets = [0, 0], sizes = [8, 255], strides = [1, 1]} : vector<8x256xbf16> to vector<8x255xbf16>
    %269 = tpu.concatenate %267, %268 in 1 : vector<8x1xbf16>, vector<8x255xbf16> -> vector<8x256xbf16>
    %c23 = arith.constant 23 : index
    %c0_130 = arith.constant 0 : index
    %c0_131 = arith.constant 0 : index
    %270 = vector.load %arg5[%c23, %c0_130, %c0_131] : memref<49x4x8xbf16, #tpu.memory_space<vmem>>, vector<1x4x8xbf16>
    %271 = vector.shape_cast %270 : vector<1x4x8xbf16> to vector<4x8xbf16>
    %cst_132 = arith.constant dense<0.000000e+00> : vector<4x256xf32>
    %272 = tpu.matmul %271, %269, %cst_132 {dimension_numbers = #tpu.dot_dimension_numbers<[1], [0], [0], [1], [0, 0, 1, 1], [], []>} : vector<4x8xbf16>, vector<8x256xbf16>, vector<4x256xf32> -> vector<4x256xf32>
    %c23_133 = arith.constant 23 : index
    %c0_134 = arith.constant 0 : index
    %273 = vector.load %arg6[%c23_133, %c0_134] : memref<49x256xf32, #tpu.memory_space<vmem>>, vector<1x256xf32>
    %274 = vector.broadcast %273 : vector<1x256xf32> to vector<4x256xf32>
    %275 = arith.mulf %272, %274 : vector<4x256xf32>
    %276 = arith.addf %266, %275 : vector<4x256xf32>
    %c24 = arith.constant 24 : index
    %c0_135 = arith.constant 0 : index
    %c0_136 = arith.constant 0 : index
    %277 = vector.load %arg5[%c24, %c0_135, %c0_136] : memref<49x4x8xbf16, #tpu.memory_space<vmem>>, vector<1x4x8xbf16>
    %278 = vector.shape_cast %277 : vector<1x4x8xbf16> to vector<4x8xbf16>
    %cst_137 = arith.constant dense<0.000000e+00> : vector<4x256xf32>
    %279 = tpu.matmul %278, %37, %cst_137 {dimension_numbers = #tpu.dot_dimension_numbers<[1], [0], [0], [1], [0, 0, 1, 1], [], []>} : vector<4x8xbf16>, vector<8x256xbf16>, vector<4x256xf32> -> vector<4x256xf32>
    %280 = arith.addf %276, %279 : vector<4x256xf32>
    %281 = vector.extract_strided_slice %37 {offsets = [0, 1], sizes = [8, 255], strides = [1, 1]} : vector<8x256xbf16> to vector<8x255xbf16>
    %282 = vector.extract_strided_slice %37 {offsets = [0, 0], sizes = [8, 1], strides = [1, 1]} : vector<8x256xbf16> to vector<8x1xbf16>
    %283 = tpu.concatenate %281, %282 in 1 : vector<8x255xbf16>, vector<8x1xbf16> -> vector<8x256xbf16>
    %c25 = arith.constant 25 : index
    %c0_138 = arith.constant 0 : index
    %c0_139 = arith.constant 0 : index
    %284 = vector.load %arg5[%c25, %c0_138, %c0_139] : memref<49x4x8xbf16, #tpu.memory_space<vmem>>, vector<1x4x8xbf16>
    %285 = vector.shape_cast %284 : vector<1x4x8xbf16> to vector<4x8xbf16>
    %cst_140 = arith.constant dense<0.000000e+00> : vector<4x256xf32>
    %286 = tpu.matmul %285, %283, %cst_140 {dimension_numbers = #tpu.dot_dimension_numbers<[1], [0], [0], [1], [0, 0, 1, 1], [], []>} : vector<4x8xbf16>, vector<8x256xbf16>, vector<4x256xf32> -> vector<4x256xf32>
    %c25_141 = arith.constant 25 : index
    %c0_142 = arith.constant 0 : index
    %287 = vector.load %arg6[%c25_141, %c0_142] : memref<49x256xf32, #tpu.memory_space<vmem>>, vector<1x256xf32>
    %288 = vector.broadcast %287 : vector<1x256xf32> to vector<4x256xf32>
    %289 = arith.mulf %286, %288 : vector<4x256xf32>
    %290 = arith.addf %280, %289 : vector<4x256xf32>
    %291 = vector.extract_strided_slice %37 {offsets = [0, 2], sizes = [8, 254], strides = [1, 1]} : vector<8x256xbf16> to vector<8x254xbf16>
    %292 = vector.extract_strided_slice %37 {offsets = [0, 0], sizes = [8, 2], strides = [1, 1]} : vector<8x256xbf16> to vector<8x2xbf16>
    %293 = tpu.concatenate %291, %292 in 1 : vector<8x254xbf16>, vector<8x2xbf16> -> vector<8x256xbf16>
    %c26 = arith.constant 26 : index
    %c0_143 = arith.constant 0 : index
    %c0_144 = arith.constant 0 : index
    %294 = vector.load %arg5[%c26, %c0_143, %c0_144] : memref<49x4x8xbf16, #tpu.memory_space<vmem>>, vector<1x4x8xbf16>
    %295 = vector.shape_cast %294 : vector<1x4x8xbf16> to vector<4x8xbf16>
    %cst_145 = arith.constant dense<0.000000e+00> : vector<4x256xf32>
    %296 = tpu.matmul %295, %293, %cst_145 {dimension_numbers = #tpu.dot_dimension_numbers<[1], [0], [0], [1], [0, 0, 1, 1], [], []>} : vector<4x8xbf16>, vector<8x256xbf16>, vector<4x256xf32> -> vector<4x256xf32>
    %c26_146 = arith.constant 26 : index
    %c0_147 = arith.constant 0 : index
    %297 = vector.load %arg6[%c26_146, %c0_147] : memref<49x256xf32, #tpu.memory_space<vmem>>, vector<1x256xf32>
    %298 = vector.broadcast %297 : vector<1x256xf32> to vector<4x256xf32>
    %299 = arith.mulf %296, %298 : vector<4x256xf32>
    %300 = arith.addf %290, %299 : vector<4x256xf32>
    %301 = vector.extract_strided_slice %37 {offsets = [0, 3], sizes = [8, 253], strides = [1, 1]} : vector<8x256xbf16> to vector<8x253xbf16>
    %302 = vector.extract_strided_slice %37 {offsets = [0, 0], sizes = [8, 3], strides = [1, 1]} : vector<8x256xbf16> to vector<8x3xbf16>
    %303 = tpu.concatenate %301, %302 in 1 : vector<8x253xbf16>, vector<8x3xbf16> -> vector<8x256xbf16>
    %c27 = arith.constant 27 : index
    %c0_148 = arith.constant 0 : index
    %c0_149 = arith.constant 0 : index
    %304 = vector.load %arg5[%c27, %c0_148, %c0_149] : memref<49x4x8xbf16, #tpu.memory_space<vmem>>, vector<1x4x8xbf16>
    %305 = vector.shape_cast %304 : vector<1x4x8xbf16> to vector<4x8xbf16>
    %cst_150 = arith.constant dense<0.000000e+00> : vector<4x256xf32>
    %306 = tpu.matmul %305, %303, %cst_150 {dimension_numbers = #tpu.dot_dimension_numbers<[1], [0], [0], [1], [0, 0, 1, 1], [], []>} : vector<4x8xbf16>, vector<8x256xbf16>, vector<4x256xf32> -> vector<4x256xf32>
    %c27_151 = arith.constant 27 : index
    %c0_152 = arith.constant 0 : index
    %307 = vector.load %arg6[%c27_151, %c0_152] : memref<49x256xf32, #tpu.memory_space<vmem>>, vector<1x256xf32>
    %308 = vector.broadcast %307 : vector<1x256xf32> to vector<4x256xf32>
    %309 = arith.mulf %306, %308 : vector<4x256xf32>
    %310 = arith.addf %300, %309 : vector<4x256xf32>
    %311 = vector.extract_strided_slice %37 {offsets = [0, 13], sizes = [8, 243], strides = [1, 1]} : vector<8x256xbf16> to vector<8x243xbf16>
    %312 = vector.extract_strided_slice %37 {offsets = [0, 0], sizes = [8, 13], strides = [1, 1]} : vector<8x256xbf16> to vector<8x13xbf16>
    %313 = tpu.concatenate %311, %312 in 1 : vector<8x243xbf16>, vector<8x13xbf16> -> vector<8x256xbf16>
    %c28 = arith.constant 28 : index
    %c0_153 = arith.constant 0 : index
    %c0_154 = arith.constant 0 : index
    %314 = vector.load %arg5[%c28, %c0_153, %c0_154] : memref<49x4x8xbf16, #tpu.memory_space<vmem>>, vector<1x4x8xbf16>
    %315 = vector.shape_cast %314 : vector<1x4x8xbf16> to vector<4x8xbf16>
    %cst_155 = arith.constant dense<0.000000e+00> : vector<4x256xf32>
    %316 = tpu.matmul %315, %313, %cst_155 {dimension_numbers = #tpu.dot_dimension_numbers<[1], [0], [0], [1], [0, 0, 1, 1], [], []>} : vector<4x8xbf16>, vector<8x256xbf16>, vector<4x256xf32> -> vector<4x256xf32>
    %c28_156 = arith.constant 28 : index
    %c0_157 = arith.constant 0 : index
    %317 = vector.load %arg6[%c28_156, %c0_157] : memref<49x256xf32, #tpu.memory_space<vmem>>, vector<1x256xf32>
    %318 = vector.broadcast %317 : vector<1x256xf32> to vector<4x256xf32>
    %319 = arith.mulf %316, %318 : vector<4x256xf32>
    %320 = arith.addf %310, %319 : vector<4x256xf32>
    %321 = vector.extract_strided_slice %37 {offsets = [0, 14], sizes = [8, 242], strides = [1, 1]} : vector<8x256xbf16> to vector<8x242xbf16>
    %322 = vector.extract_strided_slice %37 {offsets = [0, 0], sizes = [8, 14], strides = [1, 1]} : vector<8x256xbf16> to vector<8x14xbf16>
    %323 = tpu.concatenate %321, %322 in 1 : vector<8x242xbf16>, vector<8x14xbf16> -> vector<8x256xbf16>
    %c29 = arith.constant 29 : index
    %c0_158 = arith.constant 0 : index
    %c0_159 = arith.constant 0 : index
    %324 = vector.load %arg5[%c29, %c0_158, %c0_159] : memref<49x4x8xbf16, #tpu.memory_space<vmem>>, vector<1x4x8xbf16>
    %325 = vector.shape_cast %324 : vector<1x4x8xbf16> to vector<4x8xbf16>
    %cst_160 = arith.constant dense<0.000000e+00> : vector<4x256xf32>
    %326 = tpu.matmul %325, %323, %cst_160 {dimension_numbers = #tpu.dot_dimension_numbers<[1], [0], [0], [1], [0, 0, 1, 1], [], []>} : vector<4x8xbf16>, vector<8x256xbf16>, vector<4x256xf32> -> vector<4x256xf32>
    %c29_161 = arith.constant 29 : index
    %c0_162 = arith.constant 0 : index
    %327 = vector.load %arg6[%c29_161, %c0_162] : memref<49x256xf32, #tpu.memory_space<vmem>>, vector<1x256xf32>
    %328 = vector.broadcast %327 : vector<1x256xf32> to vector<4x256xf32>
    %329 = arith.mulf %326, %328 : vector<4x256xf32>
    %330 = arith.addf %320, %329 : vector<4x256xf32>
    %331 = vector.extract_strided_slice %37 {offsets = [0, 15], sizes = [8, 241], strides = [1, 1]} : vector<8x256xbf16> to vector<8x241xbf16>
    %332 = vector.extract_strided_slice %37 {offsets = [0, 0], sizes = [8, 15], strides = [1, 1]} : vector<8x256xbf16> to vector<8x15xbf16>
    %333 = tpu.concatenate %331, %332 in 1 : vector<8x241xbf16>, vector<8x15xbf16> -> vector<8x256xbf16>
    %c30 = arith.constant 30 : index
    %c0_163 = arith.constant 0 : index
    %c0_164 = arith.constant 0 : index
    %334 = vector.load %arg5[%c30, %c0_163, %c0_164] : memref<49x4x8xbf16, #tpu.memory_space<vmem>>, vector<1x4x8xbf16>
    %335 = vector.shape_cast %334 : vector<1x4x8xbf16> to vector<4x8xbf16>
    %cst_165 = arith.constant dense<0.000000e+00> : vector<4x256xf32>
    %336 = tpu.matmul %335, %333, %cst_165 {dimension_numbers = #tpu.dot_dimension_numbers<[1], [0], [0], [1], [0, 0, 1, 1], [], []>} : vector<4x8xbf16>, vector<8x256xbf16>, vector<4x256xf32> -> vector<4x256xf32>
    %c30_166 = arith.constant 30 : index
    %c0_167 = arith.constant 0 : index
    %337 = vector.load %arg6[%c30_166, %c0_167] : memref<49x256xf32, #tpu.memory_space<vmem>>, vector<1x256xf32>
    %338 = vector.broadcast %337 : vector<1x256xf32> to vector<4x256xf32>
    %339 = arith.mulf %336, %338 : vector<4x256xf32>
    %340 = arith.addf %330, %339 : vector<4x256xf32>
    %341 = vector.extract_strided_slice %37 {offsets = [0, 16], sizes = [8, 240], strides = [1, 1]} : vector<8x256xbf16> to vector<8x240xbf16>
    %342 = vector.extract_strided_slice %37 {offsets = [0, 0], sizes = [8, 16], strides = [1, 1]} : vector<8x256xbf16> to vector<8x16xbf16>
    %343 = tpu.concatenate %341, %342 in 1 : vector<8x240xbf16>, vector<8x16xbf16> -> vector<8x256xbf16>
    %c31 = arith.constant 31 : index
    %c0_168 = arith.constant 0 : index
    %c0_169 = arith.constant 0 : index
    %344 = vector.load %arg5[%c31, %c0_168, %c0_169] : memref<49x4x8xbf16, #tpu.memory_space<vmem>>, vector<1x4x8xbf16>
    %345 = vector.shape_cast %344 : vector<1x4x8xbf16> to vector<4x8xbf16>
    %cst_170 = arith.constant dense<0.000000e+00> : vector<4x256xf32>
    %346 = tpu.matmul %345, %343, %cst_170 {dimension_numbers = #tpu.dot_dimension_numbers<[1], [0], [0], [1], [0, 0, 1, 1], [], []>} : vector<4x8xbf16>, vector<8x256xbf16>, vector<4x256xf32> -> vector<4x256xf32>
    %c31_171 = arith.constant 31 : index
    %c0_172 = arith.constant 0 : index
    %347 = vector.load %arg6[%c31_171, %c0_172] : memref<49x256xf32, #tpu.memory_space<vmem>>, vector<1x256xf32>
    %348 = vector.broadcast %347 : vector<1x256xf32> to vector<4x256xf32>
    %349 = arith.mulf %346, %348 : vector<4x256xf32>
    %350 = arith.addf %340, %349 : vector<4x256xf32>
    %351 = vector.extract_strided_slice %37 {offsets = [0, 17], sizes = [8, 239], strides = [1, 1]} : vector<8x256xbf16> to vector<8x239xbf16>
    %352 = vector.extract_strided_slice %37 {offsets = [0, 0], sizes = [8, 17], strides = [1, 1]} : vector<8x256xbf16> to vector<8x17xbf16>
    %353 = tpu.concatenate %351, %352 in 1 : vector<8x239xbf16>, vector<8x17xbf16> -> vector<8x256xbf16>
    %c32 = arith.constant 32 : index
    %c0_173 = arith.constant 0 : index
    %c0_174 = arith.constant 0 : index
    %354 = vector.load %arg5[%c32, %c0_173, %c0_174] : memref<49x4x8xbf16, #tpu.memory_space<vmem>>, vector<1x4x8xbf16>
    %355 = vector.shape_cast %354 : vector<1x4x8xbf16> to vector<4x8xbf16>
    %cst_175 = arith.constant dense<0.000000e+00> : vector<4x256xf32>
    %356 = tpu.matmul %355, %353, %cst_175 {dimension_numbers = #tpu.dot_dimension_numbers<[1], [0], [0], [1], [0, 0, 1, 1], [], []>} : vector<4x8xbf16>, vector<8x256xbf16>, vector<4x256xf32> -> vector<4x256xf32>
    %c32_176 = arith.constant 32 : index
    %c0_177 = arith.constant 0 : index
    %357 = vector.load %arg6[%c32_176, %c0_177] : memref<49x256xf32, #tpu.memory_space<vmem>>, vector<1x256xf32>
    %358 = vector.broadcast %357 : vector<1x256xf32> to vector<4x256xf32>
    %359 = arith.mulf %356, %358 : vector<4x256xf32>
    %360 = arith.addf %350, %359 : vector<4x256xf32>
    %361 = vector.extract_strided_slice %37 {offsets = [0, 18], sizes = [8, 238], strides = [1, 1]} : vector<8x256xbf16> to vector<8x238xbf16>
    %362 = vector.extract_strided_slice %37 {offsets = [0, 0], sizes = [8, 18], strides = [1, 1]} : vector<8x256xbf16> to vector<8x18xbf16>
    %363 = tpu.concatenate %361, %362 in 1 : vector<8x238xbf16>, vector<8x18xbf16> -> vector<8x256xbf16>
    %c33 = arith.constant 33 : index
    %c0_178 = arith.constant 0 : index
    %c0_179 = arith.constant 0 : index
    %364 = vector.load %arg5[%c33, %c0_178, %c0_179] : memref<49x4x8xbf16, #tpu.memory_space<vmem>>, vector<1x4x8xbf16>
    %365 = vector.shape_cast %364 : vector<1x4x8xbf16> to vector<4x8xbf16>
    %cst_180 = arith.constant dense<0.000000e+00> : vector<4x256xf32>
    %366 = tpu.matmul %365, %363, %cst_180 {dimension_numbers = #tpu.dot_dimension_numbers<[1], [0], [0], [1], [0, 0, 1, 1], [], []>} : vector<4x8xbf16>, vector<8x256xbf16>, vector<4x256xf32> -> vector<4x256xf32>
    %c33_181 = arith.constant 33 : index
    %c0_182 = arith.constant 0 : index
    %367 = vector.load %arg6[%c33_181, %c0_182] : memref<49x256xf32, #tpu.memory_space<vmem>>, vector<1x256xf32>
    %368 = vector.broadcast %367 : vector<1x256xf32> to vector<4x256xf32>
    %369 = arith.mulf %366, %368 : vector<4x256xf32>
    %370 = arith.addf %360, %369 : vector<4x256xf32>
    %371 = vector.extract_strided_slice %37 {offsets = [0, 19], sizes = [8, 237], strides = [1, 1]} : vector<8x256xbf16> to vector<8x237xbf16>
    %372 = vector.extract_strided_slice %37 {offsets = [0, 0], sizes = [8, 19], strides = [1, 1]} : vector<8x256xbf16> to vector<8x19xbf16>
    %373 = tpu.concatenate %371, %372 in 1 : vector<8x237xbf16>, vector<8x19xbf16> -> vector<8x256xbf16>
    %c34 = arith.constant 34 : index
    %c0_183 = arith.constant 0 : index
    %c0_184 = arith.constant 0 : index
    %374 = vector.load %arg5[%c34, %c0_183, %c0_184] : memref<49x4x8xbf16, #tpu.memory_space<vmem>>, vector<1x4x8xbf16>
    %375 = vector.shape_cast %374 : vector<1x4x8xbf16> to vector<4x8xbf16>
    %cst_185 = arith.constant dense<0.000000e+00> : vector<4x256xf32>
    %376 = tpu.matmul %375, %373, %cst_185 {dimension_numbers = #tpu.dot_dimension_numbers<[1], [0], [0], [1], [0, 0, 1, 1], [], []>} : vector<4x8xbf16>, vector<8x256xbf16>, vector<4x256xf32> -> vector<4x256xf32>
    %c34_186 = arith.constant 34 : index
    %c0_187 = arith.constant 0 : index
    %377 = vector.load %arg6[%c34_186, %c0_187] : memref<49x256xf32, #tpu.memory_space<vmem>>, vector<1x256xf32>
    %378 = vector.broadcast %377 : vector<1x256xf32> to vector<4x256xf32>
    %379 = arith.mulf %376, %378 : vector<4x256xf32>
    %380 = arith.addf %370, %379 : vector<4x256xf32>
    %381 = vector.extract_strided_slice %37 {offsets = [0, 29], sizes = [8, 227], strides = [1, 1]} : vector<8x256xbf16> to vector<8x227xbf16>
    %382 = vector.extract_strided_slice %37 {offsets = [0, 0], sizes = [8, 29], strides = [1, 1]} : vector<8x256xbf16> to vector<8x29xbf16>
    %383 = tpu.concatenate %381, %382 in 1 : vector<8x227xbf16>, vector<8x29xbf16> -> vector<8x256xbf16>
    %c35 = arith.constant 35 : index
    %c0_188 = arith.constant 0 : index
    %c0_189 = arith.constant 0 : index
    %384 = vector.load %arg5[%c35, %c0_188, %c0_189] : memref<49x4x8xbf16, #tpu.memory_space<vmem>>, vector<1x4x8xbf16>
    %385 = vector.shape_cast %384 : vector<1x4x8xbf16> to vector<4x8xbf16>
    %cst_190 = arith.constant dense<0.000000e+00> : vector<4x256xf32>
    %386 = tpu.matmul %385, %383, %cst_190 {dimension_numbers = #tpu.dot_dimension_numbers<[1], [0], [0], [1], [0, 0, 1, 1], [], []>} : vector<4x8xbf16>, vector<8x256xbf16>, vector<4x256xf32> -> vector<4x256xf32>
    %c35_191 = arith.constant 35 : index
    %c0_192 = arith.constant 0 : index
    %387 = vector.load %arg6[%c35_191, %c0_192] : memref<49x256xf32, #tpu.memory_space<vmem>>, vector<1x256xf32>
    %388 = vector.broadcast %387 : vector<1x256xf32> to vector<4x256xf32>
    %389 = arith.mulf %386, %388 : vector<4x256xf32>
    %390 = arith.addf %380, %389 : vector<4x256xf32>
    %391 = vector.extract_strided_slice %37 {offsets = [0, 30], sizes = [8, 226], strides = [1, 1]} : vector<8x256xbf16> to vector<8x226xbf16>
    %392 = vector.extract_strided_slice %37 {offsets = [0, 0], sizes = [8, 30], strides = [1, 1]} : vector<8x256xbf16> to vector<8x30xbf16>
    %393 = tpu.concatenate %391, %392 in 1 : vector<8x226xbf16>, vector<8x30xbf16> -> vector<8x256xbf16>
    %c36 = arith.constant 36 : index
    %c0_193 = arith.constant 0 : index
    %c0_194 = arith.constant 0 : index
    %394 = vector.load %arg5[%c36, %c0_193, %c0_194] : memref<49x4x8xbf16, #tpu.memory_space<vmem>>, vector<1x4x8xbf16>
    %395 = vector.shape_cast %394 : vector<1x4x8xbf16> to vector<4x8xbf16>
    %cst_195 = arith.constant dense<0.000000e+00> : vector<4x256xf32>
    %396 = tpu.matmul %395, %393, %cst_195 {dimension_numbers = #tpu.dot_dimension_numbers<[1], [0], [0], [1], [0, 0, 1, 1], [], []>} : vector<4x8xbf16>, vector<8x256xbf16>, vector<4x256xf32> -> vector<4x256xf32>
    %c36_196 = arith.constant 36 : index
    %c0_197 = arith.constant 0 : index
    %397 = vector.load %arg6[%c36_196, %c0_197] : memref<49x256xf32, #tpu.memory_space<vmem>>, vector<1x256xf32>
    %398 = vector.broadcast %397 : vector<1x256xf32> to vector<4x256xf32>
    %399 = arith.mulf %396, %398 : vector<4x256xf32>
    %400 = arith.addf %390, %399 : vector<4x256xf32>
    %401 = vector.extract_strided_slice %37 {offsets = [0, 31], sizes = [8, 225], strides = [1, 1]} : vector<8x256xbf16> to vector<8x225xbf16>
    %402 = vector.extract_strided_slice %37 {offsets = [0, 0], sizes = [8, 31], strides = [1, 1]} : vector<8x256xbf16> to vector<8x31xbf16>
    %403 = tpu.concatenate %401, %402 in 1 : vector<8x225xbf16>, vector<8x31xbf16> -> vector<8x256xbf16>
    %c37 = arith.constant 37 : index
    %c0_198 = arith.constant 0 : index
    %c0_199 = arith.constant 0 : index
    %404 = vector.load %arg5[%c37, %c0_198, %c0_199] : memref<49x4x8xbf16, #tpu.memory_space<vmem>>, vector<1x4x8xbf16>
    %405 = vector.shape_cast %404 : vector<1x4x8xbf16> to vector<4x8xbf16>
    %cst_200 = arith.constant dense<0.000000e+00> : vector<4x256xf32>
    %406 = tpu.matmul %405, %403, %cst_200 {dimension_numbers = #tpu.dot_dimension_numbers<[1], [0], [0], [1], [0, 0, 1, 1], [], []>} : vector<4x8xbf16>, vector<8x256xbf16>, vector<4x256xf32> -> vector<4x256xf32>
    %c37_201 = arith.constant 37 : index
    %c0_202 = arith.constant 0 : index
    %407 = vector.load %arg6[%c37_201, %c0_202] : memref<49x256xf32, #tpu.memory_space<vmem>>, vector<1x256xf32>
    %408 = vector.broadcast %407 : vector<1x256xf32> to vector<4x256xf32>
    %409 = arith.mulf %406, %408 : vector<4x256xf32>
    %410 = arith.addf %400, %409 : vector<4x256xf32>
    %411 = vector.extract_strided_slice %37 {offsets = [0, 32], sizes = [8, 224], strides = [1, 1]} : vector<8x256xbf16> to vector<8x224xbf16>
    %412 = vector.extract_strided_slice %37 {offsets = [0, 0], sizes = [8, 32], strides = [1, 1]} : vector<8x256xbf16> to vector<8x32xbf16>
    %413 = tpu.concatenate %411, %412 in 1 : vector<8x224xbf16>, vector<8x32xbf16> -> vector<8x256xbf16>
    %c38 = arith.constant 38 : index
    %c0_203 = arith.constant 0 : index
    %c0_204 = arith.constant 0 : index
    %414 = vector.load %arg5[%c38, %c0_203, %c0_204] : memref<49x4x8xbf16, #tpu.memory_space<vmem>>, vector<1x4x8xbf16>
    %415 = vector.shape_cast %414 : vector<1x4x8xbf16> to vector<4x8xbf16>
    %cst_205 = arith.constant dense<0.000000e+00> : vector<4x256xf32>
    %416 = tpu.matmul %415, %413, %cst_205 {dimension_numbers = #tpu.dot_dimension_numbers<[1], [0], [0], [1], [0, 0, 1, 1], [], []>} : vector<4x8xbf16>, vector<8x256xbf16>, vector<4x256xf32> -> vector<4x256xf32>
    %c38_206 = arith.constant 38 : index
    %c0_207 = arith.constant 0 : index
    %417 = vector.load %arg6[%c38_206, %c0_207] : memref<49x256xf32, #tpu.memory_space<vmem>>, vector<1x256xf32>
    %418 = vector.broadcast %417 : vector<1x256xf32> to vector<4x256xf32>
    %419 = arith.mulf %416, %418 : vector<4x256xf32>
    %420 = arith.addf %410, %419 : vector<4x256xf32>
    %421 = vector.extract_strided_slice %37 {offsets = [0, 33], sizes = [8, 223], strides = [1, 1]} : vector<8x256xbf16> to vector<8x223xbf16>
    %422 = vector.extract_strided_slice %37 {offsets = [0, 0], sizes = [8, 33], strides = [1, 1]} : vector<8x256xbf16> to vector<8x33xbf16>
    %423 = tpu.concatenate %421, %422 in 1 : vector<8x223xbf16>, vector<8x33xbf16> -> vector<8x256xbf16>
    %c39 = arith.constant 39 : index
    %c0_208 = arith.constant 0 : index
    %c0_209 = arith.constant 0 : index
    %424 = vector.load %arg5[%c39, %c0_208, %c0_209] : memref<49x4x8xbf16, #tpu.memory_space<vmem>>, vector<1x4x8xbf16>
    %425 = vector.shape_cast %424 : vector<1x4x8xbf16> to vector<4x8xbf16>
    %cst_210 = arith.constant dense<0.000000e+00> : vector<4x256xf32>
    %426 = tpu.matmul %425, %423, %cst_210 {dimension_numbers = #tpu.dot_dimension_numbers<[1], [0], [0], [1], [0, 0, 1, 1], [], []>} : vector<4x8xbf16>, vector<8x256xbf16>, vector<4x256xf32> -> vector<4x256xf32>
    %c39_211 = arith.constant 39 : index
    %c0_212 = arith.constant 0 : index
    %427 = vector.load %arg6[%c39_211, %c0_212] : memref<49x256xf32, #tpu.memory_space<vmem>>, vector<1x256xf32>
    %428 = vector.broadcast %427 : vector<1x256xf32> to vector<4x256xf32>
    %429 = arith.mulf %426, %428 : vector<4x256xf32>
    %430 = arith.addf %420, %429 : vector<4x256xf32>
    %431 = vector.extract_strided_slice %37 {offsets = [0, 34], sizes = [8, 222], strides = [1, 1]} : vector<8x256xbf16> to vector<8x222xbf16>
    %432 = vector.extract_strided_slice %37 {offsets = [0, 0], sizes = [8, 34], strides = [1, 1]} : vector<8x256xbf16> to vector<8x34xbf16>
    %433 = tpu.concatenate %431, %432 in 1 : vector<8x222xbf16>, vector<8x34xbf16> -> vector<8x256xbf16>
    %c40 = arith.constant 40 : index
    %c0_213 = arith.constant 0 : index
    %c0_214 = arith.constant 0 : index
    %434 = vector.load %arg5[%c40, %c0_213, %c0_214] : memref<49x4x8xbf16, #tpu.memory_space<vmem>>, vector<1x4x8xbf16>
    %435 = vector.shape_cast %434 : vector<1x4x8xbf16> to vector<4x8xbf16>
    %cst_215 = arith.constant dense<0.000000e+00> : vector<4x256xf32>
    %436 = tpu.matmul %435, %433, %cst_215 {dimension_numbers = #tpu.dot_dimension_numbers<[1], [0], [0], [1], [0, 0, 1, 1], [], []>} : vector<4x8xbf16>, vector<8x256xbf16>, vector<4x256xf32> -> vector<4x256xf32>
    %c40_216 = arith.constant 40 : index
    %c0_217 = arith.constant 0 : index
    %437 = vector.load %arg6[%c40_216, %c0_217] : memref<49x256xf32, #tpu.memory_space<vmem>>, vector<1x256xf32>
    %438 = vector.broadcast %437 : vector<1x256xf32> to vector<4x256xf32>
    %439 = arith.mulf %436, %438 : vector<4x256xf32>
    %440 = arith.addf %430, %439 : vector<4x256xf32>
    %441 = vector.extract_strided_slice %37 {offsets = [0, 35], sizes = [8, 221], strides = [1, 1]} : vector<8x256xbf16> to vector<8x221xbf16>
    %442 = vector.extract_strided_slice %37 {offsets = [0, 0], sizes = [8, 35], strides = [1, 1]} : vector<8x256xbf16> to vector<8x35xbf16>
    %443 = tpu.concatenate %441, %442 in 1 : vector<8x221xbf16>, vector<8x35xbf16> -> vector<8x256xbf16>
    %c41 = arith.constant 41 : index
    %c0_218 = arith.constant 0 : index
    %c0_219 = arith.constant 0 : index
    %444 = vector.load %arg5[%c41, %c0_218, %c0_219] : memref<49x4x8xbf16, #tpu.memory_space<vmem>>, vector<1x4x8xbf16>
    %445 = vector.shape_cast %444 : vector<1x4x8xbf16> to vector<4x8xbf16>
    %cst_220 = arith.constant dense<0.000000e+00> : vector<4x256xf32>
    %446 = tpu.matmul %445, %443, %cst_220 {dimension_numbers = #tpu.dot_dimension_numbers<[1], [0], [0], [1], [0, 0, 1, 1], [], []>} : vector<4x8xbf16>, vector<8x256xbf16>, vector<4x256xf32> -> vector<4x256xf32>
    %c41_221 = arith.constant 41 : index
    %c0_222 = arith.constant 0 : index
    %447 = vector.load %arg6[%c41_221, %c0_222] : memref<49x256xf32, #tpu.memory_space<vmem>>, vector<1x256xf32>
    %448 = vector.broadcast %447 : vector<1x256xf32> to vector<4x256xf32>
    %449 = arith.mulf %446, %448 : vector<4x256xf32>
    %450 = arith.addf %440, %449 : vector<4x256xf32>
    %451 = vector.extract_strided_slice %37 {offsets = [0, 45], sizes = [8, 211], strides = [1, 1]} : vector<8x256xbf16> to vector<8x211xbf16>
    %452 = vector.extract_strided_slice %37 {offsets = [0, 0], sizes = [8, 45], strides = [1, 1]} : vector<8x256xbf16> to vector<8x45xbf16>
    %453 = tpu.concatenate %451, %452 in 1 : vector<8x211xbf16>, vector<8x45xbf16> -> vector<8x256xbf16>
    %c42 = arith.constant 42 : index
    %c0_223 = arith.constant 0 : index
    %c0_224 = arith.constant 0 : index
    %454 = vector.load %arg5[%c42, %c0_223, %c0_224] : memref<49x4x8xbf16, #tpu.memory_space<vmem>>, vector<1x4x8xbf16>
    %455 = vector.shape_cast %454 : vector<1x4x8xbf16> to vector<4x8xbf16>
    %cst_225 = arith.constant dense<0.000000e+00> : vector<4x256xf32>
    %456 = tpu.matmul %455, %453, %cst_225 {dimension_numbers = #tpu.dot_dimension_numbers<[1], [0], [0], [1], [0, 0, 1, 1], [], []>} : vector<4x8xbf16>, vector<8x256xbf16>, vector<4x256xf32> -> vector<4x256xf32>
    %c42_226 = arith.constant 42 : index
    %c0_227 = arith.constant 0 : index
    %457 = vector.load %arg6[%c42_226, %c0_227] : memref<49x256xf32, #tpu.memory_space<vmem>>, vector<1x256xf32>
    %458 = vector.broadcast %457 : vector<1x256xf32> to vector<4x256xf32>
    %459 = arith.mulf %456, %458 : vector<4x256xf32>
    %460 = arith.addf %450, %459 : vector<4x256xf32>
    %461 = vector.extract_strided_slice %37 {offsets = [0, 46], sizes = [8, 210], strides = [1, 1]} : vector<8x256xbf16> to vector<8x210xbf16>
    %462 = vector.extract_strided_slice %37 {offsets = [0, 0], sizes = [8, 46], strides = [1, 1]} : vector<8x256xbf16> to vector<8x46xbf16>
    %463 = tpu.concatenate %461, %462 in 1 : vector<8x210xbf16>, vector<8x46xbf16> -> vector<8x256xbf16>
    %c43 = arith.constant 43 : index
    %c0_228 = arith.constant 0 : index
    %c0_229 = arith.constant 0 : index
    %464 = vector.load %arg5[%c43, %c0_228, %c0_229] : memref<49x4x8xbf16, #tpu.memory_space<vmem>>, vector<1x4x8xbf16>
    %465 = vector.shape_cast %464 : vector<1x4x8xbf16> to vector<4x8xbf16>
    %cst_230 = arith.constant dense<0.000000e+00> : vector<4x256xf32>
    %466 = tpu.matmul %465, %463, %cst_230 {dimension_numbers = #tpu.dot_dimension_numbers<[1], [0], [0], [1], [0, 0, 1, 1], [], []>} : vector<4x8xbf16>, vector<8x256xbf16>, vector<4x256xf32> -> vector<4x256xf32>
    %c43_231 = arith.constant 43 : index
    %c0_232 = arith.constant 0 : index
    %467 = vector.load %arg6[%c43_231, %c0_232] : memref<49x256xf32, #tpu.memory_space<vmem>>, vector<1x256xf32>
    %468 = vector.broadcast %467 : vector<1x256xf32> to vector<4x256xf32>
    %469 = arith.mulf %466, %468 : vector<4x256xf32>
    %470 = arith.addf %460, %469 : vector<4x256xf32>
    %471 = vector.extract_strided_slice %37 {offsets = [0, 47], sizes = [8, 209], strides = [1, 1]} : vector<8x256xbf16> to vector<8x209xbf16>
    %472 = vector.extract_strided_slice %37 {offsets = [0, 0], sizes = [8, 47], strides = [1, 1]} : vector<8x256xbf16> to vector<8x47xbf16>
    %473 = tpu.concatenate %471, %472 in 1 : vector<8x209xbf16>, vector<8x47xbf16> -> vector<8x256xbf16>
    %c44 = arith.constant 44 : index
    %c0_233 = arith.constant 0 : index
    %c0_234 = arith.constant 0 : index
    %474 = vector.load %arg5[%c44, %c0_233, %c0_234] : memref<49x4x8xbf16, #tpu.memory_space<vmem>>, vector<1x4x8xbf16>
    %475 = vector.shape_cast %474 : vector<1x4x8xbf16> to vector<4x8xbf16>
    %cst_235 = arith.constant dense<0.000000e+00> : vector<4x256xf32>
    %476 = tpu.matmul %475, %473, %cst_235 {dimension_numbers = #tpu.dot_dimension_numbers<[1], [0], [0], [1], [0, 0, 1, 1], [], []>} : vector<4x8xbf16>, vector<8x256xbf16>, vector<4x256xf32> -> vector<4x256xf32>
    %c44_236 = arith.constant 44 : index
    %c0_237 = arith.constant 0 : index
    %477 = vector.load %arg6[%c44_236, %c0_237] : memref<49x256xf32, #tpu.memory_space<vmem>>, vector<1x256xf32>
    %478 = vector.broadcast %477 : vector<1x256xf32> to vector<4x256xf32>
    %479 = arith.mulf %476, %478 : vector<4x256xf32>
    %480 = arith.addf %470, %479 : vector<4x256xf32>
    %481 = vector.extract_strided_slice %37 {offsets = [0, 48], sizes = [8, 208], strides = [1, 1]} : vector<8x256xbf16> to vector<8x208xbf16>
    %482 = vector.extract_strided_slice %37 {offsets = [0, 0], sizes = [8, 48], strides = [1, 1]} : vector<8x256xbf16> to vector<8x48xbf16>
    %483 = tpu.concatenate %481, %482 in 1 : vector<8x208xbf16>, vector<8x48xbf16> -> vector<8x256xbf16>
    %c45 = arith.constant 45 : index
    %c0_238 = arith.constant 0 : index
    %c0_239 = arith.constant 0 : index
    %484 = vector.load %arg5[%c45, %c0_238, %c0_239] : memref<49x4x8xbf16, #tpu.memory_space<vmem>>, vector<1x4x8xbf16>
    %485 = vector.shape_cast %484 : vector<1x4x8xbf16> to vector<4x8xbf16>
    %cst_240 = arith.constant dense<0.000000e+00> : vector<4x256xf32>
    %486 = tpu.matmul %485, %483, %cst_240 {dimension_numbers = #tpu.dot_dimension_numbers<[1], [0], [0], [1], [0, 0, 1, 1], [], []>} : vector<4x8xbf16>, vector<8x256xbf16>, vector<4x256xf32> -> vector<4x256xf32>
    %c45_241 = arith.constant 45 : index
    %c0_242 = arith.constant 0 : index
    %487 = vector.load %arg6[%c45_241, %c0_242] : memref<49x256xf32, #tpu.memory_space<vmem>>, vector<1x256xf32>
    %488 = vector.broadcast %487 : vector<1x256xf32> to vector<4x256xf32>
    %489 = arith.mulf %486, %488 : vector<4x256xf32>
    %490 = arith.addf %480, %489 : vector<4x256xf32>
    %491 = vector.extract_strided_slice %37 {offsets = [0, 49], sizes = [8, 207], strides = [1, 1]} : vector<8x256xbf16> to vector<8x207xbf16>
    %492 = vector.extract_strided_slice %37 {offsets = [0, 0], sizes = [8, 49], strides = [1, 1]} : vector<8x256xbf16> to vector<8x49xbf16>
    %493 = tpu.concatenate %491, %492 in 1 : vector<8x207xbf16>, vector<8x49xbf16> -> vector<8x256xbf16>
    %c46 = arith.constant 46 : index
    %c0_243 = arith.constant 0 : index
    %c0_244 = arith.constant 0 : index
    %494 = vector.load %arg5[%c46, %c0_243, %c0_244] : memref<49x4x8xbf16, #tpu.memory_space<vmem>>, vector<1x4x8xbf16>
    %495 = vector.shape_cast %494 : vector<1x4x8xbf16> to vector<4x8xbf16>
    %cst_245 = arith.constant dense<0.000000e+00> : vector<4x256xf32>
    %496 = tpu.matmul %495, %493, %cst_245 {dimension_numbers = #tpu.dot_dimension_numbers<[1], [0], [0], [1], [0, 0, 1, 1], [], []>} : vector<4x8xbf16>, vector<8x256xbf16>, vector<4x256xf32> -> vector<4x256xf32>
    %c46_246 = arith.constant 46 : index
    %c0_247 = arith.constant 0 : index
    %497 = vector.load %arg6[%c46_246, %c0_247] : memref<49x256xf32, #tpu.memory_space<vmem>>, vector<1x256xf32>
    %498 = vector.broadcast %497 : vector<1x256xf32> to vector<4x256xf32>
    %499 = arith.mulf %496, %498 : vector<4x256xf32>
    %500 = arith.addf %490, %499 : vector<4x256xf32>
    %501 = vector.extract_strided_slice %37 {offsets = [0, 50], sizes = [8, 206], strides = [1, 1]} : vector<8x256xbf16> to vector<8x206xbf16>
    %502 = vector.extract_strided_slice %37 {offsets = [0, 0], sizes = [8, 50], strides = [1, 1]} : vector<8x256xbf16> to vector<8x50xbf16>
    %503 = tpu.concatenate %501, %502 in 1 : vector<8x206xbf16>, vector<8x50xbf16> -> vector<8x256xbf16>
    %c47 = arith.constant 47 : index
    %c0_248 = arith.constant 0 : index
    %c0_249 = arith.constant 0 : index
    %504 = vector.load %arg5[%c47, %c0_248, %c0_249] : memref<49x4x8xbf16, #tpu.memory_space<vmem>>, vector<1x4x8xbf16>
    %505 = vector.shape_cast %504 : vector<1x4x8xbf16> to vector<4x8xbf16>
    %cst_250 = arith.constant dense<0.000000e+00> : vector<4x256xf32>
    %506 = tpu.matmul %505, %503, %cst_250 {dimension_numbers = #tpu.dot_dimension_numbers<[1], [0], [0], [1], [0, 0, 1, 1], [], []>} : vector<4x8xbf16>, vector<8x256xbf16>, vector<4x256xf32> -> vector<4x256xf32>
    %c47_251 = arith.constant 47 : index
    %c0_252 = arith.constant 0 : index
    %507 = vector.load %arg6[%c47_251, %c0_252] : memref<49x256xf32, #tpu.memory_space<vmem>>, vector<1x256xf32>
    %508 = vector.broadcast %507 : vector<1x256xf32> to vector<4x256xf32>
    %509 = arith.mulf %506, %508 : vector<4x256xf32>
    %510 = arith.addf %500, %509 : vector<4x256xf32>
    %511 = vector.extract_strided_slice %37 {offsets = [0, 51], sizes = [8, 205], strides = [1, 1]} : vector<8x256xbf16> to vector<8x205xbf16>
    %512 = vector.extract_strided_slice %37 {offsets = [0, 0], sizes = [8, 51], strides = [1, 1]} : vector<8x256xbf16> to vector<8x51xbf16>
    %513 = tpu.concatenate %511, %512 in 1 : vector<8x205xbf16>, vector<8x51xbf16> -> vector<8x256xbf16>
    %c48 = arith.constant 48 : index
    %c0_253 = arith.constant 0 : index
    %c0_254 = arith.constant 0 : index
    %514 = vector.load %arg5[%c48, %c0_253, %c0_254] : memref<49x4x8xbf16, #tpu.memory_space<vmem>>, vector<1x4x8xbf16>
    %515 = vector.shape_cast %514 : vector<1x4x8xbf16> to vector<4x8xbf16>
    %cst_255 = arith.constant dense<0.000000e+00> : vector<4x256xf32>
    %516 = tpu.matmul %515, %513, %cst_255 {dimension_numbers = #tpu.dot_dimension_numbers<[1], [0], [0], [1], [0, 0, 1, 1], [], []>} : vector<4x8xbf16>, vector<8x256xbf16>, vector<4x256xf32> -> vector<4x256xf32>
    %c48_256 = arith.constant 48 : index
    %c0_257 = arith.constant 0 : index
    %517 = vector.load %arg6[%c48_256, %c0_257] : memref<49x256xf32, #tpu.memory_space<vmem>>, vector<1x256xf32>
    %518 = vector.broadcast %517 : vector<1x256xf32> to vector<4x256xf32>
    %519 = arith.mulf %516, %518 : vector<4x256xf32>
    %520 = arith.addf %510, %519 : vector<4x256xf32>
    %521 = arith.addf %520, %11 : vector<4x256xf32>
    %522 = vector.broadcast %3 : vector<4x1xf32> to vector<4x256xf32>
    %523 = arith.addf %521, %522 : vector<4x256xf32>
    %c0_258 = arith.constant 0 : index
    %c0_259 = arith.constant 0 : index
    %524 = vector.load %arg7[%c0_258, %c0_259] : memref<8x4xbf16, #tpu.memory_space<vmem>>, vector<8x4xbf16>
    %cst_260 = arith.constant dense<0.000000e+00> : vector<256xf32>
    %525 = vector.multi_reduction <add>, %523, %cst_260 [0] : vector<4x256xf32> to vector<256xf32>
    %526 = vector.shape_cast %525 : vector<256xf32> to vector<1x256xf32>
    %cst_261 = arith.constant 4.000000e+00 : f32
    %527 = vector.broadcast %cst_261 : f32 to vector<1x256xf32>
    %528 = arith.divf %526, %527 : vector<1x256xf32>
    %529 = vector.broadcast %528 : vector<1x256xf32> to vector<4x256xf32>
    %530 = arith.subf %523, %529 : vector<4x256xf32>
    %531 = arith.mulf %530, %530 : vector<4x256xf32>
    %cst_262 = arith.constant dense<0.000000e+00> : vector<256xf32>
    %532 = vector.multi_reduction <add>, %531, %cst_262 [0] : vector<4x256xf32> to vector<256xf32>
    %533 = vector.shape_cast %532 : vector<256xf32> to vector<1x256xf32>
    %cst_263 = arith.constant 4.000000e+00 : f32
    %534 = vector.broadcast %cst_263 : f32 to vector<1x256xf32>
    %535 = arith.divf %533, %534 : vector<1x256xf32>
    %cst_264 = arith.constant 9.99999997E-7 : f32
    %536 = vector.broadcast %cst_264 : f32 to vector<1x256xf32>
    %537 = arith.addf %535, %536 : vector<1x256xf32>
    %538 = math.rsqrt %537 : vector<1x256xf32>
    %539 = vector.broadcast %538 : vector<1x256xf32> to vector<4x256xf32>
    %540 = arith.mulf %530, %539 : vector<4x256xf32>
    %541 = vector.broadcast %4 : vector<4x1xf32> to vector<4x256xf32>
    %542 = arith.mulf %540, %541 : vector<4x256xf32>
    %543 = vector.broadcast %5 : vector<4x1xf32> to vector<4x256xf32>
    %544 = arith.addf %542, %543 : vector<4x256xf32>
    %545 = arith.truncf %544 : vector<4x256xf32> to vector<4x256xbf16>
    %cst_265 = arith.constant dense<0.000000e+00> : vector<8x256xf32>
    %546 = tpu.matmul %524, %545, %cst_265 {dimension_numbers = #tpu.dot_dimension_numbers<[1], [0], [0], [1], [0, 0, 1, 1], [], []>} : vector<8x4xbf16>, vector<4x256xbf16>, vector<8x256xf32> -> vector<8x256xf32>
    %547 = vector.broadcast %9 : vector<8x1xf32> to vector<8x256xf32>
    %548 = arith.addf %546, %547 : vector<8x256xf32>
    %c0_266 = arith.constant 0 : index
    %c0_267 = arith.constant 0 : index
    %549 = vector.load %arg8[%c0_266, %c0_267] : memref<4x8xbf16, #tpu.memory_space<vmem>>, vector<4x8xbf16>
    %cst_268 = arith.constant 5.000000e-01 : f32
    %550 = vector.broadcast %cst_268 : f32 to vector<8x256xf32>
    %551 = arith.mulf %550, %548 : vector<8x256xf32>
    %cst_269 = arith.constant 4.471500e-02 : f32
    %552 = vector.broadcast %cst_269 : f32 to vector<8x256xf32>
    %553 = arith.mulf %552, %548 : vector<8x256xf32>
    %554 = arith.mulf %553, %548 : vector<8x256xf32>
    %555 = arith.mulf %554, %548 : vector<8x256xf32>
    %556 = arith.addf %548, %555 : vector<8x256xf32>
    %cst_270 = arith.constant 0.797884583 : f32
    %557 = vector.broadcast %cst_270 : f32 to vector<8x256xf32>
    %558 = arith.mulf %557, %556 : vector<8x256xf32>
    %559 = math.tanh %558 : vector<8x256xf32>
    %cst_271 = arith.constant 1.000000e+00 : f32
    %560 = vector.broadcast %cst_271 : f32 to vector<8x256xf32>
    %561 = arith.addf %560, %559 : vector<8x256xf32>
    %562 = arith.mulf %551, %561 : vector<8x256xf32>
    %563 = arith.truncf %562 : vector<8x256xf32> to vector<8x256xbf16>
    %cst_272 = arith.constant dense<0.000000e+00> : vector<4x256xf32>
    %564 = tpu.matmul %549, %563, %cst_272 {dimension_numbers = #tpu.dot_dimension_numbers<[1], [0], [0], [1], [0, 0, 1, 1], [], []>} : vector<4x8xbf16>, vector<8x256xbf16>, vector<4x256xf32> -> vector<4x256xf32>
    %565 = vector.broadcast %6 : vector<4x1xf32> to vector<4x256xf32>
    %566 = arith.addf %564, %565 : vector<4x256xf32>
    %567 = arith.addf %566, %523 : vector<4x256xf32>
    %c0_273 = arith.constant 0 : index
    %c0_274 = arith.constant 0 : index
    %c0_275 = arith.constant 0 : index
    %568 = vector.load %arg11[%c0_273, %c0_274, %c0_275] : memref<1x4x256xf32, #tpu.memory_space<vmem>>, vector<1x4x256xf32>
    %569 = vector.shape_cast %568 : vector<1x4x256xf32> to vector<4x256xf32>
    %570 = vector.shape_cast %567 : vector<4x256xf32> to vector<1x4x256xf32>
    tpu.vector_store %arg11[%c0_273, %c0_274, %c0_275], %570 {strides = array<i32>} : memref<1x4x256xf32, #tpu.memory_space<vmem>>, vector<1x4x256xf32>,
    return
  }
  func.func @transform_0(%arg0: i32, %arg1: i32) -> (i32, i32, i32, i32) {
    %c0_i32 = arith.constant 0 : i32
    %c0_i32_0 = arith.constant 0 : i32
    %c0_i32_1 = arith.constant 0 : i32
    return %arg0, %arg1, %c0_i32, %c0_i32_0 : i32, i32, i32, i32
  }
  func.func @transform_1(%arg0: i32, %arg1: i32) -> (i32, i32, i32) {
    %c0_i32 = arith.constant 0 : i32
    %c0_i32_0 = arith.constant 0 : i32
    %c0_i32_1 = arith.constant 0 : i32
    return %arg1, %c0_i32, %c0_i32_0 : i32, i32, i32
  }
  func.func @transform_2(%arg0: i32, %arg1: i32) -> (i32, i32) {
    %c0_i32 = arith.constant 0 : i32
    %c0_i32_0 = arith.constant 0 : i32
    %c0_i32_1 = arith.constant 0 : i32
    return %c0_i32, %c0_i32_0 : i32, i32
  }
  func.func @transform_3(%arg0: i32, %arg1: i32) -> (i32, i32, i32) {
    %c0_i32 = arith.constant 0 : i32
    %c0_i32_0 = arith.constant 0 : i32
    %c0_i32_1 = arith.constant 0 : i32
    %c0_i32_2 = arith.constant 0 : i32
    return %c0_i32, %c0_i32_0, %c0_i32_1 : i32, i32, i32
  }
  func.func @transform_4(%arg0: i32, %arg1: i32) -> (i32, i32) {
    %c0_i32 = arith.constant 0 : i32
    %c0_i32_0 = arith.constant 0 : i32
    %c0_i32_1 = arith.constant 0 : i32
    return %c0_i32, %c0_i32_0 : i32, i32
  }
  func.func @transform_5(%arg0: i32, %arg1: i32) -> (i32, i32) {
    %c0_i32 = arith.constant 0 : i32
    %c0_i32_0 = arith.constant 0 : i32
    %c0_i32_1 = arith.constant 0 : i32
    return %c0_i32, %c0_i32_0 : i32, i32
  }
  func.func @transform_6(%arg0: i32, %arg1: i32) -> (i32, i32) {
    %c0_i32 = arith.constant 0 : i32
    %c0_i32_0 = arith.constant 0 : i32
    %c0_i32_1 = arith.constant 0 : i32
    return %c0_i32, %c0_i32_0 : i32, i32
  }
  func.func @transform_7(%arg0: i32, %arg1: i32) -> (i32, i32) {
    %c0_i32 = arith.constant 0 : i32
    %c0_i32_0 = arith.constant 0 : i32
    %c0_i32_1 = arith.constant 0 : i32
    return %c0_i32, %c0_i32_0 : i32, i32
  }
  func.func @transform_8(%arg0: i32, %arg1: i32) -> (i32, i32) {
    %c0_i32 = arith.constant 0 : i32
    %c0_i32_0 = arith.constant 0 : i32
    %c0_i32_1 = arith.constant 0 : i32
    return %c0_i32, %c0_i32_0 : i32, i32
  }
  func.func @transform_9(%arg0: i32, %arg1: i32) -> (i32, i32, i32) {
    %c0_i32 = arith.constant 0 : i32
    %c0_i32_0 = arith.constant 0 : i32
    return %arg0, %c0_i32, %arg1 : i32, i32, i32
  }
}

</mosaic_0001>

<llo_original>
// kernel: tpu_custom_call.1
$region0: #{tpu_custom_call.1}
  #allocation0 [shape = 'u32[]', space=smem, size = 0x4, offset = 0x4, fixed_abs, tag = 'smem constant byte address 0x4 - core index']
  #allocation1 [shape = 'u32[144,128]{1,0:T(1,128)}', space=vmem, size = 0x12000, scoped, tag = 'internal scratch']
  %s0 = inlined_call_operand.vmem [shape: f32[2,1,4,256], index: 0, kind: input, shape index: {}]
  %s1 = inlined_call_operand.vmem [shape: f32[1,1,256], index: 1, kind: input, shape index: {}]
  %s2 = inlined_call_operand.vmem [shape: bf16[8,4], index: 2, kind: input, shape index: {}]
  %s3 = inlined_call_operand.vmem [shape: bf16[49,4,8], index: 3, kind: input, shape index: {}]
  %s4 = inlined_call_operand.vmem [shape: f32[49,256], index: 4, kind: input, shape index: {}]
  %s5 = inlined_call_operand.vmem [shape: bf16[8,4], index: 5, kind: input, shape index: {}]
  %s6 = inlined_call_operand.vmem [shape: bf16[4,8], index: 6, kind: input, shape index: {}]
  %s7 = inlined_call_operand.vmem [shape: f32[4,6], index: 7, kind: input, shape index: {}]
  %s8 = inlined_call_operand.vmem [shape: f32[8,2], index: 8, kind: input, shape index: {}]
  %s9 = inlined_call_operand.hbm [shape: f32[2,4,256], index: 9, kind: output, shape index: {}]
  %s10 = sld [smem:[#allocation0]]
  $region69: #{tpu_custom_call.1} parent=0
    _
  %s12 = ssub.s32 1, %s10
  %s13 = scalar_select 0, %s12, %s10
  $region1: #{tpu_custom_call.1} parent=0
    #allocation2 [shape = 'u8[8192]{0}', space=vmem, size = 0x2000, scoped, tag = 'output window, operand 0']
    #allocation3 [shape = 's32[2]{0}', space=sflag, size = 0x8, scoped, tag = 'scoped memory for tpu_custom_call.1']
    %14 = vsyncpa [#allocation3], 0
    %s15 = scalar_lea.sflag [#allocation3], 1
    %16 = vsyncpa %s15, 0
    loop: start=0, step=1, limit=4
    $region2: #{tpu_custom_call.1} parent=1 // loop_pre_header
      _
    $region3: #{tpu_custom_call.1} parent=1 // loop_header
      %s18 = sphi 0, %s22
      %p19 = scmp.ge.s32.totalorder %s18, 4
      %s25 = sphi 0, %s37
      %s26 = sphi 0, %s33
      %s27 = sphi 0, %s25
      %s28 = sphi 0, %s26
      %s29 = sphi 0, %s27
      %s30 = sphi 0, %s28
      %s42 = sphi 0, %s44
      %s45 = sphi 0, %s42
      %s46 = sphi 0, %s45
      %s62 = sphi 0, %s46
      %s68 = sphi 0, %s70
      %s71 = sphi 0, %s68
      %s72 = sphi 0, %s71
      %s88 = sphi 0, %s72
      %s92 = sphi 0, %s92
      %s94 = sphi 0, %s92
      %s95 = sphi 0, %s94
      %s109 = sphi 0, %s95
      %s113 = sphi 0, %s113
      %s115 = sphi 0, %s113
      %s116 = sphi 0, %s115
      %s130 = sphi 0, %s116
      %s134 = sphi 0, %s134
      %s136 = sphi 0, %s134
      %s137 = sphi 0, %s136
      %s151 = sphi 0, %s137
      %s155 = sphi 0, %s155
      %s157 = sphi 0, %s155
      %s158 = sphi 0, %s157
      %s172 = sphi 0, %s158
      %s176 = sphi 0, %s176
      %s178 = sphi 0, %s176
      %s179 = sphi 0, %s178
      %s193 = sphi 0, %s179
      %s197 = sphi 0, %s197
      %s199 = sphi 0, %s197
      %s200 = sphi 0, %s199
      %s214 = sphi 0, %s200
      %s218 = sphi 0, %s218
      %s220 = sphi 0, %s218
      %s221 = sphi 0, %s220
      %s235 = sphi 0, %s221
      %s243 = sphi 0, %s245
      %s246 = sphi 0, %s243
      %s247 = sphi 0, %s246
      %s263 = sphi 0, %s247
    $region4: #{tpu_custom_call.1} parent=1 // loop_header_branch
      %21 = sbr.rel (%p19) target = $region8
    $region5: #{tpu_custom_call.1} parent=1 // loop_body
      %s23 = ssub.s32 %s18, 1
      %s24 = ssub.s32 %s18, 2
      %s31 = sadd.s32 1, %s26
      %p32 = scmp.ge.s32.totalorder %s31, 1
      %s33 = scalar_select %p32, 0, %s31
      %s34 = sadd.s32 1, %s25
      %s35 = scalar_select %p32, %s34, %s25
      %p36 = scmp.ge.s32.totalorder %s35, 2
      %s37 = scalar_select %p36, 0, %s35
      %s38 = ssub.s32 %s25, %s37
      %s39 = ssub.s32 %s26, %s33
      %s40 = sor.u32 %s38, %s39
      %p41 = scmp.eq.s32.totalorder %s40, 0
      %s43 = sadd.s32 %s42, 1
      %s44 = scalar_select %p41, %s42, %s43
      %p47 = pneg %p41
      %p48 = scmp.eq.s32.totalorder %s18, 1
      %p49 = por %p47, %p48
      %p50 = scmp.ne.s32.totalorder %s42, %s45
      %p51 = scmp.eq.s32.totalorder %s18, 0
      %p52 = por %p50, %p51
      %p53 = scmp.ne.s32.totalorder %s42, %s45
      %p54 = scmp.eq.s32.totalorder %s23, 1
      %p55 = por %p53, %p54
      %p56 = scmp.ne.s32.totalorder %s45, %s46
      %p57 = scmp.eq.s32.totalorder %s23, 0
      %p58 = por %p56, %p57
      %p59 = scmp.ne.s32.totalorder %s45, %s46
      %p60 = scmp.eq.s32.totalorder %s24, 1
      %p61 = por %p59, %p60
      %p63 = scmp.ne.s32.totalorder %s46, %s62
      %p64 = scmp.eq.s32.totalorder %s24, 0
      %p65 = por %p63, %p64
      %s66 = ssub.s32 %s26, %s33
      %p67 = scmp.eq.s32.totalorder %s66, 0
      %s69 = sadd.s32 %s68, 1
      %s70 = scalar_select %p67, %s68, %s69
      %p73 = pneg %p67
      %p74 = scmp.eq.s32.totalorder %s18, 1
      %p75 = por %p73, %p74
      %p76 = scmp.ne.s32.totalorder %s68, %s71
      %p77 = scmp.eq.s32.totalorder %s18, 0
      %p78 = por %p76, %p77
      %p79 = scmp.ne.s32.totalorder %s68, %s71
      %p80 = scmp.eq.s32.totalorder %s23, 1
      %p81 = por %p79, %p80
      %p82 = scmp.ne.s32.totalorder %s71, %s72
      %p83 = scmp.eq.s32.totalorder %s23, 0
      %p84 = por %p82, %p83
      %p85 = scmp.ne.s32.totalorder %s71, %s72
      %p86 = scmp.eq.s32.totalorder %s24, 1
      %p87 = por %p85, %p86
      %p89 = scmp.ne.s32.totalorder %s72, %s88
      %p90 = scmp.eq.s32.totalorder %s24, 0
      %p91 = por %p89, %p90
      %s93 = sadd.s32 %s92, 1
      %p96 = scmp.eq.s32.totalorder %s18, 1
      %p97 = scmp.ne.s32.totalorder %s92, %s94
      %p98 = scmp.eq.s32.totalorder %s18, 0
      %p99 = por %p97, %p98
      %p100 = scmp.ne.s32.totalorder %s92, %s94
      %p101 = scmp.eq.s32.totalorder %s23, 1
      %p102 = por %p100, %p101
      %p103 = scmp.ne.s32.totalorder %s94, %s95
      %p104 = scmp.eq.s32.totalorder %s23, 0
      %p105 = por %p103, %p104
      %p106 = scmp.ne.s32.totalorder %s94, %s95
      %p107 = scmp.eq.s32.totalorder %s24, 1
      %p108 = por %p106, %p107
      %p110 = scmp.ne.s32.totalorder %s95, %s109
      %p111 = scmp.eq.s32.totalorder %s24, 0
      %p112 = por %p110, %p111
      %s114 = sadd.s32 %s113, 1
      %p117 = scmp.eq.s32.totalorder %s18, 1
      %p118 = scmp.ne.s32.totalorder %s113, %s115
      %p119 = scmp.eq.s32.totalorder %s18, 0
      %p120 = por %p118, %p119
      %p121 = scmp.ne.s32.totalorder %s113, %s115
      %p122 = scmp.eq.s32.totalorder %s23, 1
      %p123 = por %p121, %p122
      %p124 = scmp.ne.s32.totalorder %s115, %s116
      %p125 = scmp.eq.s32.totalorder %s23, 0
      %p126 = por %p124, %p125
      %p127 = scmp.ne.s32.totalorder %s115, %s116
      %p128 = scmp.eq.s32.totalorder %s24, 1
      %p129 = por %p127, %p128
      %p131 = scmp.ne.s32.totalorder %s116, %s130
      %p132 = scmp.eq.s32.totalorder %s24, 0
      %p133 = por %p131, %p132
      %s135 = sadd.s32 %s134, 1
      %p138 = scmp.eq.s32.totalorder %s18, 1
      %p139 = scmp.ne.s32.totalorder %s134, %s136
      %p140 = scmp.eq.s32.totalorder %s18, 0
      %p141 = por %p139, %p140
      %p142 = scmp.ne.s32.totalorder %s134, %s136
      %p143 = scmp.eq.s32.totalorder %s23, 1
      %p144 = por %p142, %p143
      %p145 = scmp.ne.s32.totalorder %s136, %s137
      %p146 = scmp.eq.s32.totalorder %s23, 0
      %p147 = por %p145, %p146
      %p148 = scmp.ne.s32.totalorder %s136, %s137
      %p149 = scmp.eq.s32.totalorder %s24, 1
      %p150 = por %p148, %p149
      %p152 = scmp.ne.s32.totalorder %s137, %s151
      %p153 = scmp.eq.s32.totalorder %s24, 0
      %p154 = por %p152, %p153
      %s156 = sadd.s32 %s155, 1
      %p159 = scmp.eq.s32.totalorder %s18, 1
      %p160 = scmp.ne.s32.totalorder %s155, %s157
      %p161 = scmp.eq.s32.totalorder %s18, 0
      %p162 = por %p160, %p161
      %p163 = scmp.ne.s32.totalorder %s155, %s157
      %p164 = scmp.eq.s32.totalorder %s23, 1
      %p165 = por %p163, %p164
      %p166 = scmp.ne.s32.totalorder %s157, %s158
      %p167 = scmp.eq.s32.totalorder %s23, 0
      %p168 = por %p166, %p167
      %p169 = scmp.ne.s32.totalorder %s157, %s158
      %p170 = scmp.eq.s32.totalorder %s24, 1
      %p171 = por %p169, %p170
      %p173 = scmp.ne.s32.totalorder %s158, %s172
      %p174 = scmp.eq.s32.totalorder %s24, 0
      %p175 = por %p173, %p174
      %s177 = sadd.s32 %s176, 1
      %p180 = scmp.eq.s32.totalorder %s18, 1
      %p181 = scmp.ne.s32.totalorder %s176, %s178
      %p182 = scmp.eq.s32.totalorder %s18, 0
      %p183 = por %p181, %p182
      %p184 = scmp.ne.s32.totalorder %s176, %s178
      %p185 = scmp.eq.s32.totalorder %s23, 1
      %p186 = por %p184, %p185
      %p187 = scmp.ne.s32.totalorder %s178, %s179
      %p188 = scmp.eq.s32.totalorder %s23, 0
      %p189 = por %p187, %p188
      %p190 = scmp.ne.s32.totalorder %s178, %s179
      %p191 = scmp.eq.s32.totalorder %s24, 1
      %p192 = por %p190, %p191
      %p194 = scmp.ne.s32.totalorder %s179, %s193
      %p195 = scmp.eq.s32.totalorder %s24, 0
      %p196 = por %p194, %p195
      %s198 = sadd.s32 %s197, 1
      %p201 = scmp.eq.s32.totalorder %s18, 1
      %p202 = scmp.ne.s32.totalorder %s197, %s199
      %p203 = scmp.eq.s32.totalorder %s18, 0
      %p204 = por %p202, %p203
      %p205 = scmp.ne.s32.totalorder %s197, %s199
      %p206 = scmp.eq.s32.totalorder %s23, 1
      %p207 = por %p205, %p206
      %p208 = scmp.ne.s32.totalorder %s199, %s200
      %p209 = scmp.eq.s32.totalorder %s23, 0
      %p210 = por %p208, %p209
      %p211 = scmp.ne.s32.totalorder %s199, %s200
      %p212 = scmp.eq.s32.totalorder %s24, 1
      %p213 = por %p211, %p212
      %p215 = scmp.ne.s32.totalorder %s200, %s214
      %p216 = scmp.eq.s32.totalorder %s24, 0
      %p217 = por %p215, %p216
      %s219 = sadd.s32 %s218, 1
      %p222 = scmp.eq.s32.totalorder %s18, 1
      %p223 = scmp.ne.s32.totalorder %s218, %s220
      %p224 = scmp.eq.s32.totalorder %s18, 0
      %p225 = por %p223, %p224
      %p226 = scmp.ne.s32.totalorder %s218, %s220
      %p227 = scmp.eq.s32.totalorder %s23, 1
      %p228 = por %p226, %p227
      %p229 = scmp.ne.s32.totalorder %s220, %s221
      %p230 = scmp.eq.s32.totalorder %s23, 0
      %p231 = por %p229, %p230
      %p232 = scmp.ne.s32.totalorder %s220, %s221
      %p233 = scmp.eq.s32.totalorder %s24, 1
      %p234 = por %p232, %p233
      %p236 = scmp.ne.s32.totalorder %s221, %s235
      %p237 = scmp.eq.s32.totalorder %s24, 0
      %p238 = por %p236, %p237
      %s239 = ssub.s32 %s25, %s37
      %s240 = ssub.s32 %s26, %s33
      %s241 = sor.u32 %s239, %s240
      %p242 = scmp.eq.s32.totalorder %s241, 0
      %s244 = sadd.s32 %s243, 1
      %s245 = scalar_select %p242, %s243, %s244
      %p248 = pneg %p242
      %p249 = scmp.eq.s32.totalorder %s18, 1
      %p250 = por %p248, %p249
      %p251 = scmp.ne.s32.totalorder %s243, %s246
      %p252 = scmp.eq.s32.totalorder %s18, 0
      %p253 = por %p251, %p252
      %p254 = scmp.ne.s32.totalorder %s243, %s246
      %p255 = scmp.eq.s32.totalorder %s23, 1
      %p256 = por %p254, %p255
      %p257 = scmp.ne.s32.totalorder %s246, %s247
      %p258 = scmp.eq.s32.totalorder %s23, 0
      %p259 = por %p257, %p258
      %p260 = scmp.ne.s32.totalorder %s246, %s247
      %p261 = scmp.eq.s32.totalorder %s24, 1
      %p262 = por %p260, %p261
      %p264 = scmp.ne.s32.totalorder %s247, %s263
      %p265 = scmp.eq.s32.totalorder %s24, 0
      %p266 = por %p264, %p265
      %p267 = scmp.le.s32.totalorder 1, %s18
      %p268 = scmp.lt.s32.totalorder %s18, 3
      %p269 = pnand %p267, %p268
      %p270 = pneg %p269
      // Predicated region
      $region9: #{tpu_custom_call.1} parent=5 // pred_check
        _
      $region10: #{tpu_custom_call.1} parent=5 // pred_check_branch
        %272 = sbr.rel (%p269) target = $region12
      $region11: #{tpu_custom_call.1} parent=5 // pred_region
        %s273 = ssub.s32 %s18, 1
        // Predicated region
        $region13: #{tpu_custom_call.1} parent=11 // pred_check
          %p274 = pneg %p84
        $region14: #{tpu_custom_call.1} parent=11 // pred_check_branch
          %276 = sbr.rel (%p274) target = $region16
        $region15: #{tpu_custom_call.1} parent=11 // pred_region
          %p277 = scmp.lt.s32.totalorder %s28, 0
          %s278 = scalar_select %p277, %s28, 0
          %s279 = smul.addr %s278, 2
          %s280 = scalar_lea.vmem %s1, %s279
        $region16: #{tpu_custom_call.1} parent=11 // pred_fallthru
          _
        // Predicated region
        $region17: #{tpu_custom_call.1} parent=11 // pred_check
          %p281 = pneg %p105
        $region18: #{tpu_custom_call.1} parent=11 // pred_check_branch
          %283 = sbr.rel (%p281) target = $region20
        $region19: #{tpu_custom_call.1} parent=11 // pred_region
          _
        $region20: #{tpu_custom_call.1} parent=11 // pred_fallthru
          _
        // Predicated region
        $region21: #{tpu_custom_call.1} parent=11 // pred_check
          %p284 = pneg %p126
        $region22: #{tpu_custom_call.1} parent=11 // pred_check_branch
          %286 = sbr.rel (%p284) target = $region24
        $region23: #{tpu_custom_call.1} parent=11 // pred_region
          _
        $region24: #{tpu_custom_call.1} parent=11 // pred_fallthru
          _
        // Predicated region
        $region25: #{tpu_custom_call.1} parent=11 // pred_check
          %p287 = pneg %p147
        $region26: #{tpu_custom_call.1} parent=11 // pred_check_branch
          %289 = sbr.rel (%p287) target = $region28
        $region27: #{tpu_custom_call.1} parent=11 // pred_region
          _
        $region28: #{tpu_custom_call.1} parent=11 // pred_fallthru
          _
        // Predicated region
        $region29: #{tpu_custom_call.1} parent=11 // pred_check
          %p290 = pneg %p168
        $region30: #{tpu_custom_call.1} parent=11 // pred_check_branch
          %292 = sbr.rel (%p290) target = $region32
        $region31: #{tpu_custom_call.1} parent=11 // pred_region
          _
        $region32: #{tpu_custom_call.1} parent=11 // pred_fallthru
          _
        // Predicated region
        $region33: #{tpu_custom_call.1} parent=11 // pred_check
          %p293 = pneg %p189
        $region34: #{tpu_custom_call.1} parent=11 // pred_check_branch
          %295 = sbr.rel (%p293) target = $region36
        $region35: #{tpu_custom_call.1} parent=11 // pred_region
          _
        $region36: #{tpu_custom_call.1} parent=11 // pred_fallthru
          _
        // Predicated region
        $region37: #{tpu_custom_call.1} parent=11 // pred_check
          %p296 = pneg %p210
        $region38: #{tpu_custom_call.1} parent=11 // pred_check_branch
          %298 = sbr.rel (%p296) target = $region40
        $region39: #{tpu_custom_call.1} parent=11 // pred_region
          _
        $region40: #{tpu_custom_call.1} parent=11 // pred_fallthru
          _
        // Predicated region
        $region41: #{tpu_custom_call.1} parent=11 // pred_check
          %p299 = pneg %p231
        $region42: #{tpu_custom_call.1} parent=11 // pred_check_branch
          %301 = sbr.rel (%p299) target = $region44
        $region43: #{tpu_custom_call.1} parent=11 // pred_region
          _
        $region44: #{tpu_custom_call.1} parent=11 // pred_fallthru
          _
      $region12: #{tpu_custom_call.1} parent=5 // pred_fallthru
        _
      %p302 = scmp.lt.s32.totalorder %s18, 2
      // Predicated region
      $region45: #{tpu_custom_call.1} parent=5 // pred_check
        %p303 = pneg %p302
      $region46: #{tpu_custom_call.1} parent=5 // pred_check_branch
        %305 = sbr.rel (%p303) target = $region48
      $region47: #{tpu_custom_call.1} parent=5 // pred_region
        // Predicated region
        $region49: #{tpu_custom_call.1} parent=47 // pred_check
          %p306 = pneg %p52
        $region50: #{tpu_custom_call.1} parent=47 // pred_check_branch
          %308 = sbr.rel (%p306) target = $region52
        $region51: #{tpu_custom_call.1} parent=47 // pred_region
          %p309 = scmp.lt.s32.totalorder %s25, 1
          %s310 = scalar_select %p309, %s25, 1
          %p311 = scmp.lt.s32.totalorder %s26, 0
          %s312 = scalar_select %p311, %s26, 0
          %s313 = smul.addr %s312, 2
          %s314 = smul.addr %s310, 2
          %s315 = sadd.s32 %s313, %s314
          %s316 = smul.addr %s315, 4
          %s317 = scalar_lea.vmem %s0, %s316
        $region52: #{tpu_custom_call.1} parent=47 // pred_fallthru
          _
      $region48: #{tpu_custom_call.1} parent=5 // pred_fallthru
        _
      %p318 = scmp.le.s32.totalorder 1, %s18
      %p319 = scmp.lt.s32.totalorder %s18, 3
      %p320 = pnand %p318, %p319
      %p321 = pneg %p320
      // Predicated region
      $region53: #{tpu_custom_call.1} parent=5 // pred_check
        _
      $region54: #{tpu_custom_call.1} parent=5 // pred_check_branch
        %323 = sbr.rel (%p320) target = $region56
      $region55: #{tpu_custom_call.1} parent=5 // pred_region
        %s324 = ssub.s32 %s18, 1
        %p325 = scmp.lt.s32.totalorder %s27, 1
        %s326 = scalar_select %p325, %s27, 1
        %p327 = scmp.lt.s32.totalorder %s28, 0
        %s328 = scalar_select %p327, %s28, 0
        %s329 = smul.addr %s328, 2
        %s330 = smul.addr %s326, 2
        %s331 = sadd.s32 %s329, %s330
        %s332 = smul.addr %s331, 4
        %s333 = scalar_lea.vmem %s0, %s332
        %p334 = pneg %p58
        %p335 = pneg %p55
        %p336 = scmp.lt.s32.totalorder %s28, 0
        %s337 = scalar_select %p336, %s28, 0
        %s338 = smul.addr %s337, 2
        %s339 = scalar_lea.vmem %s1, %s338
        %p340 = pneg %p84
        %p341 = pneg %p81
        %p342 = pneg %p105
        %p343 = pneg %p102
        %p344 = pneg %p126
        %p345 = pneg %p123
        %p346 = pneg %p147
        %p347 = pneg %p144
        %p348 = pneg %p168
        %p349 = pneg %p165
        %p350 = pneg %p189
        %p351 = pneg %p186
        %p352 = pneg %p210
        %p353 = pneg %p207
        %p354 = pneg %p231
        %p355 = pneg %p228
        %p356 = pneg %p259
        %p357 = pneg %p256
        %s358 = sand.u32 %s246, 1
        %s359 = scalar_lea.sflag [#allocation3], %s358
        %s360 = sand.u32 %s246, 1
        %s361 = smul.addr %s360, 8
        %s362 = scalar_lea.vmem [#allocation2], %s361
        %p363 = scmp.lt.s32.totalorder %s27, 1
        %s364 = scalar_select %p363, %s27, 1
        %p365 = scmp.lt.s32.totalorder %s28, 0
        %s366 = scalar_select %p365, %s28, 0
        %s367 = smul.addr %s366, 2
        %s368 = smul.addr %s364, 2
        %s369 = sadd.s32 %s367, %s368
        %s370 = smul.addr %s369, 4
        %s371 = scalar_lea.vmem %s0, %s370
        %p372 = scmp.lt.s32.totalorder %s28, 0
        %s373 = scalar_select %p372, %s28, 0
        %s374 = smul.addr %s373, 2
        %s375 = scalar_lea.vmem %s1, %s374
        %s376 = smul.u32 2, %s28
        %v378 = vld [vmem:[%s7] sm:$0xf]
        %v379 = vld [vmem:[%s8] sm:$0xff]
        %v380 = vld [vmem:[%s371] sm:$0xff]
        %v381 = vld [vmem:[%s2] sm:$0xf]
        %v383 = vcombine.high %v380, %v380
        %vm385 = vcmask 1043456
        %v386 = vsel %vm385, %v380, 0.0
        %v387 = vrot.slane %v386, 4
        %v388 = vadd.f32 %v386, %v387
        %v389 = vrot.slane %v388, 2
        %v390 = vadd.f32 %v388, %v389
        %v391 = vrot.slane %v390, 1
        %v392 = vadd.f32 %v390, %v391
        %v393 = vsel %vm385, %v383, 0.0
        %v394 = vrot.slane %v393, 4
        %v395 = vadd.f32 %v393, %v394
        %v396 = vrot.slane %v395, 2
        %v397 = vadd.f32 %v395, %v396
        %v398 = vrot.slane %v397, 1
        %v399 = vadd.f32 %v397, %v398
        %v400 = vrcp.pop 4.0
        %v401 = vmul.f32 %v392, %v400
        %v402 = vmul.f32 %v399, %v400
        %v405 = vcombine.low %v401, %v402
        %v407 = vsub.f32 %v380, %v405
        %v408 = vmul.f32 %v407, %v407
        %v410 = vcombine.high %v408, %v408
        %v412 = vsel %vm385, %v408, 0.0
        %v413 = vrot.slane %v412, 4
        %v414 = vadd.f32 %v412, %v413
        %v415 = vrot.slane %v414, 2
        %v416 = vadd.f32 %v414, %v415
        %v417 = vrot.slane %v416, 1
        %v418 = vadd.f32 %v416, %v417
        %v419 = vsel %vm385, %v410, 0.0
        %v420 = vrot.slane %v419, 4
        %v421 = vadd.f32 %v419, %v420
        %v422 = vrot.slane %v421, 2
        %v423 = vadd.f32 %v421, %v422
        %v424 = vrot.slane %v423, 1
        %v425 = vadd.f32 %v423, %v424
        %v426 = vmul.f32 %v418, %v400
        %v427 = vmul.f32 %v425, %v400
        %v428 = vadd.f32 %v426, 1e-06
        %v429 = vadd.f32 %v427, 1e-06
        %v430 = vrsqrt.pop %v428
        %v431 = vrsqrt.pop %v429
        %v434 = vcombine.low %v430, %v431
        %v436 = vmul.f32 %v407, %v434
        %438 = vset.pattern.permute.xlu0 0
        %439 = vperm.xlu0 %438, %v378
        %v440 = vpop.permute.xlu0 %439
        %v442 = vunpack.c.l.s4 839922192
        %v443 = vunpack.c.0.s8 %v442
        %v444 = vlaneseq
        %v445 = vshrl.u32 %v444, 7
        %v446 = vsub.s32 %v443, %v445
        %v447 = vrot.slane %v440, %v446
        %v449 = vmul.f32 %v436, %v447
        %450 = vset.pattern.permute.xlu0 1
        %451 = vperm.xlu0 %450, %v378
        %v452 = vpop.permute.xlu0 %451
        %v454 = vunpack.c.l.s4 839922192
        %v455 = vunpack.c.0.s8 %v454
        %v456 = vlaneseq
        %v457 = vshrl.u32 %v456, 7
        %v458 = vsub.s32 %v455, %v457
        %v459 = vrot.slane %v452, %v458
        %v461 = vadd.f32 %v449, %v459
        %v463 = vcombine.high %v461, %v461
        %v465 = vpack.c.bf16 %v461, %v461
        %v466 = vpack.c.bf16 %v463, %v463
        %468 = vset.pattern.permute.xlu0 0
        %469 = vperm.xlu0 %468, %v379
        %v470 = vpop.permute.xlu0 %469
        %vm472 = vcmask 31744
        %v474 = vsel %vm472, %v381, 0
        %vm476 = vcmask 1041408
        %v478 = vsel %vm476, %v465, 0
        %v481 = vsel %vm476, %v466, 0
        %483 = vmatprep.subr.bf16.mxu0 0
        %484 = vmatpush1.bf16.msra.mxu0 0
        %485 = vmatprep.subr.bf16.mxu0 0
        %486 = vmatpush1.bf16.msra.mxu0 0
        %487 = vmatprep.subr.bf16.mxu0 0
        %488 = vmatpush1.bf16.msra.mxu0 0
        %489 = vmatprep.subr.bf16.mxu0 0
        %490 = vmatpush1.bf16.msra.mxu0 0
        %491 = vmatprep.subr.bf16.mxu0 0
        %492 = vmatpush1.bf16.msra.mxu0 0
        %493 = vmatprep.subr.bf16.mxu0 0
        %494 = vmatpush1.bf16.msra.mxu0 0
        %495 = vmatprep.subr.bf16.mxu0 0
        %496 = vmatpush1.bf16.msra.mxu0 0
        %497 = vmatprep.subr.bf16.mxu0 %v481
        %498 = vmatpush1.bf16.msra.mxu0 %v478
        %499 = vmatprep.subr.bf16.mxu0 0
        %500 = vmatpush2.bf16.msra.mxu0 0
        %501 = vmatprep.subr.bf16.mxu0 0
        %502 = vmatpush2.bf16.msra.mxu0 0
        %503 = vmatprep.subr.bf16.mxu0 0
        %504 = vmatpush2.bf16.msra.mxu0 0
        %505 = vmatprep.subr.bf16.mxu0 0
        %506 = vmatpush2.bf16.msra.mxu0 0
        %507 = vmatprep.subr.bf16.mxu0 0
        %508 = vmatpush2.bf16.msra.mxu0 0
        %509 = vmatprep.subr.bf16.mxu0 0
        %510 = vmatpush2.bf16.msra.mxu0 0
        %511 = vmatprep.subr.bf16.mxu0 0
        %512 = vmatpush2.bf16.msra.mxu0 0
        %513 = vmatprep.subr.bf16.mxu0 0
        %514 = vmatpush2.bf16.msra.mxu0 0
        %515 = vmatprep.mubr.bf16.mxu0 0
        %516 = vmatmul.mubr.bf16.gmra.mxu0 %v474
        %v517 = vpop.f32.mrf.mxu0
        %v518 = vadd.f32 %v470, %v517
        %v519 = vpop.f32.mrf.mxu0
        %v520 = vadd.f32 %v470, %v519
        %v521 = vpop.f32.mrf.mxu0
        %v522 = vpop.f32.mrf.mxu0
        %523 = vdwg.mxu0
        %v524 = vpack.c.bf16 %v518, %v518
        %v525 = vpack.c.bf16 %v520, %v520
        %527 = vrot.lane.b32.xlu0 %v525, 51
        %v528 = vpop.permute.xlu0 %527
        %530 = vrot.lane.b32.xlu0 %v524, 51
        %v531 = vpop.permute.xlu0 %530
        %vm532 = vcmask 416768
        %v533 = vsel %vm532, %v531, %v528
        %vm534 = vcmask 416768
        %v537 = vsel %vm534, %v528, %v531
        %v538 = vld [vmem:[%s3] sm:$0x3]
        %vm539 = vcmask 64512
        %v541 = vsel %vm539, %v538, 0
        %v543 = vsel %vm385, %v537, 0
        %v546 = vsel %vm385, %v533, 0
        %548 = vmatprep.subr.bf16.mxu0 0
        %549 = vmatpush1.bf16.msra.mxu0 0
        %550 = vmatprep.subr.bf16.mxu0 0
        %551 = vmatpush1.bf16.msra.mxu0 0
        %552 = vmatprep.subr.bf16.mxu0 0
        %553 = vmatpush1.bf16.msra.mxu0 0
        %554 = vmatprep.subr.bf16.mxu0 0
        %555 = vmatpush1.bf16.msra.mxu0 0
        %556 = vmatprep.subr.bf16.mxu0 0
        %557 = vmatpush1.bf16.msra.mxu0 0
        %558 = vmatprep.subr.bf16.mxu0 0
        %559 = vmatpush1.bf16.msra.mxu0 0
        %560 = vmatprep.subr.bf16.mxu0 0
        %561 = vmatpush1.bf16.msra.mxu0 0
        %562 = vmatprep.subr.bf16.mxu0 %v546
        %563 = vmatpush1.bf16.msra.mxu0 %v543
        %564 = vmatprep.subr.bf16.mxu0 0
        %565 = vmatpush2.bf16.msra.mxu0 0
        %566 = vmatprep.subr.bf16.mxu0 0
        %567 = vmatpush2.bf16.msra.mxu0 0
        %568 = vmatprep.subr.bf16.mxu0 0
        %569 = vmatpush2.bf16.msra.mxu0 0
        %570 = vmatprep.subr.bf16.mxu0 0
        %571 = vmatpush2.bf16.msra.mxu0 0
        %572 = vmatprep.subr.bf16.mxu0 0
        %573 = vmatpush2.bf16.msra.mxu0 0
        %574 = vmatprep.subr.bf16.mxu0 0
        %575 = vmatpush2.bf16.msra.mxu0 0
        %576 = vmatprep.subr.bf16.mxu0 0
        %577 = vmatpush2.bf16.msra.mxu0 0
        %578 = vmatprep.subr.bf16.mxu0 0
        %579 = vmatpush2.bf16.msra.mxu0 0
        %580 = vmatprep.mubr.bf16.mxu0 0
        %581 = vmatmul.mubr.bf16.gmra.mxu0 %v541
        %v582 = vpop.f32.mrf.mxu0
        %v583 = vadd.f32 0.0, %v582
        %v584 = vpop.f32.mrf.mxu0
        %v585 = vadd.f32 0.0, %v584
        %v586 = vpop.f32.mrf.mxu0
        %v587 = vpop.f32.mrf.mxu0
        %588 = vdwg.mxu0
        %v589 = vld [vmem:[%s4] ss:$8 sm:$0x3]
        %v591 = vlaneseq
        %v592 = vshrl.u32 %v591, 7
        %v593 = vsub.s32 0, %v592
        %v594 = vrot.slane %v589, %v593
        %v595 = vlaneseq
        %v596 = vshrl.u32 %v595, 7
        %v597 = vsub.s32 1, %v596
        %v598 = vrot.slane %v589, %v597
        %v601 = vmul.f32 %v583, %v594
        %v602 = vmul.f32 %v585, %v598
        %603 = vrot.lane.b32.xlu0 %v525, 50
        %v604 = vpop.permute.xlu0 %603
        %605 = vrot.lane.b32.xlu0 %v524, 50
        %v606 = vpop.permute.xlu0 %605
        %vm607 = vcmask 408576
        %v608 = vsel %vm607, %v606, %v604
        %vm609 = vcmask 408576
        %v612 = vsel %vm609, %v604, %v606
        %s613 = scalar_lea.vmem %s3, 2
        %v614 = vld [vmem:[%s613] sm:$0x3]
        %v616 = vsel %vm539, %v614, 0
        %v618 = vsel %vm385, %v612, 0
        %v621 = vsel %vm385, %v608, 0
        %623 = vmatprep.subr.bf16.mxu0 0
        %624 = vmatpush1.bf16.msra.mxu0 0
        %625 = vmatprep.subr.bf16.mxu0 0
        %626 = vmatpush1.bf16.msra.mxu0 0
        %627 = vmatprep.subr.bf16.mxu0 0
        %628 = vmatpush1.bf16.msra.mxu0 0
        %629 = vmatprep.subr.bf16.mxu0 0
        %630 = vmatpush1.bf16.msra.mxu0 0
        %631 = vmatprep.subr.bf16.mxu0 0
        %632 = vmatpush1.bf16.msra.mxu0 0
        %633 = vmatprep.subr.bf16.mxu0 0
        %634 = vmatpush1.bf16.msra.mxu0 0
        %635 = vmatprep.subr.bf16.mxu0 0
        %636 = vmatpush1.bf16.msra.mxu0 0
        %637 = vmatprep.subr.bf16.mxu0 %v621
        %638 = vmatpush1.bf16.msra.mxu0 %v618
        %639 = vmatprep.subr.bf16.mxu0 0
        %640 = vmatpush2.bf16.msra.mxu0 0
        %641 = vmatprep.subr.bf16.mxu0 0
        %642 = vmatpush2.bf16.msra.mxu0 0
        %643 = vmatprep.subr.bf16.mxu0 0
        %644 = vmatpush2.bf16.msra.mxu0 0
        %645 = vmatprep.subr.bf16.mxu0 0
        %646 = vmatpush2.bf16.msra.mxu0 0
        %647 = vmatprep.subr.bf16.mxu0 0
        %648 = vmatpush2.bf16.msra.mxu0 0
        %649 = vmatprep.subr.bf16.mxu0 0
        %650 = vmatpush2.bf16.msra.mxu0 0
        %651 = vmatprep.subr.bf16.mxu0 0
        %652 = vmatpush2.bf16.msra.mxu0 0
        %653 = vmatprep.subr.bf16.mxu0 0
        %654 = vmatpush2.bf16.msra.mxu0 0
        %655 = vmatprep.mubr.bf16.mxu0 0
        %656 = vmatmul.mubr.bf16.gmra.mxu0 %v616
        %v657 = vpop.f32.mrf.mxu0
        %v658 = vadd.f32 0.0, %v657
        %v659 = vpop.f32.mrf.mxu0
        %v660 = vadd.f32 0.0, %v659
        %v661 = vpop.f32.mrf.mxu0
        %v662 = vpop.f32.mrf.mxu0
        %663 = vdwg.mxu0
        %s664 = scalar_lea.vmem %s4, 1
        %v665 = vld [vmem:[%s664] ss:$8 sm:$0x3]
        %v667 = vlaneseq
        %v668 = vshrl.u32 %v667, 7
        %v669 = vsub.s32 0, %v668
        %v670 = vrot.slane %v665, %v669
        %v671 = vlaneseq
        %v672 = vshrl.u32 %v671, 7
        %v673 = vsub.s32 1, %v672
        %v674 = vrot.slane %v665, %v673
        %v677 = vmul.f32 %v658, %v670
        %v678 = vmul.f32 %v660, %v674
        %v679 = vadd.f32 %v601, %v677
        %v680 = vadd.f32 %v602, %v678
        %681 = vrot.lane.b32.xlu0 %v525, 49
        %v682 = vpop.permute.xlu0 %681
        %683 = vrot.lane.b32.xlu0 %v524, 49
        %v684 = vpop.permute.xlu0 %683
        %vm685 = vcmask 400384
        %v686 = vsel %vm685, %v684, %v682
        %vm687 = vcmask 400384
        %v690 = vsel %vm687, %v682, %v684
        %s691 = scalar_lea.vmem %s3, 4
        %v692 = vld [vmem:[%s691] sm:$0x3]
        %v694 = vsel %vm539, %v692, 0
        %v696 = vsel %vm385, %v690, 0
        %v699 = vsel %vm385, %v686, 0
        %701 = vmatprep.subr.bf16.mxu0 0
        %702 = vmatpush1.bf16.msra.mxu0 0
        %703 = vmatprep.subr.bf16.mxu0 0
        %704 = vmatpush1.bf16.msra.mxu0 0
        %705 = vmatprep.subr.bf16.mxu0 0
        %706 = vmatpush1.bf16.msra.mxu0 0
        %707 = vmatprep.subr.bf16.mxu0 0
        %708 = vmatpush1.bf16.msra.mxu0 0
        %709 = vmatprep.subr.bf16.mxu0 0
        %710 = vmatpush1.bf16.msra.mxu0 0
        %711 = vmatprep.subr.bf16.mxu0 0
        %712 = vmatpush1.bf16.msra.mxu0 0
        %713 = vmatprep.subr.bf16.mxu0 0
        %714 = vmatpush1.bf16.msra.mxu0 0
        %715 = vmatprep.subr.bf16.mxu0 %v699
        %716 = vmatpush1.bf16.msra.mxu0 %v696
        %717 = vmatprep.subr.bf16.mxu0 0
        %718 = vmatpush2.bf16.msra.mxu0 0
        %719 = vmatprep.subr.bf16.mxu0 0
        %720 = vmatpush2.bf16.msra.mxu0 0
        %721 = vmatprep.subr.bf16.mxu0 0
        %722 = vmatpush2.bf16.msra.mxu0 0
        %723 = vmatprep.subr.bf16.mxu0 0
        %724 = vmatpush2.bf16.msra.mxu0 0
        %725 = vmatprep.subr.bf16.mxu0 0
        %726 = vmatpush2.bf16.msra.mxu0 0
        %727 = vmatprep.subr.bf16.mxu0 0
        %728 = vmatpush2.bf16.msra.mxu0 0
        %729 = vmatprep.subr.bf16.mxu0 0
        %730 = vmatpush2.bf16.msra.mxu0 0
        %731 = vmatprep.subr.bf16.mxu0 0
        %732 = vmatpush2.bf16.msra.mxu0 0
        %733 = vmatprep.mubr.bf16.mxu0 0
        %734 = vmatmul.mubr.bf16.gmra.mxu0 %v694
        %v735 = vpop.f32.mrf.mxu0
        %v736 = vadd.f32 0.0, %v735
        %v737 = vpop.f32.mrf.mxu0
        %v738 = vadd.f32 0.0, %v737
        %v739 = vpop.f32.mrf.mxu0
        %v740 = vpop.f32.mrf.mxu0
        %741 = vdwg.mxu0
        %s742 = scalar_lea.vmem %s4, 2
        %v743 = vld [vmem:[%s742] ss:$8 sm:$0x3]
        %v745 = vlaneseq
        %v746 = vshrl.u32 %v745, 7
        %v747 = vsub.s32 0, %v746
        %v748 = vrot.slane %v743, %v747
        %v749 = vlaneseq
        %v750 = vshrl.u32 %v749, 7
        %v751 = vsub.s32 1, %v750
        %v752 = vrot.slane %v743, %v751
        %v755 = vmul.f32 %v736, %v748
        %v756 = vmul.f32 %v738, %v752
        %v757 = vadd.f32 %v679, %v755
        %v758 = vadd.f32 %v680, %v756
        %759 = vrot.lane.b32.xlu0 %v525, 48
        %v760 = vpop.permute.xlu0 %759
        %761 = vrot.lane.b32.xlu0 %v524, 48
        %v762 = vpop.permute.xlu0 %761
        %vm763 = vcmask 392192
        %v764 = vsel %vm763, %v762, %v760
        %vm765 = vcmask 392192
        %v768 = vsel %vm765, %v760, %v762
        %s769 = scalar_lea.vmem %s3, 6
        %v770 = vld [vmem:[%s769] sm:$0x3]
        %v772 = vsel %vm539, %v770, 0
        %v774 = vsel %vm385, %v768, 0
        %v777 = vsel %vm385, %v764, 0
        %779 = vmatprep.subr.bf16.mxu0 0
        %780 = vmatpush1.bf16.msra.mxu0 0
        %781 = vmatprep.subr.bf16.mxu0 0
        %782 = vmatpush1.bf16.msra.mxu0 0
        %783 = vmatprep.subr.bf16.mxu0 0
        %784 = vmatpush1.bf16.msra.mxu0 0
        %785 = vmatprep.subr.bf16.mxu0 0
        %786 = vmatpush1.bf16.msra.mxu0 0
        %787 = vmatprep.subr.bf16.mxu0 0
        %788 = vmatpush1.bf16.msra.mxu0 0
        %789 = vmatprep.subr.bf16.mxu0 0
        %790 = vmatpush1.bf16.msra.mxu0 0
        %791 = vmatprep.subr.bf16.mxu0 0
        %792 = vmatpush1.bf16.msra.mxu0 0
        %793 = vmatprep.subr.bf16.mxu0 %v777
        %794 = vmatpush1.bf16.msra.mxu0 %v774
        %795 = vmatprep.subr.bf16.mxu0 0
        %796 = vmatpush2.bf16.msra.mxu0 0
        %797 = vmatprep.subr.bf16.mxu0 0
        %798 = vmatpush2.bf16.msra.mxu0 0
        %799 = vmatprep.subr.bf16.mxu0 0
        %800 = vmatpush2.bf16.msra.mxu0 0
        %801 = vmatprep.subr.bf16.mxu0 0
        %802 = vmatpush2.bf16.msra.mxu0 0
        %803 = vmatprep.subr.bf16.mxu0 0
        %804 = vmatpush2.bf16.msra.mxu0 0
        %805 = vmatprep.subr.bf16.mxu0 0
        %806 = vmatpush2.bf16.msra.mxu0 0
        %807 = vmatprep.subr.bf16.mxu0 0
        %808 = vmatpush2.bf16.msra.mxu0 0
        %809 = vmatprep.subr.bf16.mxu0 0
        %810 = vmatpush2.bf16.msra.mxu0 0
        %811 = vmatprep.mubr.bf16.mxu0 0
        %812 = vmatmul.mubr.bf16.gmra.mxu0 %v772
        %v813 = vpop.f32.mrf.mxu0
        %v814 = vadd.f32 0.0, %v813
        %v815 = vpop.f32.mrf.mxu0
        %v816 = vadd.f32 0.0, %v815
        %v817 = vpop.f32.mrf.mxu0
        %v818 = vpop.f32.mrf.mxu0
        %819 = vdwg.mxu0
        %s820 = scalar_lea.vmem %s4, 3
        %v821 = vld [vmem:[%s820] ss:$8 sm:$0x3]
        %v823 = vlaneseq
        %v824 = vshrl.u32 %v823, 7
        %v825 = vsub.s32 0, %v824
        %v826 = vrot.slane %v821, %v825
        %v827 = vlaneseq
        %v828 = vshrl.u32 %v827, 7
        %v829 = vsub.s32 1, %v828
        %v830 = vrot.slane %v821, %v829
        %v833 = vmul.f32 %v814, %v826
        %v834 = vmul.f32 %v816, %v830
        %v835 = vadd.f32 %v757, %v833
        %v836 = vadd.f32 %v758, %v834
        %837 = vrot.lane.b32.xlu0 %v525, 47
        %v838 = vpop.permute.xlu0 %837
        %839 = vrot.lane.b32.xlu0 %v524, 47
        %v840 = vpop.permute.xlu0 %839
        %vm841 = vcmask 384000
        %v842 = vsel %vm841, %v840, %v838
        %vm843 = vcmask 384000
        %v846 = vsel %vm843, %v838, %v840
        %s847 = scalar_lea.vmem %s3, 8
        %v848 = vld [vmem:[%s847] sm:$0x3]
        %v850 = vsel %vm539, %v848, 0
        %v852 = vsel %vm385, %v846, 0
        %v855 = vsel %vm385, %v842, 0
        %857 = vmatprep.subr.bf16.mxu0 0
        %858 = vmatpush1.bf16.msra.mxu0 0
        %859 = vmatprep.subr.bf16.mxu0 0
        %860 = vmatpush1.bf16.msra.mxu0 0
        %861 = vmatprep.subr.bf16.mxu0 0
        %862 = vmatpush1.bf16.msra.mxu0 0
        %863 = vmatprep.subr.bf16.mxu0 0
        %864 = vmatpush1.bf16.msra.mxu0 0
        %865 = vmatprep.subr.bf16.mxu0 0
        %866 = vmatpush1.bf16.msra.mxu0 0
        %867 = vmatprep.subr.bf16.mxu0 0
        %868 = vmatpush1.bf16.msra.mxu0 0
        %869 = vmatprep.subr.bf16.mxu0 0
        %870 = vmatpush1.bf16.msra.mxu0 0
        %871 = vmatprep.subr.bf16.mxu0 %v855
        %872 = vmatpush1.bf16.msra.mxu0 %v852
        %873 = vmatprep.subr.bf16.mxu0 0
        %874 = vmatpush2.bf16.msra.mxu0 0
        %875 = vmatprep.subr.bf16.mxu0 0
        %876 = vmatpush2.bf16.msra.mxu0 0
        %877 = vmatprep.subr.bf16.mxu0 0
        %878 = vmatpush2.bf16.msra.mxu0 0
        %879 = vmatprep.subr.bf16.mxu0 0
        %880 = vmatpush2.bf16.msra.mxu0 0
        %881 = vmatprep.subr.bf16.mxu0 0
        %882 = vmatpush2.bf16.msra.mxu0 0
        %883 = vmatprep.subr.bf16.mxu0 0
        %884 = vmatpush2.bf16.msra.mxu0 0
        %885 = vmatprep.subr.bf16.mxu0 0
        %886 = vmatpush2.bf16.msra.mxu0 0
        %887 = vmatprep.subr.bf16.mxu0 0
        %888 = vmatpush2.bf16.msra.mxu0 0
        %889 = vmatprep.mubr.bf16.mxu0 0
        %890 = vmatmul.mubr.bf16.gmra.mxu0 %v850
        %v891 = vpop.f32.mrf.mxu0
        %v892 = vadd.f32 0.0, %v891
        %v893 = vpop.f32.mrf.mxu0
        %v894 = vadd.f32 0.0, %v893
        %v895 = vpop.f32.mrf.mxu0
        %v896 = vpop.f32.mrf.mxu0
        %897 = vdwg.mxu0
        %s898 = scalar_lea.vmem %s4, 4
        %v899 = vld [vmem:[%s898] ss:$8 sm:$0x3]
        %v901 = vlaneseq
        %v902 = vshrl.u32 %v901, 7
        %v903 = vsub.s32 0, %v902
        %v904 = vrot.slane %v899, %v903
        %v905 = vlaneseq
        %v906 = vshrl.u32 %v905, 7
        %v907 = vsub.s32 1, %v906
        %v908 = vrot.slane %v899, %v907
        %v911 = vmul.f32 %v892, %v904
        %v912 = vmul.f32 %v894, %v908
        %v913 = vadd.f32 %v835, %v911
        %v914 = vadd.f32 %v836, %v912
        %915 = vrot.lane.b32.xlu0 %v525, 46
        %v916 = vpop.permute.xlu0 %915
        %917 = vrot.lane.b32.xlu0 %v524, 46
        %v918 = vpop.permute.xlu0 %917
        %vm919 = vcmask 375808
        %v920 = vsel %vm919, %v918, %v916
        %vm921 = vcmask 375808
        %v924 = vsel %vm921, %v916, %v918
        %s925 = scalar_lea.vmem %s3, 10
        %v926 = vld [vmem:[%s925] sm:$0x3]
        %v928 = vsel %vm539, %v926, 0
        %v930 = vsel %vm385, %v924, 0
        %v933 = vsel %vm385, %v920, 0
        %935 = vmatprep.subr.bf16.mxu0 0
        %936 = vmatpush1.bf16.msra.mxu0 0
        %937 = vmatprep.subr.bf16.mxu0 0
        %938 = vmatpush1.bf16.msra.mxu0 0
        %939 = vmatprep.subr.bf16.mxu0 0
        %940 = vmatpush1.bf16.msra.mxu0 0
        %941 = vmatprep.subr.bf16.mxu0 0
        %942 = vmatpush1.bf16.msra.mxu0 0
        %943 = vmatprep.subr.bf16.mxu0 0
        %944 = vmatpush1.bf16.msra.mxu0 0
        %945 = vmatprep.subr.bf16.mxu0 0
        %946 = vmatpush1.bf16.msra.mxu0 0
        %947 = vmatprep.subr.bf16.mxu0 0
        %948 = vmatpush1.bf16.msra.mxu0 0
        %949 = vmatprep.subr.bf16.mxu0 %v933
        %950 = vmatpush1.bf16.msra.mxu0 %v930
        %951 = vmatprep.subr.bf16.mxu0 0
        %952 = vmatpush2.bf16.msra.mxu0 0
        %953 = vmatprep.subr.bf16.mxu0 0
        %954 = vmatpush2.bf16.msra.mxu0 0
        %955 = vmatprep.subr.bf16.mxu0 0
        %956 = vmatpush2.bf16.msra.mxu0 0
        %957 = vmatprep.subr.bf16.mxu0 0
        %958 = vmatpush2.bf16.msra.mxu0 0
        %959 = vmatprep.subr.bf16.mxu0 0
        %960 = vmatpush2.bf16.msra.mxu0 0
        %961 = vmatprep.subr.bf16.mxu0 0
        %962 = vmatpush2.bf16.msra.mxu0 0
        %963 = vmatprep.subr.bf16.mxu0 0
        %964 = vmatpush2.bf16.msra.mxu0 0
        %965 = vmatprep.subr.bf16.mxu0 0
        %966 = vmatpush2.bf16.msra.mxu0 0
        %967 = vmatprep.mubr.bf16.mxu0 0
        %968 = vmatmul.mubr.bf16.gmra.mxu0 %v928
        %v969 = vpop.f32.mrf.mxu0
        %v970 = vadd.f32 0.0, %v969
        %v971 = vpop.f32.mrf.mxu0
        %v972 = vadd.f32 0.0, %v971
        %v973 = vpop.f32.mrf.mxu0
        %v974 = vpop.f32.mrf.mxu0
        %975 = vdwg.mxu0
        %s976 = scalar_lea.vmem %s4, 5
        %v977 = vld [vmem:[%s976] ss:$8 sm:$0x3]
        %v979 = vlaneseq
        %v980 = vshrl.u32 %v979, 7
        %v981 = vsub.s32 0, %v980
        %v982 = vrot.slane %v977, %v981
        %v983 = vlaneseq
        %v984 = vshrl.u32 %v983, 7
        %v985 = vsub.s32 1, %v984
        %v986 = vrot.slane %v977, %v985
        %v989 = vmul.f32 %v970, %v982
        %v990 = vmul.f32 %v972, %v986
        %v991 = vadd.f32 %v913, %v989
        %v992 = vadd.f32 %v914, %v990
        %993 = vrot.lane.b32.xlu0 %v525, 45
        %v994 = vpop.permute.xlu0 %993
        %995 = vrot.lane.b32.xlu0 %v524, 45
        %v996 = vpop.permute.xlu0 %995
        %vm997 = vcmask 367616
        %v998 = vsel %vm997, %v996, %v994
        %vm999 = vcmask 367616
        %v1002 = vsel %vm999, %v994, %v996
        %s1003 = scalar_lea.vmem %s3, 12
        %v1004 = vld [vmem:[%s1003] sm:$0x3]
        %v1006 = vsel %vm539, %v1004, 0
        %v1008 = vsel %vm385, %v1002, 0
        %v1011 = vsel %vm385, %v998, 0
        %1013 = vmatprep.subr.bf16.mxu0 0
        %1014 = vmatpush1.bf16.msra.mxu0 0
        %1015 = vmatprep.subr.bf16.mxu0 0
        %1016 = vmatpush1.bf16.msra.mxu0 0
        %1017 = vmatprep.subr.bf16.mxu0 0
        %1018 = vmatpush1.bf16.msra.mxu0 0
        %1019 = vmatprep.subr.bf16.mxu0 0
        %1020 = vmatpush1.bf16.msra.mxu0 0
        %1021 = vmatprep.subr.bf16.mxu0 0
        %1022 = vmatpush1.bf16.msra.mxu0 0
        %1023 = vmatprep.subr.bf16.mxu0 0
        %1024 = vmatpush1.bf16.msra.mxu0 0
        %1025 = vmatprep.subr.bf16.mxu0 0
        %1026 = vmatpush1.bf16.msra.mxu0 0
        %1027 = vmatprep.subr.bf16.mxu0 %v1011
        %1028 = vmatpush1.bf16.msra.mxu0 %v1008
        %1029 = vmatprep.subr.bf16.mxu0 0
        %1030 = vmatpush2.bf16.msra.mxu0 0
        %1031 = vmatprep.subr.bf16.mxu0 0
        %1032 = vmatpush2.bf16.msra.mxu0 0
        %1033 = vmatprep.subr.bf16.mxu0 0
        %1034 = vmatpush2.bf16.msra.mxu0 0
        %1035 = vmatprep.subr.bf16.mxu0 0
        %1036 = vmatpush2.bf16.msra.mxu0 0
        %1037 = vmatprep.subr.bf16.mxu0 0
        %1038 = vmatpush2.bf16.msra.mxu0 0
        %1039 = vmatprep.subr.bf16.mxu0 0
        %1040 = vmatpush2.bf16.msra.mxu0 0
        %1041 = vmatprep.subr.bf16.mxu0 0
        %1042 = vmatpush2.bf16.msra.mxu0 0
        %1043 = vmatprep.subr.bf16.mxu0 0
        %1044 = vmatpush2.bf16.msra.mxu0 0
        %1045 = vmatprep.mubr.bf16.mxu0 0
        %1046 = vmatmul.mubr.bf16.gmra.mxu0 %v1006
        %v1047 = vpop.f32.mrf.mxu0
        %v1048 = vadd.f32 0.0, %v1047
        %v1049 = vpop.f32.mrf.mxu0
        %v1050 = vadd.f32 0.0, %v1049
        %v1051 = vpop.f32.mrf.mxu0
        %v1052 = vpop.f32.mrf.mxu0
        %1053 = vdwg.mxu0
        %s1054 = scalar_lea.vmem %s4, 6
        %v1055 = vld [vmem:[%s1054] ss:$8 sm:$0x3]
        %v1057 = vlaneseq
        %v1058 = vshrl.u32 %v1057, 7
        %v1059 = vsub.s32 0, %v1058
        %v1060 = vrot.slane %v1055, %v1059
        %v1061 = vlaneseq
        %v1062 = vshrl.u32 %v1061, 7
        %v1063 = vsub.s32 1, %v1062
        %v1064 = vrot.slane %v1055, %v1063
        %v1067 = vmul.f32 %v1048, %v1060
        %v1068 = vmul.f32 %v1050, %v1064
        %v1069 = vadd.f32 %v991, %v1067
        %v1070 = vadd.f32 %v992, %v1068
        %1071 = vrot.lane.b32.xlu0 %v525, 35
        %v1072 = vpop.permute.xlu0 %1071
        %1073 = vrot.lane.b32.xlu0 %v524, 35
        %v1074 = vpop.permute.xlu0 %1073
        %vm1075 = vcmask 285696
        %v1076 = vsel %vm1075, %v1074, %v1072
        %vm1077 = vcmask 285696
        %v1080 = vsel %vm1077, %v1072, %v1074
        %s1081 = scalar_lea.vmem %s3, 14
        %v1082 = vld [vmem:[%s1081] sm:$0x3]
        %v1084 = vsel %vm539, %v1082, 0
        %v1086 = vsel %vm385, %v1080, 0
        %v1089 = vsel %vm385, %v1076, 0
        %1091 = vmatprep.subr.bf16.mxu0 0
        %1092 = vmatpush1.bf16.msra.mxu0 0
        %1093 = vmatprep.subr.bf16.mxu0 0
        %1094 = vmatpush1.bf16.msra.mxu0 0
        %1095 = vmatprep.subr.bf16.mxu0 0
        %1096 = vmatpush1.bf16.msra.mxu0 0
        %1097 = vmatprep.subr.bf16.mxu0 0
        %1098 = vmatpush1.bf16.msra.mxu0 0
        %1099 = vmatprep.subr.bf16.mxu0 0
        %1100 = vmatpush1.bf16.msra.mxu0 0
        %1101 = vmatprep.subr.bf16.mxu0 0
        %1102 = vmatpush1.bf16.msra.mxu0 0
        %1103 = vmatprep.subr.bf16.mxu0 0
        %1104 = vmatpush1.bf16.msra.mxu0 0
        %1105 = vmatprep.subr.bf16.mxu0 %v1089
        %1106 = vmatpush1.bf16.msra.mxu0 %v1086
        %1107 = vmatprep.subr.bf16.mxu0 0
        %1108 = vmatpush2.bf16.msra.mxu0 0
        %1109 = vmatprep.subr.bf16.mxu0 0
        %1110 = vmatpush2.bf16.msra.mxu0 0
        %1111 = vmatprep.subr.bf16.mxu0 0
        %1112 = vmatpush2.bf16.msra.mxu0 0
        %1113 = vmatprep.subr.bf16.mxu0 0
        %1114 = vmatpush2.bf16.msra.mxu0 0
        %1115 = vmatprep.subr.bf16.mxu0 0
        %1116 = vmatpush2.bf16.msra.mxu0 0
        %1117 = vmatprep.subr.bf16.mxu0 0
        %1118 = vmatpush2.bf16.msra.mxu0 0
        %1119 = vmatprep.subr.bf16.mxu0 0
        %1120 = vmatpush2.bf16.msra.mxu0 0
        %1121 = vmatprep.subr.bf16.mxu0 0
        %1122 = vmatpush2.bf16.msra.mxu0 0
        %1123 = vmatprep.mubr.bf16.mxu0 0
        %1124 = vmatmul.mubr.bf16.gmra.mxu0 %v1084
        %v1125 = vpop.f32.mrf.mxu0
        %v1126 = vadd.f32 0.0, %v1125
        %v1127 = vpop.f32.mrf.mxu0
        %v1128 = vadd.f32 0.0, %v1127
        %v1129 = vpop.f32.mrf.mxu0
        %v1130 = vpop.f32.mrf.mxu0
        %1131 = vdwg.mxu0
        %s1132 = scalar_lea.vmem %s4, 7
        %v1133 = vld [vmem:[%s1132] ss:$8 sm:$0x3]
        %v1135 = vlaneseq
        %v1136 = vshrl.u32 %v1135, 7
        %v1137 = vsub.s32 0, %v1136
        %v1138 = vrot.slane %v1133, %v1137
        %v1139 = vlaneseq
        %v1140 = vshrl.u32 %v1139, 7
        %v1141 = vsub.s32 1, %v1140
        %v1142 = vrot.slane %v1133, %v1141
        %v1145 = vmul.f32 %v1126, %v1138
        %v1146 = vmul.f32 %v1128, %v1142
        %v1147 = vadd.f32 %v1069, %v1145
        %v1148 = vadd.f32 %v1070, %v1146
        %1149 = vrot.lane.b32.xlu0 %v525, 34
        %v1150 = vpop.permute.xlu0 %1149
        %1151 = vrot.lane.b32.xlu0 %v524, 34
        %v1152 = vpop.permute.xlu0 %1151
        %vm1153 = vcmask 277504
        %v1154 = vsel %vm1153, %v1152, %v1150
        %vm1155 = vcmask 277504
        %v1158 = vsel %vm1155, %v1150, %v1152
        %s1159 = scalar_lea.vmem %s3, 16
        %v1160 = vld [vmem:[%s1159] sm:$0x3]
        %v1162 = vsel %vm539, %v1160, 0
        %v1164 = vsel %vm385, %v1158, 0
        %v1167 = vsel %vm385, %v1154, 0
        %1169 = vmatprep.subr.bf16.mxu0 0
        %1170 = vmatpush1.bf16.msra.mxu0 0
        %1171 = vmatprep.subr.bf16.mxu0 0
        %1172 = vmatpush1.bf16.msra.mxu0 0
        %1173 = vmatprep.subr.bf16.mxu0 0
        %1174 = vmatpush1.bf16.msra.mxu0 0
        %1175 = vmatprep.subr.bf16.mxu0 0
        %1176 = vmatpush1.bf16.msra.mxu0 0
        %1177 = vmatprep.subr.bf16.mxu0 0
        %1178 = vmatpush1.bf16.msra.mxu0 0
        %1179 = vmatprep.subr.bf16.mxu0 0
        %1180 = vmatpush1.bf16.msra.mxu0 0
        %1181 = vmatprep.subr.bf16.mxu0 0
        %1182 = vmatpush1.bf16.msra.mxu0 0
        %1183 = vmatprep.subr.bf16.mxu0 %v1167
        %1184 = vmatpush1.bf16.msra.mxu0 %v1164
        %1185 = vmatprep.subr.bf16.mxu0 0
        %1186 = vmatpush2.bf16.msra.mxu0 0
        %1187 = vmatprep.subr.bf16.mxu0 0
        %1188 = vmatpush2.bf16.msra.mxu0 0
        %1189 = vmatprep.subr.bf16.mxu0 0
        %1190 = vmatpush2.bf16.msra.mxu0 0
        %1191 = vmatprep.subr.bf16.mxu0 0
        %1192 = vmatpush2.bf16.msra.mxu0 0
        %1193 = vmatprep.subr.bf16.mxu0 0
        %1194 = vmatpush2.bf16.msra.mxu0 0
        %1195 = vmatprep.subr.bf16.mxu0 0
        %1196 = vmatpush2.bf16.msra.mxu0 0
        %1197 = vmatprep.subr.bf16.mxu0 0
        %1198 = vmatpush2.bf16.msra.mxu0 0
        %1199 = vmatprep.subr.bf16.mxu0 0
        %1200 = vmatpush2.bf16.msra.mxu0 0
        %1201 = vmatprep.mubr.bf16.mxu0 0
        %1202 = vmatmul.mubr.bf16.gmra.mxu0 %v1162
        %v1203 = vpop.f32.mrf.mxu0
        %v1204 = vadd.f32 0.0, %v1203
        %v1205 = vpop.f32.mrf.mxu0
        %v1206 = vadd.f32 0.0, %v1205
        %v1207 = vpop.f32.mrf.mxu0
        %v1208 = vpop.f32.mrf.mxu0
        %1209 = vdwg.mxu0
        %s1210 = scalar_lea.vmem %s4, 16
        %v1211 = vld [vmem:[%s1210] ss:$8 sm:$0x3]
        %v1213 = vlaneseq
        %v1214 = vshrl.u32 %v1213, 7
        %v1215 = vsub.s32 0, %v1214
        %v1216 = vrot.slane %v1211, %v1215
        %v1217 = vlaneseq
        %v1218 = vshrl.u32 %v1217, 7
        %v1219 = vsub.s32 1, %v1218
        %v1220 = vrot.slane %v1211, %v1219
        %v1223 = vmul.f32 %v1204, %v1216
        %v1224 = vmul.f32 %v1206, %v1220
        %v1225 = vadd.f32 %v1147, %v1223
        %v1226 = vadd.f32 %v1148, %v1224
        %1227 = vrot.lane.b32.xlu0 %v525, 33
        %v1228 = vpop.permute.xlu0 %1227
        %1229 = vrot.lane.b32.xlu0 %v524, 33
        %v1230 = vpop.permute.xlu0 %1229
        %vm1231 = vcmask 269312
        %v1232 = vsel %vm1231, %v1230, %v1228
        %vm1233 = vcmask 269312
        %v1236 = vsel %vm1233, %v1228, %v1230
        %s1237 = scalar_lea.vmem %s3, 18
        %v1238 = vld [vmem:[%s1237] sm:$0x3]
        %v1240 = vsel %vm539, %v1238, 0
        %v1242 = vsel %vm385, %v1236, 0
        %v1245 = vsel %vm385, %v1232, 0
        %1247 = vmatprep.subr.bf16.mxu0 0
        %1248 = vmatpush1.bf16.msra.mxu0 0
        %1249 = vmatprep.subr.bf16.mxu0 0
        %1250 = vmatpush1.bf16.msra.mxu0 0
        %1251 = vmatprep.subr.bf16.mxu0 0
        %1252 = vmatpush1.bf16.msra.mxu0 0
        %1253 = vmatprep.subr.bf16.mxu0 0
        %1254 = vmatpush1.bf16.msra.mxu0 0
        %1255 = vmatprep.subr.bf16.mxu0 0
        %1256 = vmatpush1.bf16.msra.mxu0 0
        %1257 = vmatprep.subr.bf16.mxu0 0
        %1258 = vmatpush1.bf16.msra.mxu0 0
        %1259 = vmatprep.subr.bf16.mxu0 0
        %1260 = vmatpush1.bf16.msra.mxu0 0
        %1261 = vmatprep.subr.bf16.mxu0 %v1245
        %1262 = vmatpush1.bf16.msra.mxu0 %v1242
        %1263 = vmatprep.subr.bf16.mxu0 0
        %1264 = vmatpush2.bf16.msra.mxu0 0
        %1265 = vmatprep.subr.bf16.mxu0 0
        %1266 = vmatpush2.bf16.msra.mxu0 0
        %1267 = vmatprep.subr.bf16.mxu0 0
        %1268 = vmatpush2.bf16.msra.mxu0 0
        %1269 = vmatprep.subr.bf16.mxu0 0
        %1270 = vmatpush2.bf16.msra.mxu0 0
        %1271 = vmatprep.subr.bf16.mxu0 0
        %1272 = vmatpush2.bf16.msra.mxu0 0
        %1273 = vmatprep.subr.bf16.mxu0 0
        %1274 = vmatpush2.bf16.msra.mxu0 0
        %1275 = vmatprep.subr.bf16.mxu0 0
        %1276 = vmatpush2.bf16.msra.mxu0 0
        %1277 = vmatprep.subr.bf16.mxu0 0
        %1278 = vmatpush2.bf16.msra.mxu0 0
        %1279 = vmatprep.mubr.bf16.mxu0 0
        %1280 = vmatmul.mubr.bf16.gmra.mxu0 %v1240
        %v1281 = vpop.f32.mrf.mxu0
        %v1282 = vadd.f32 0.0, %v1281
        %v1283 = vpop.f32.mrf.mxu0
        %v1284 = vadd.f32 0.0, %v1283
        %v1285 = vpop.f32.mrf.mxu0
        %v1286 = vpop.f32.mrf.mxu0
        %1287 = vdwg.mxu0
        %s1288 = scalar_lea.vmem %s4, 17
        %v1289 = vld [vmem:[%s1288] ss:$8 sm:$0x3]
        %v1291 = vlaneseq
        %v1292 = vshrl.u32 %v1291, 7
        %v1293 = vsub.s32 0, %v1292
        %v1294 = vrot.slane %v1289, %v1293
        %v1295 = vlaneseq
        %v1296 = vshrl.u32 %v1295, 7
        %v1297 = vsub.s32 1, %v1296
        %v1298 = vrot.slane %v1289, %v1297
        %v1301 = vmul.f32 %v1282, %v1294
        %v1302 = vmul.f32 %v1284, %v1298
        %v1303 = vadd.f32 %v1225, %v1301
        %v1304 = vadd.f32 %v1226, %v1302
        %1305 = vrot.lane.b32.xlu0 %v525, 32
        %v1306 = vpop.permute.xlu0 %1305
        %1307 = vrot.lane.b32.xlu0 %v524, 32
        %v1308 = vpop.permute.xlu0 %1307
        %vm1309 = vcmask 261120
        %v1310 = vsel %vm1309, %v1308, %v1306
        %vm1311 = vcmask 261120
        %v1314 = vsel %vm1311, %v1306, %v1308
        %s1315 = scalar_lea.vmem %s3, 20
        %v1316 = vld [vmem:[%s1315] sm:$0x3]
        %v1318 = vsel %vm539, %v1316, 0
        %v1320 = vsel %vm385, %v1314, 0
        %v1323 = vsel %vm385, %v1310, 0
        %1325 = vmatprep.subr.bf16.mxu0 0
        %1326 = vmatpush1.bf16.msra.mxu0 0
        %1327 = vmatprep.subr.bf16.mxu0 0
        %1328 = vmatpush1.bf16.msra.mxu0 0
        %1329 = vmatprep.subr.bf16.mxu0 0
        %1330 = vmatpush1.bf16.msra.mxu0 0
        %1331 = vmatprep.subr.bf16.mxu0 0
        %1332 = vmatpush1.bf16.msra.mxu0 0
        %1333 = vmatprep.subr.bf16.mxu0 0
        %1334 = vmatpush1.bf16.msra.mxu0 0
        %1335 = vmatprep.subr.bf16.mxu0 0
        %1336 = vmatpush1.bf16.msra.mxu0 0
        %1337 = vmatprep.subr.bf16.mxu0 0
        %1338 = vmatpush1.bf16.msra.mxu0 0
        %1339 = vmatprep.subr.bf16.mxu0 %v1323
        %1340 = vmatpush1.bf16.msra.mxu0 %v1320
        %1341 = vmatprep.subr.bf16.mxu0 0
        %1342 = vmatpush2.bf16.msra.mxu0 0
        %1343 = vmatprep.subr.bf16.mxu0 0
        %1344 = vmatpush2.bf16.msra.mxu0 0
        %1345 = vmatprep.subr.bf16.mxu0 0
        %1346 = vmatpush2.bf16.msra.mxu0 0
        %1347 = vmatprep.subr.bf16.mxu0 0
        %1348 = vmatpush2.bf16.msra.mxu0 0
        %1349 = vmatprep.subr.bf16.mxu0 0
        %1350 = vmatpush2.bf16.msra.mxu0 0
        %1351 = vmatprep.subr.bf16.mxu0 0
        %1352 = vmatpush2.bf16.msra.mxu0 0
        %1353 = vmatprep.subr.bf16.mxu0 0
        %1354 = vmatpush2.bf16.msra.mxu0 0
        %1355 = vmatprep.subr.bf16.mxu0 0
        %1356 = vmatpush2.bf16.msra.mxu0 0
        %1357 = vmatprep.mubr.bf16.mxu0 0
        %1358 = vmatmul.mubr.bf16.gmra.mxu0 %v1318
        %v1359 = vpop.f32.mrf.mxu0
        %v1360 = vadd.f32 0.0, %v1359
        %v1361 = vpop.f32.mrf.mxu0
        %v1362 = vadd.f32 0.0, %v1361
        %v1363 = vpop.f32.mrf.mxu0
        %v1364 = vpop.f32.mrf.mxu0
        %1365 = vdwg.mxu0
        %s1366 = scalar_lea.vmem %s4, 18
        %v1367 = vld [vmem:[%s1366] ss:$8 sm:$0x3]
        %v1369 = vlaneseq
        %v1370 = vshrl.u32 %v1369, 7
        %v1371 = vsub.s32 0, %v1370
        %v1372 = vrot.slane %v1367, %v1371
        %v1373 = vlaneseq
        %v1374 = vshrl.u32 %v1373, 7
        %v1375 = vsub.s32 1, %v1374
        %v1376 = vrot.slane %v1367, %v1375
        %v1379 = vmul.f32 %v1360, %v1372
        %v1380 = vmul.f32 %v1362, %v1376
        %v1381 = vadd.f32 %v1303, %v1379
        %v1382 = vadd.f32 %v1304, %v1380
        %1383 = vrot.lane.b32.xlu0 %v525, 31
        %v1384 = vpop.permute.xlu0 %1383
        %1385 = vrot.lane.b32.xlu0 %v524, 31
        %v1386 = vpop.permute.xlu0 %1385
        %vm1387 = vcmask 252928
        %v1388 = vsel %vm1387, %v1386, %v1384
        %vm1389 = vcmask 252928
        %v1392 = vsel %vm1389, %v1384, %v1386
        %s1393 = scalar_lea.vmem %s3, 22
        %v1394 = vld [vmem:[%s1393] sm:$0x3]
        %v1396 = vsel %vm539, %v1394, 0
        %v1398 = vsel %vm385, %v1392, 0
        %v1401 = vsel %vm385, %v1388, 0
        %1403 = vmatprep.subr.bf16.mxu0 0
        %1404 = vmatpush1.bf16.msra.mxu0 0
        %1405 = vmatprep.subr.bf16.mxu0 0
        %1406 = vmatpush1.bf16.msra.mxu0 0
        %1407 = vmatprep.subr.bf16.mxu0 0
        %1408 = vmatpush1.bf16.msra.mxu0 0
        %1409 = vmatprep.subr.bf16.mxu0 0
        %1410 = vmatpush1.bf16.msra.mxu0 0
        %1411 = vmatprep.subr.bf16.mxu0 0
        %1412 = vmatpush1.bf16.msra.mxu0 0
        %1413 = vmatprep.subr.bf16.mxu0 0
        %1414 = vmatpush1.bf16.msra.mxu0 0
        %1415 = vmatprep.subr.bf16.mxu0 0
        %1416 = vmatpush1.bf16.msra.mxu0 0
        %1417 = vmatprep.subr.bf16.mxu0 %v1401
        %1418 = vmatpush1.bf16.msra.mxu0 %v1398
        %1419 = vmatprep.subr.bf16.mxu0 0
        %1420 = vmatpush2.bf16.msra.mxu0 0
        %1421 = vmatprep.subr.bf16.mxu0 0
        %1422 = vmatpush2.bf16.msra.mxu0 0
        %1423 = vmatprep.subr.bf16.mxu0 0
        %1424 = vmatpush2.bf16.msra.mxu0 0
        %1425 = vmatprep.subr.bf16.mxu0 0
        %1426 = vmatpush2.bf16.msra.mxu0 0
        %1427 = vmatprep.subr.bf16.mxu0 0
        %1428 = vmatpush2.bf16.msra.mxu0 0
        %1429 = vmatprep.subr.bf16.mxu0 0
        %1430 = vmatpush2.bf16.msra.mxu0 0
        %1431 = vmatprep.subr.bf16.mxu0 0
        %1432 = vmatpush2.bf16.msra.mxu0 0
        %1433 = vmatprep.subr.bf16.mxu0 0
        %1434 = vmatpush2.bf16.msra.mxu0 0
        %1435 = vmatprep.mubr.bf16.mxu0 0
        %1436 = vmatmul.mubr.bf16.gmra.mxu0 %v1396
        %v1437 = vpop.f32.mrf.mxu0
        %v1438 = vadd.f32 0.0, %v1437
        %v1439 = vpop.f32.mrf.mxu0
        %v1440 = vadd.f32 0.0, %v1439
        %v1441 = vpop.f32.mrf.mxu0
        %v1442 = vpop.f32.mrf.mxu0
        %1443 = vdwg.mxu0
        %s1444 = scalar_lea.vmem %s4, 19
        %v1445 = vld [vmem:[%s1444] ss:$8 sm:$0x3]
        %v1447 = vlaneseq
        %v1448 = vshrl.u32 %v1447, 7
        %v1449 = vsub.s32 0, %v1448
        %v1450 = vrot.slane %v1445, %v1449
        %v1451 = vlaneseq
        %v1452 = vshrl.u32 %v1451, 7
        %v1453 = vsub.s32 1, %v1452
        %v1454 = vrot.slane %v1445, %v1453
        %v1457 = vmul.f32 %v1438, %v1450
        %v1458 = vmul.f32 %v1440, %v1454
        %v1459 = vadd.f32 %v1381, %v1457
        %v1460 = vadd.f32 %v1382, %v1458
        %1461 = vrot.lane.b32.xlu0 %v525, 30
        %v1462 = vpop.permute.xlu0 %1461
        %1463 = vrot.lane.b32.xlu0 %v524, 30
        %v1464 = vpop.permute.xlu0 %1463
        %vm1465 = vcmask 244736
        %v1466 = vsel %vm1465, %v1464, %v1462
        %vm1467 = vcmask 244736
        %v1470 = vsel %vm1467, %v1462, %v1464
        %s1471 = scalar_lea.vmem %s3, 24
        %v1472 = vld [vmem:[%s1471] sm:$0x3]
        %v1474 = vsel %vm539, %v1472, 0
        %v1476 = vsel %vm385, %v1470, 0
        %v1479 = vsel %vm385, %v1466, 0
        %1481 = vmatprep.subr.bf16.mxu0 0
        %1482 = vmatpush1.bf16.msra.mxu0 0
        %1483 = vmatprep.subr.bf16.mxu0 0
        %1484 = vmatpush1.bf16.msra.mxu0 0
        %1485 = vmatprep.subr.bf16.mxu0 0
        %1486 = vmatpush1.bf16.msra.mxu0 0
        %1487 = vmatprep.subr.bf16.mxu0 0
        %1488 = vmatpush1.bf16.msra.mxu0 0
        %1489 = vmatprep.subr.bf16.mxu0 0
        %1490 = vmatpush1.bf16.msra.mxu0 0
        %1491 = vmatprep.subr.bf16.mxu0 0
        %1492 = vmatpush1.bf16.msra.mxu0 0
        %1493 = vmatprep.subr.bf16.mxu0 0
        %1494 = vmatpush1.bf16.msra.mxu0 0
        %1495 = vmatprep.subr.bf16.mxu0 %v1479
        %1496 = vmatpush1.bf16.msra.mxu0 %v1476
        %1497 = vmatprep.subr.bf16.mxu0 0
        %1498 = vmatpush2.bf16.msra.mxu0 0
        %1499 = vmatprep.subr.bf16.mxu0 0
        %1500 = vmatpush2.bf16.msra.mxu0 0
        %1501 = vmatprep.subr.bf16.mxu0 0
        %1502 = vmatpush2.bf16.msra.mxu0 0
        %1503 = vmatprep.subr.bf16.mxu0 0
        %1504 = vmatpush2.bf16.msra.mxu0 0
        %1505 = vmatprep.subr.bf16.mxu0 0
        %1506 = vmatpush2.bf16.msra.mxu0 0
        %1507 = vmatprep.subr.bf16.mxu0 0
        %1508 = vmatpush2.bf16.msra.mxu0 0
        %1509 = vmatprep.subr.bf16.mxu0 0
        %1510 = vmatpush2.bf16.msra.mxu0 0
        %1511 = vmatprep.subr.bf16.mxu0 0
        %1512 = vmatpush2.bf16.msra.mxu0 0
        %1513 = vmatprep.mubr.bf16.mxu0 0
        %1514 = vmatmul.mubr.bf16.gmra.mxu0 %v1474
        %v1515 = vpop.f32.mrf.mxu0
        %v1516 = vadd.f32 0.0, %v1515
        %v1517 = vpop.f32.mrf.mxu0
        %v1518 = vadd.f32 0.0, %v1517
        %v1519 = vpop.f32.mrf.mxu0
        %v1520 = vpop.f32.mrf.mxu0
        %1521 = vdwg.mxu0
        %s1522 = scalar_lea.vmem %s4, 20
        %v1523 = vld [vmem:[%s1522] ss:$8 sm:$0x3]
        %v1525 = vlaneseq
        %v1526 = vshrl.u32 %v1525, 7
        %v1527 = vsub.s32 0, %v1526
        %v1528 = vrot.slane %v1523, %v1527
        %v1529 = vlaneseq
        %v1530 = vshrl.u32 %v1529, 7
        %v1531 = vsub.s32 1, %v1530
        %v1532 = vrot.slane %v1523, %v1531
        %v1535 = vmul.f32 %v1516, %v1528
        %v1536 = vmul.f32 %v1518, %v1532
        %v1537 = vadd.f32 %v1459, %v1535
        %v1538 = vadd.f32 %v1460, %v1536
        %1539 = vrot.lane.b32.xlu0 %v525, 29
        %v1540 = vpop.permute.xlu0 %1539
        %1541 = vrot.lane.b32.xlu0 %v524, 29
        %v1542 = vpop.permute.xlu0 %1541
        %vm1543 = vcmask 236544
        %v1544 = vsel %vm1543, %v1542, %v1540
        %vm1545 = vcmask 236544
        %v1548 = vsel %vm1545, %v1540, %v1542
        %s1549 = scalar_lea.vmem %s3, 26
        %v1550 = vld [vmem:[%s1549] sm:$0x3]
        %v1552 = vsel %vm539, %v1550, 0
        %v1554 = vsel %vm385, %v1548, 0
        %v1557 = vsel %vm385, %v1544, 0
        %1559 = vmatprep.subr.bf16.mxu0 0
        %1560 = vmatpush1.bf16.msra.mxu0 0
        %1561 = vmatprep.subr.bf16.mxu0 0
        %1562 = vmatpush1.bf16.msra.mxu0 0
        %1563 = vmatprep.subr.bf16.mxu0 0
        %1564 = vmatpush1.bf16.msra.mxu0 0
        %1565 = vmatprep.subr.bf16.mxu0 0
        %1566 = vmatpush1.bf16.msra.mxu0 0
        %1567 = vmatprep.subr.bf16.mxu0 0
        %1568 = vmatpush1.bf16.msra.mxu0 0
        %1569 = vmatprep.subr.bf16.mxu0 0
        %1570 = vmatpush1.bf16.msra.mxu0 0
        %1571 = vmatprep.subr.bf16.mxu0 0
        %1572 = vmatpush1.bf16.msra.mxu0 0
        %1573 = vmatprep.subr.bf16.mxu0 %v1557
        %1574 = vmatpush1.bf16.msra.mxu0 %v1554
        %1575 = vmatprep.subr.bf16.mxu0 0
        %1576 = vmatpush2.bf16.msra.mxu0 0
        %1577 = vmatprep.subr.bf16.mxu0 0
        %1578 = vmatpush2.bf16.msra.mxu0 0
        %1579 = vmatprep.subr.bf16.mxu0 0
        %1580 = vmatpush2.bf16.msra.mxu0 0
        %1581 = vmatprep.subr.bf16.mxu0 0
        %1582 = vmatpush2.bf16.msra.mxu0 0
        %1583 = vmatprep.subr.bf16.mxu0 0
        %1584 = vmatpush2.bf16.msra.mxu0 0
        %1585 = vmatprep.subr.bf16.mxu0 0
        %1586 = vmatpush2.bf16.msra.mxu0 0
        %1587 = vmatprep.subr.bf16.mxu0 0
        %1588 = vmatpush2.bf16.msra.mxu0 0
        %1589 = vmatprep.subr.bf16.mxu0 0
        %1590 = vmatpush2.bf16.msra.mxu0 0
        %1591 = vmatprep.mubr.bf16.mxu0 0
        %1592 = vmatmul.mubr.bf16.gmra.mxu0 %v1552
        %v1593 = vpop.f32.mrf.mxu0
        %v1594 = vadd.f32 0.0, %v1593
        %v1595 = vpop.f32.mrf.mxu0
        %v1596 = vadd.f32 0.0, %v1595
        %v1597 = vpop.f32.mrf.mxu0
        %v1598 = vpop.f32.mrf.mxu0
        %1599 = vdwg.mxu0
        %s1600 = scalar_lea.vmem %s4, 21
        %v1601 = vld [vmem:[%s1600] ss:$8 sm:$0x3]
        %v1603 = vlaneseq
        %v1604 = vshrl.u32 %v1603, 7
        %v1605 = vsub.s32 0, %v1604
        %v1606 = vrot.slane %v1601, %v1605
        %v1607 = vlaneseq
        %v1608 = vshrl.u32 %v1607, 7
        %v1609 = vsub.s32 1, %v1608
        %v1610 = vrot.slane %v1601, %v1609
        %v1613 = vmul.f32 %v1594, %v1606
        %v1614 = vmul.f32 %v1596, %v1610
        %v1615 = vadd.f32 %v1537, %v1613
        %v1616 = vadd.f32 %v1538, %v1614
        %1617 = vrot.lane.b32.xlu0 %v525, 19
        %v1618 = vpop.permute.xlu0 %1617
        %1619 = vrot.lane.b32.xlu0 %v524, 19
        %v1620 = vpop.permute.xlu0 %1619
        %vm1621 = vcmask 154624
        %v1622 = vsel %vm1621, %v1620, %v1618
        %vm1623 = vcmask 154624
        %v1626 = vsel %vm1623, %v1618, %v1620
        %s1627 = scalar_lea.vmem %s3, 28
        %v1628 = vld [vmem:[%s1627] sm:$0x3]
        %v1630 = vsel %vm539, %v1628, 0
        %v1632 = vsel %vm385, %v1626, 0
        %v1635 = vsel %vm385, %v1622, 0
        %1637 = vmatprep.subr.bf16.mxu0 0
        %1638 = vmatpush1.bf16.msra.mxu0 0
        %1639 = vmatprep.subr.bf16.mxu0 0
        %1640 = vmatpush1.bf16.msra.mxu0 0
        %1641 = vmatprep.subr.bf16.mxu0 0
        %1642 = vmatpush1.bf16.msra.mxu0 0
        %1643 = vmatprep.subr.bf16.mxu0 0
        %1644 = vmatpush1.bf16.msra.mxu0 0
        %1645 = vmatprep.subr.bf16.mxu0 0
        %1646 = vmatpush1.bf16.msra.mxu0 0
        %1647 = vmatprep.subr.bf16.mxu0 0
        %1648 = vmatpush1.bf16.msra.mxu0 0
        %1649 = vmatprep.subr.bf16.mxu0 0
        %1650 = vmatpush1.bf16.msra.mxu0 0
        %1651 = vmatprep.subr.bf16.mxu0 %v1635
        %1652 = vmatpush1.bf16.msra.mxu0 %v1632
        %1653 = vmatprep.subr.bf16.mxu0 0
        %1654 = vmatpush2.bf16.msra.mxu0 0
        %1655 = vmatprep.subr.bf16.mxu0 0
        %1656 = vmatpush2.bf16.msra.mxu0 0
        %1657 = vmatprep.subr.bf16.mxu0 0
        %1658 = vmatpush2.bf16.msra.mxu0 0
        %1659 = vmatprep.subr.bf16.mxu0 0
        %1660 = vmatpush2.bf16.msra.mxu0 0
        %1661 = vmatprep.subr.bf16.mxu0 0
        %1662 = vmatpush2.bf16.msra.mxu0 0
        %1663 = vmatprep.subr.bf16.mxu0 0
        %1664 = vmatpush2.bf16.msra.mxu0 0
        %1665 = vmatprep.subr.bf16.mxu0 0
        %1666 = vmatpush2.bf16.msra.mxu0 0
        %1667 = vmatprep.subr.bf16.mxu0 0
        %1668 = vmatpush2.bf16.msra.mxu0 0
        %1669 = vmatprep.mubr.bf16.mxu0 0
        %1670 = vmatmul.mubr.bf16.gmra.mxu0 %v1630
        %v1671 = vpop.f32.mrf.mxu0
        %v1672 = vadd.f32 0.0, %v1671
        %v1673 = vpop.f32.mrf.mxu0
        %v1674 = vadd.f32 0.0, %v1673
        %v1675 = vpop.f32.mrf.mxu0
        %v1676 = vpop.f32.mrf.mxu0
        %1677 = vdwg.mxu0
        %s1678 = scalar_lea.vmem %s4, 22
        %v1679 = vld [vmem:[%s1678] ss:$8 sm:$0x3]
        %v1681 = vlaneseq
        %v1682 = vshrl.u32 %v1681, 7
        %v1683 = vsub.s32 0, %v1682
        %v1684 = vrot.slane %v1679, %v1683
        %v1685 = vlaneseq
        %v1686 = vshrl.u32 %v1685, 7
        %v1687 = vsub.s32 1, %v1686
        %v1688 = vrot.slane %v1679, %v1687
        %v1691 = vmul.f32 %v1672, %v1684
        %v1692 = vmul.f32 %v1674, %v1688
        %v1693 = vadd.f32 %v1615, %v1691
        %v1694 = vadd.f32 %v1616, %v1692
        %1695 = vrot.lane.b32.xlu0 %v525, 18
        %v1696 = vpop.permute.xlu0 %1695
        %1697 = vrot.lane.b32.xlu0 %v524, 18
        %v1698 = vpop.permute.xlu0 %1697
        %vm1699 = vcmask 146432
        %v1700 = vsel %vm1699, %v1698, %v1696
        %vm1701 = vcmask 146432
        %v1704 = vsel %vm1701, %v1696, %v1698
        %s1705 = scalar_lea.vmem %s3, 30
        %v1706 = vld [vmem:[%s1705] sm:$0x3]
        %v1708 = vsel %vm539, %v1706, 0
        %v1710 = vsel %vm385, %v1704, 0
        %v1713 = vsel %vm385, %v1700, 0
        %1715 = vmatprep.subr.bf16.mxu0 0
        %1716 = vmatpush1.bf16.msra.mxu0 0
        %1717 = vmatprep.subr.bf16.mxu0 0
        %1718 = vmatpush1.bf16.msra.mxu0 0
        %1719 = vmatprep.subr.bf16.mxu0 0
        %1720 = vmatpush1.bf16.msra.mxu0 0
        %1721 = vmatprep.subr.bf16.mxu0 0
        %1722 = vmatpush1.bf16.msra.mxu0 0
        %1723 = vmatprep.subr.bf16.mxu0 0
        %1724 = vmatpush1.bf16.msra.mxu0 0
        %1725 = vmatprep.subr.bf16.mxu0 0
        %1726 = vmatpush1.bf16.msra.mxu0 0
        %1727 = vmatprep.subr.bf16.mxu0 0
        %1728 = vmatpush1.bf16.msra.mxu0 0
        %1729 = vmatprep.subr.bf16.mxu0 %v1713
        %1730 = vmatpush1.bf16.msra.mxu0 %v1710
        %1731 = vmatprep.subr.bf16.mxu0 0
        %1732 = vmatpush2.bf16.msra.mxu0 0
        %1733 = vmatprep.subr.bf16.mxu0 0
        %1734 = vmatpush2.bf16.msra.mxu0 0
        %1735 = vmatprep.subr.bf16.mxu0 0
        %1736 = vmatpush2.bf16.msra.mxu0 0
        %1737 = vmatprep.subr.bf16.mxu0 0
        %1738 = vmatpush2.bf16.msra.mxu0 0
        %1739 = vmatprep.subr.bf16.mxu0 0
        %1740 = vmatpush2.bf16.msra.mxu0 0
        %1741 = vmatprep.subr.bf16.mxu0 0
        %1742 = vmatpush2.bf16.msra.mxu0 0
        %1743 = vmatprep.subr.bf16.mxu0 0
        %1744 = vmatpush2.bf16.msra.mxu0 0
        %1745 = vmatprep.subr.bf16.mxu0 0
        %1746 = vmatpush2.bf16.msra.mxu0 0
        %1747 = vmatprep.mubr.bf16.mxu0 0
        %1748 = vmatmul.mubr.bf16.gmra.mxu0 %v1708
        %v1749 = vpop.f32.mrf.mxu0
        %v1750 = vadd.f32 0.0, %v1749
        %v1751 = vpop.f32.mrf.mxu0
        %v1752 = vadd.f32 0.0, %v1751
        %v1753 = vpop.f32.mrf.mxu0
        %v1754 = vpop.f32.mrf.mxu0
        %1755 = vdwg.mxu0
        %s1756 = scalar_lea.vmem %s4, 23
        %v1757 = vld [vmem:[%s1756] ss:$8 sm:$0x3]
        %v1759 = vlaneseq
        %v1760 = vshrl.u32 %v1759, 7
        %v1761 = vsub.s32 0, %v1760
        %v1762 = vrot.slane %v1757, %v1761
        %v1763 = vlaneseq
        %v1764 = vshrl.u32 %v1763, 7
        %v1765 = vsub.s32 1, %v1764
        %v1766 = vrot.slane %v1757, %v1765
        %v1769 = vmul.f32 %v1750, %v1762
        %v1770 = vmul.f32 %v1752, %v1766
        %v1771 = vadd.f32 %v1693, %v1769
        %v1772 = vadd.f32 %v1694, %v1770
        %1773 = vrot.lane.b32.xlu0 %v525, 17
        %v1774 = vpop.permute.xlu0 %1773
        %1775 = vrot.lane.b32.xlu0 %v524, 17
        %v1776 = vpop.permute.xlu0 %1775
        %vm1777 = vcmask 138240
        %v1778 = vsel %vm1777, %v1776, %v1774
        %vm1779 = vcmask 138240
        %v1782 = vsel %vm1779, %v1774, %v1776
        %s1783 = scalar_lea.vmem %s3, 32
        %v1784 = vld [vmem:[%s1783] sm:$0x3]
        %v1786 = vsel %vm539, %v1784, 0
        %v1788 = vsel %vm385, %v1782, 0
        %v1791 = vsel %vm385, %v1778, 0
        %1793 = vmatprep.subr.bf16.mxu0 0
        %1794 = vmatpush1.bf16.msra.mxu0 0
        %1795 = vmatprep.subr.bf16.mxu0 0
        %1796 = vmatpush1.bf16.msra.mxu0 0
        %1797 = vmatprep.subr.bf16.mxu0 0
        %1798 = vmatpush1.bf16.msra.mxu0 0
        %1799 = vmatprep.subr.bf16.mxu0 0
        %1800 = vmatpush1.bf16.msra.mxu0 0
        %1801 = vmatprep.subr.bf16.mxu0 0
        %1802 = vmatpush1.bf16.msra.mxu0 0
        %1803 = vmatprep.subr.bf16.mxu0 0
        %1804 = vmatpush1.bf16.msra.mxu0 0
        %1805 = vmatprep.subr.bf16.mxu0 0
        %1806 = vmatpush1.bf16.msra.mxu0 0
        %1807 = vmatprep.subr.bf16.mxu0 %v1791
        %1808 = vmatpush1.bf16.msra.mxu0 %v1788
        %1809 = vmatprep.subr.bf16.mxu0 0
        %1810 = vmatpush2.bf16.msra.mxu0 0
        %1811 = vmatprep.subr.bf16.mxu0 0
        %1812 = vmatpush2.bf16.msra.mxu0 0
        %1813 = vmatprep.subr.bf16.mxu0 0
        %1814 = vmatpush2.bf16.msra.mxu0 0
        %1815 = vmatprep.subr.bf16.mxu0 0
        %1816 = vmatpush2.bf16.msra.mxu0 0
        %1817 = vmatprep.subr.bf16.mxu0 0
        %1818 = vmatpush2.bf16.msra.mxu0 0
        %1819 = vmatprep.subr.bf16.mxu0 0
        %1820 = vmatpush2.bf16.msra.mxu0 0
        %1821 = vmatprep.subr.bf16.mxu0 0
        %1822 = vmatpush2.bf16.msra.mxu0 0
        %1823 = vmatprep.subr.bf16.mxu0 0
        %1824 = vmatpush2.bf16.msra.mxu0 0
        %1825 = vmatprep.mubr.bf16.mxu0 0
        %1826 = vmatmul.mubr.bf16.gmra.mxu0 %v1786
        %v1827 = vpop.f32.mrf.mxu0
        %v1828 = vadd.f32 0.0, %v1827
        %v1829 = vpop.f32.mrf.mxu0
        %v1830 = vadd.f32 0.0, %v1829
        %v1831 = vpop.f32.mrf.mxu0
        %v1832 = vpop.f32.mrf.mxu0
        %1833 = vdwg.mxu0
        %s1834 = scalar_lea.vmem %s4, 32
        %v1835 = vld [vmem:[%s1834] ss:$8 sm:$0x3]
        %v1837 = vlaneseq
        %v1838 = vshrl.u32 %v1837, 7
        %v1839 = vsub.s32 0, %v1838
        %v1840 = vrot.slane %v1835, %v1839
        %v1841 = vlaneseq
        %v1842 = vshrl.u32 %v1841, 7
        %v1843 = vsub.s32 1, %v1842
        %v1844 = vrot.slane %v1835, %v1843
        %v1847 = vmul.f32 %v1828, %v1840
        %v1848 = vmul.f32 %v1830, %v1844
        %v1849 = vadd.f32 %v1771, %v1847
        %v1850 = vadd.f32 %v1772, %v1848
        %1851 = vrot.lane.b32.xlu0 %v525, 16
        %v1852 = vpop.permute.xlu0 %1851
        %1853 = vrot.lane.b32.xlu0 %v524, 16
        %v1854 = vpop.permute.xlu0 %1853
        %vm1855 = vcmask 130048
        %v1856 = vsel %vm1855, %v1854, %v1852
        %vm1857 = vcmask 130048
        %v1860 = vsel %vm1857, %v1852, %v1854
        %s1861 = scalar_lea.vmem %s3, 34
        %v1862 = vld [vmem:[%s1861] sm:$0x3]
        %v1864 = vsel %vm539, %v1862, 0
        %v1866 = vsel %vm385, %v1860, 0
        %v1869 = vsel %vm385, %v1856, 0
        %1871 = vmatprep.subr.bf16.mxu0 0
        %1872 = vmatpush1.bf16.msra.mxu0 0
        %1873 = vmatprep.subr.bf16.mxu0 0
        %1874 = vmatpush1.bf16.msra.mxu0 0
        %1875 = vmatprep.subr.bf16.mxu0 0
        %1876 = vmatpush1.bf16.msra.mxu0 0
        %1877 = vmatprep.subr.bf16.mxu0 0
        %1878 = vmatpush1.bf16.msra.mxu0 0
        %1879 = vmatprep.subr.bf16.mxu0 0
        %1880 = vmatpush1.bf16.msra.mxu0 0
        %1881 = vmatprep.subr.bf16.mxu0 0
        %1882 = vmatpush1.bf16.msra.mxu0 0
        %1883 = vmatprep.subr.bf16.mxu0 0
        %1884 = vmatpush1.bf16.msra.mxu0 0
        %1885 = vmatprep.subr.bf16.mxu0 %v1869
        %1886 = vmatpush1.bf16.msra.mxu0 %v1866
        %1887 = vmatprep.subr.bf16.mxu0 0
        %1888 = vmatpush2.bf16.msra.mxu0 0
        %1889 = vmatprep.subr.bf16.mxu0 0
        %1890 = vmatpush2.bf16.msra.mxu0 0
        %1891 = vmatprep.subr.bf16.mxu0 0
        %1892 = vmatpush2.bf16.msra.mxu0 0
        %1893 = vmatprep.subr.bf16.mxu0 0
        %1894 = vmatpush2.bf16.msra.mxu0 0
        %1895 = vmatprep.subr.bf16.mxu0 0
        %1896 = vmatpush2.bf16.msra.mxu0 0
        %1897 = vmatprep.subr.bf16.mxu0 0
        %1898 = vmatpush2.bf16.msra.mxu0 0
        %1899 = vmatprep.subr.bf16.mxu0 0
        %1900 = vmatpush2.bf16.msra.mxu0 0
        %1901 = vmatprep.subr.bf16.mxu0 0
        %1902 = vmatpush2.bf16.msra.mxu0 0
        %1903 = vmatprep.mubr.bf16.mxu0 0
        %1904 = vmatmul.mubr.bf16.gmra.mxu0 %v1864
        %v1905 = vpop.f32.mrf.mxu0
        %v1906 = vadd.f32 0.0, %v1905
        %v1907 = vpop.f32.mrf.mxu0
        %v1908 = vadd.f32 0.0, %v1907
        %v1909 = vpop.f32.mrf.mxu0
        %v1910 = vpop.f32.mrf.mxu0
        %1911 = vdwg.mxu0
        %s1912 = scalar_lea.vmem %s4, 33
        %v1913 = vld [vmem:[%s1912] ss:$8 sm:$0x3]
        %v1915 = vlaneseq
        %v1916 = vshrl.u32 %v1915, 7
        %v1917 = vsub.s32 0, %v1916
        %v1918 = vrot.slane %v1913, %v1917
        %v1919 = vlaneseq
        %v1920 = vshrl.u32 %v1919, 7
        %v1921 = vsub.s32 1, %v1920
        %v1922 = vrot.slane %v1913, %v1921
        %v1925 = vmul.f32 %v1906, %v1918
        %v1926 = vmul.f32 %v1908, %v1922
        %v1927 = vadd.f32 %v1849, %v1925
        %v1928 = vadd.f32 %v1850, %v1926
        %1929 = vrot.lane.b32.xlu0 %v525, 15
        %v1930 = vpop.permute.xlu0 %1929
        %1931 = vrot.lane.b32.xlu0 %v524, 15
        %v1932 = vpop.permute.xlu0 %1931
        %vm1933 = vcmask 121856
        %v1934 = vsel %vm1933, %v1932, %v1930
        %vm1935 = vcmask 121856
        %v1938 = vsel %vm1935, %v1930, %v1932
        %s1939 = scalar_lea.vmem %s3, 36
        %v1940 = vld [vmem:[%s1939] sm:$0x3]
        %v1942 = vsel %vm539, %v1940, 0
        %v1944 = vsel %vm385, %v1938, 0
        %v1947 = vsel %vm385, %v1934, 0
        %1949 = vmatprep.subr.bf16.mxu0 0
        %1950 = vmatpush1.bf16.msra.mxu0 0
        %1951 = vmatprep.subr.bf16.mxu0 0
        %1952 = vmatpush1.bf16.msra.mxu0 0
        %1953 = vmatprep.subr.bf16.mxu0 0
        %1954 = vmatpush1.bf16.msra.mxu0 0
        %1955 = vmatprep.subr.bf16.mxu0 0
        %1956 = vmatpush1.bf16.msra.mxu0 0
        %1957 = vmatprep.subr.bf16.mxu0 0
        %1958 = vmatpush1.bf16.msra.mxu0 0
        %1959 = vmatprep.subr.bf16.mxu0 0
        %1960 = vmatpush1.bf16.msra.mxu0 0
        %1961 = vmatprep.subr.bf16.mxu0 0
        %1962 = vmatpush1.bf16.msra.mxu0 0
        %1963 = vmatprep.subr.bf16.mxu0 %v1947
        %1964 = vmatpush1.bf16.msra.mxu0 %v1944
        %1965 = vmatprep.subr.bf16.mxu0 0
        %1966 = vmatpush2.bf16.msra.mxu0 0
        %1967 = vmatprep.subr.bf16.mxu0 0
        %1968 = vmatpush2.bf16.msra.mxu0 0
        %1969 = vmatprep.subr.bf16.mxu0 0
        %1970 = vmatpush2.bf16.msra.mxu0 0
        %1971 = vmatprep.subr.bf16.mxu0 0
        %1972 = vmatpush2.bf16.msra.mxu0 0
        %1973 = vmatprep.subr.bf16.mxu0 0
        %1974 = vmatpush2.bf16.msra.mxu0 0
        %1975 = vmatprep.subr.bf16.mxu0 0
        %1976 = vmatpush2.bf16.msra.mxu0 0
        %1977 = vmatprep.subr.bf16.mxu0 0
        %1978 = vmatpush2.bf16.msra.mxu0 0
        %1979 = vmatprep.subr.bf16.mxu0 0
        %1980 = vmatpush2.bf16.msra.mxu0 0
        %1981 = vmatprep.mubr.bf16.mxu0 0
        %1982 = vmatmul.mubr.bf16.gmra.mxu0 %v1942
        %v1983 = vpop.f32.mrf.mxu0
        %v1984 = vadd.f32 0.0, %v1983
        %v1985 = vpop.f32.mrf.mxu0
        %v1986 = vadd.f32 0.0, %v1985
        %v1987 = vpop.f32.mrf.mxu0
        %v1988 = vpop.f32.mrf.mxu0
        %1989 = vdwg.mxu0
        %s1990 = scalar_lea.vmem %s4, 34
        %v1991 = vld [vmem:[%s1990] ss:$8 sm:$0x3]
        %v1993 = vlaneseq
        %v1994 = vshrl.u32 %v1993, 7
        %v1995 = vsub.s32 0, %v1994
        %v1996 = vrot.slane %v1991, %v1995
        %v1997 = vlaneseq
        %v1998 = vshrl.u32 %v1997, 7
        %v1999 = vsub.s32 1, %v1998
        %v2000 = vrot.slane %v1991, %v1999
        %v2003 = vmul.f32 %v1984, %v1996
        %v2004 = vmul.f32 %v1986, %v2000
        %v2005 = vadd.f32 %v1927, %v2003
        %v2006 = vadd.f32 %v1928, %v2004
        %2007 = vrot.lane.b32.xlu0 %v525, 14
        %v2008 = vpop.permute.xlu0 %2007
        %2009 = vrot.lane.b32.xlu0 %v524, 14
        %v2010 = vpop.permute.xlu0 %2009
        %vm2011 = vcmask 113664
        %v2012 = vsel %vm2011, %v2010, %v2008
        %vm2013 = vcmask 113664
        %v2016 = vsel %vm2013, %v2008, %v2010
        %s2017 = scalar_lea.vmem %s3, 38
        %v2018 = vld [vmem:[%s2017] sm:$0x3]
        %v2020 = vsel %vm539, %v2018, 0
        %v2022 = vsel %vm385, %v2016, 0
        %v2025 = vsel %vm385, %v2012, 0
        %2027 = vmatprep.subr.bf16.mxu0 0
        %2028 = vmatpush1.bf16.msra.mxu0 0
        %2029 = vmatprep.subr.bf16.mxu0 0
        %2030 = vmatpush1.bf16.msra.mxu0 0
        %2031 = vmatprep.subr.bf16.mxu0 0
        %2032 = vmatpush1.bf16.msra.mxu0 0
        %2033 = vmatprep.subr.bf16.mxu0 0
        %2034 = vmatpush1.bf16.msra.mxu0 0
        %2035 = vmatprep.subr.bf16.mxu0 0
        %2036 = vmatpush1.bf16.msra.mxu0 0
        %2037 = vmatprep.subr.bf16.mxu0 0
        %2038 = vmatpush1.bf16.msra.mxu0 0
        %2039 = vmatprep.subr.bf16.mxu0 0
        %2040 = vmatpush1.bf16.msra.mxu0 0
        %2041 = vmatprep.subr.bf16.mxu0 %v2025
        %2042 = vmatpush1.bf16.msra.mxu0 %v2022
        %2043 = vmatprep.subr.bf16.mxu0 0
        %2044 = vmatpush2.bf16.msra.mxu0 0
        %2045 = vmatprep.subr.bf16.mxu0 0
        %2046 = vmatpush2.bf16.msra.mxu0 0
        %2047 = vmatprep.subr.bf16.mxu0 0
        %2048 = vmatpush2.bf16.msra.mxu0 0
        %2049 = vmatprep.subr.bf16.mxu0 0
        %2050 = vmatpush2.bf16.msra.mxu0 0
        %2051 = vmatprep.subr.bf16.mxu0 0
        %2052 = vmatpush2.bf16.msra.mxu0 0
        %2053 = vmatprep.subr.bf16.mxu0 0
        %2054 = vmatpush2.bf16.msra.mxu0 0
        %2055 = vmatprep.subr.bf16.mxu0 0
        %2056 = vmatpush2.bf16.msra.mxu0 0
        %2057 = vmatprep.subr.bf16.mxu0 0
        %2058 = vmatpush2.bf16.msra.mxu0 0
        %2059 = vmatprep.mubr.bf16.mxu0 0
        %2060 = vmatmul.mubr.bf16.gmra.mxu0 %v2020
        %v2061 = vpop.f32.mrf.mxu0
        %v2062 = vadd.f32 0.0, %v2061
        %v2063 = vpop.f32.mrf.mxu0
        %v2064 = vadd.f32 0.0, %v2063
        %v2065 = vpop.f32.mrf.mxu0
        %v2066 = vpop.f32.mrf.mxu0
        %2067 = vdwg.mxu0
        %s2068 = scalar_lea.vmem %s4, 35
        %v2069 = vld [vmem:[%s2068] ss:$8 sm:$0x3]
        %v2071 = vlaneseq
        %v2072 = vshrl.u32 %v2071, 7
        %v2073 = vsub.s32 0, %v2072
        %v2074 = vrot.slane %v2069, %v2073
        %v2075 = vlaneseq
        %v2076 = vshrl.u32 %v2075, 7
        %v2077 = vsub.s32 1, %v2076
        %v2078 = vrot.slane %v2069, %v2077
        %v2081 = vmul.f32 %v2062, %v2074
        %v2082 = vmul.f32 %v2064, %v2078
        %v2083 = vadd.f32 %v2005, %v2081
        %v2084 = vadd.f32 %v2006, %v2082
        %2085 = vrot.lane.b32.xlu0 %v525, 13
        %v2086 = vpop.permute.xlu0 %2085
        %2087 = vrot.lane.b32.xlu0 %v524, 13
        %v2088 = vpop.permute.xlu0 %2087
        %vm2089 = vcmask 105472
        %v2090 = vsel %vm2089, %v2088, %v2086
        %vm2091 = vcmask 105472
        %v2094 = vsel %vm2091, %v2086, %v2088
        %s2095 = scalar_lea.vmem %s3, 40
        %v2096 = vld [vmem:[%s2095] sm:$0x3]
        %v2098 = vsel %vm539, %v2096, 0
        %v2100 = vsel %vm385, %v2094, 0
        %v2103 = vsel %vm385, %v2090, 0
        %2105 = vmatprep.subr.bf16.mxu0 0
        %2106 = vmatpush1.bf16.msra.mxu0 0
        %2107 = vmatprep.subr.bf16.mxu0 0
        %2108 = vmatpush1.bf16.msra.mxu0 0
        %2109 = vmatprep.subr.bf16.mxu0 0
        %2110 = vmatpush1.bf16.msra.mxu0 0
        %2111 = vmatprep.subr.bf16.mxu0 0
        %2112 = vmatpush1.bf16.msra.mxu0 0
        %2113 = vmatprep.subr.bf16.mxu0 0
        %2114 = vmatpush1.bf16.msra.mxu0 0
        %2115 = vmatprep.subr.bf16.mxu0 0
        %2116 = vmatpush1.bf16.msra.mxu0 0
        %2117 = vmatprep.subr.bf16.mxu0 0
        %2118 = vmatpush1.bf16.msra.mxu0 0
        %2119 = vmatprep.subr.bf16.mxu0 %v2103
        %2120 = vmatpush1.bf16.msra.mxu0 %v2100
        %2121 = vmatprep.subr.bf16.mxu0 0
        %2122 = vmatpush2.bf16.msra.mxu0 0
        %2123 = vmatprep.subr.bf16.mxu0 0
        %2124 = vmatpush2.bf16.msra.mxu0 0
        %2125 = vmatprep.subr.bf16.mxu0 0
        %2126 = vmatpush2.bf16.msra.mxu0 0
        %2127 = vmatprep.subr.bf16.mxu0 0
        %2128 = vmatpush2.bf16.msra.mxu0 0
        %2129 = vmatprep.subr.bf16.mxu0 0
        %2130 = vmatpush2.bf16.msra.mxu0 0
        %2131 = vmatprep.subr.bf16.mxu0 0
        %2132 = vmatpush2.bf16.msra.mxu0 0
        %2133 = vmatprep.subr.bf16.mxu0 0
        %2134 = vmatpush2.bf16.msra.mxu0 0
        %2135 = vmatprep.subr.bf16.mxu0 0
        %2136 = vmatpush2.bf16.msra.mxu0 0
        %2137 = vmatprep.mubr.bf16.mxu0 0
        %2138 = vmatmul.mubr.bf16.gmra.mxu0 %v2098
        %v2139 = vpop.f32.mrf.mxu0
        %v2140 = vadd.f32 0.0, %v2139
        %v2141 = vpop.f32.mrf.mxu0
        %v2142 = vadd.f32 0.0, %v2141
        %v2143 = vpop.f32.mrf.mxu0
        %v2144 = vpop.f32.mrf.mxu0
        %2145 = vdwg.mxu0
        %s2146 = scalar_lea.vmem %s4, 36
        %v2147 = vld [vmem:[%s2146] ss:$8 sm:$0x3]
        %v2149 = vlaneseq
        %v2150 = vshrl.u32 %v2149, 7
        %v2151 = vsub.s32 0, %v2150
        %v2152 = vrot.slane %v2147, %v2151
        %v2153 = vlaneseq
        %v2154 = vshrl.u32 %v2153, 7
        %v2155 = vsub.s32 1, %v2154
        %v2156 = vrot.slane %v2147, %v2155
        %v2159 = vmul.f32 %v2140, %v2152
        %v2160 = vmul.f32 %v2142, %v2156
        %v2161 = vadd.f32 %v2083, %v2159
        %v2162 = vadd.f32 %v2084, %v2160
        %2163 = vrot.lane.b32.xlu0 %v525, 3
        %v2164 = vpop.permute.xlu0 %2163
        %2165 = vrot.lane.b32.xlu0 %v524, 3
        %v2166 = vpop.permute.xlu0 %2165
        %vm2167 = vcmask 23552
        %v2168 = vsel %vm2167, %v2166, %v2164
        %vm2169 = vcmask 23552
        %v2172 = vsel %vm2169, %v2164, %v2166
        %s2173 = scalar_lea.vmem %s3, 42
        %v2174 = vld [vmem:[%s2173] sm:$0x3]
        %v2176 = vsel %vm539, %v2174, 0
        %v2178 = vsel %vm385, %v2172, 0
        %v2181 = vsel %vm385, %v2168, 0
        %2183 = vmatprep.subr.bf16.mxu0 0
        %2184 = vmatpush1.bf16.msra.mxu0 0
        %2185 = vmatprep.subr.bf16.mxu0 0
        %2186 = vmatpush1.bf16.msra.mxu0 0
        %2187 = vmatprep.subr.bf16.mxu0 0
        %2188 = vmatpush1.bf16.msra.mxu0 0
        %2189 = vmatprep.subr.bf16.mxu0 0
        %2190 = vmatpush1.bf16.msra.mxu0 0
        %2191 = vmatprep.subr.bf16.mxu0 0
        %2192 = vmatpush1.bf16.msra.mxu0 0
        %2193 = vmatprep.subr.bf16.mxu0 0
        %2194 = vmatpush1.bf16.msra.mxu0 0
        %2195 = vmatprep.subr.bf16.mxu0 0
        %2196 = vmatpush1.bf16.msra.mxu0 0
        %2197 = vmatprep.subr.bf16.mxu0 %v2181
        %2198 = vmatpush1.bf16.msra.mxu0 %v2178
        %2199 = vmatprep.subr.bf16.mxu0 0
        %2200 = vmatpush2.bf16.msra.mxu0 0
        %2201 = vmatprep.subr.bf16.mxu0 0
        %2202 = vmatpush2.bf16.msra.mxu0 0
        %2203 = vmatprep.subr.bf16.mxu0 0
        %2204 = vmatpush2.bf16.msra.mxu0 0
        %2205 = vmatprep.subr.bf16.mxu0 0
        %2206 = vmatpush2.bf16.msra.mxu0 0
        %2207 = vmatprep.subr.bf16.mxu0 0
        %2208 = vmatpush2.bf16.msra.mxu0 0
        %2209 = vmatprep.subr.bf16.mxu0 0
        %2210 = vmatpush2.bf16.msra.mxu0 0
        %2211 = vmatprep.subr.bf16.mxu0 0
        %2212 = vmatpush2.bf16.msra.mxu0 0
        %2213 = vmatprep.subr.bf16.mxu0 0
        %2214 = vmatpush2.bf16.msra.mxu0 0
        %2215 = vmatprep.mubr.bf16.mxu0 0
        %2216 = vmatmul.mubr.bf16.gmra.mxu0 %v2176
        %v2217 = vpop.f32.mrf.mxu0
        %v2218 = vadd.f32 0.0, %v2217
        %v2219 = vpop.f32.mrf.mxu0
        %v2220 = vadd.f32 0.0, %v2219
        %v2221 = vpop.f32.mrf.mxu0
        %v2222 = vpop.f32.mrf.mxu0
        %2223 = vdwg.mxu0
        %s2224 = scalar_lea.vmem %s4, 37
        %v2225 = vld [vmem:[%s2224] ss:$8 sm:$0x3]
        %v2227 = vlaneseq
        %v2228 = vshrl.u32 %v2227, 7
        %v2229 = vsub.s32 0, %v2228
        %v2230 = vrot.slane %v2225, %v2229
        %v2231 = vlaneseq
        %v2232 = vshrl.u32 %v2231, 7
        %v2233 = vsub.s32 1, %v2232
        %v2234 = vrot.slane %v2225, %v2233
        %v2237 = vmul.f32 %v2218, %v2230
        %v2238 = vmul.f32 %v2220, %v2234
        %v2239 = vadd.f32 %v2161, %v2237
        %v2240 = vadd.f32 %v2162, %v2238
        %2241 = vrot.lane.b32.xlu0 %v525, 2
        %v2242 = vpop.permute.xlu0 %2241
        %2243 = vrot.lane.b32.xlu0 %v524, 2
        %v2244 = vpop.permute.xlu0 %2243
        %vm2245 = vcmask 15360
        %v2246 = vsel %vm2245, %v2244, %v2242
        %vm2247 = vcmask 15360
        %v2250 = vsel %vm2247, %v2242, %v2244
        %s2251 = scalar_lea.vmem %s3, 44
        %v2252 = vld [vmem:[%s2251] sm:$0x3]
        %v2254 = vsel %vm539, %v2252, 0
        %v2256 = vsel %vm385, %v2250, 0
        %v2259 = vsel %vm385, %v2246, 0
        %2261 = vmatprep.subr.bf16.mxu0 0
        %2262 = vmatpush1.bf16.msra.mxu0 0
        %2263 = vmatprep.subr.bf16.mxu0 0
        %2264 = vmatpush1.bf16.msra.mxu0 0
        %2265 = vmatprep.subr.bf16.mxu0 0
        %2266 = vmatpush1.bf16.msra.mxu0 0
        %2267 = vmatprep.subr.bf16.mxu0 0
        %2268 = vmatpush1.bf16.msra.mxu0 0
        %2269 = vmatprep.subr.bf16.mxu0 0
        %2270 = vmatpush1.bf16.msra.mxu0 0
        %2271 = vmatprep.subr.bf16.mxu0 0
        %2272 = vmatpush1.bf16.msra.mxu0 0
        %2273 = vmatprep.subr.bf16.mxu0 0
        %2274 = vmatpush1.bf16.msra.mxu0 0
        %2275 = vmatprep.subr.bf16.mxu0 %v2259
        %2276 = vmatpush1.bf16.msra.mxu0 %v2256
        %2277 = vmatprep.subr.bf16.mxu0 0
        %2278 = vmatpush2.bf16.msra.mxu0 0
        %2279 = vmatprep.subr.bf16.mxu0 0
        %2280 = vmatpush2.bf16.msra.mxu0 0
        %2281 = vmatprep.subr.bf16.mxu0 0
        %2282 = vmatpush2.bf16.msra.mxu0 0
        %2283 = vmatprep.subr.bf16.mxu0 0
        %2284 = vmatpush2.bf16.msra.mxu0 0
        %2285 = vmatprep.subr.bf16.mxu0 0
        %2286 = vmatpush2.bf16.msra.mxu0 0
        %2287 = vmatprep.subr.bf16.mxu0 0
        %2288 = vmatpush2.bf16.msra.mxu0 0
        %2289 = vmatprep.subr.bf16.mxu0 0
        %2290 = vmatpush2.bf16.msra.mxu0 0
        %2291 = vmatprep.subr.bf16.mxu0 0
        %2292 = vmatpush2.bf16.msra.mxu0 0
        %2293 = vmatprep.mubr.bf16.mxu0 0
        %2294 = vmatmul.mubr.bf16.gmra.mxu0 %v2254
        %v2295 = vpop.f32.mrf.mxu0
        %v2296 = vadd.f32 0.0, %v2295
        %v2297 = vpop.f32.mrf.mxu0
        %v2298 = vadd.f32 0.0, %v2297
        %v2299 = vpop.f32.mrf.mxu0
        %v2300 = vpop.f32.mrf.mxu0
        %2301 = vdwg.mxu0
        %s2302 = scalar_lea.vmem %s4, 38
        %v2303 = vld [vmem:[%s2302] ss:$8 sm:$0x3]
        %v2305 = vlaneseq
        %v2306 = vshrl.u32 %v2305, 7
        %v2307 = vsub.s32 0, %v2306
        %v2308 = vrot.slane %v2303, %v2307
        %v2309 = vlaneseq
        %v2310 = vshrl.u32 %v2309, 7
        %v2311 = vsub.s32 1, %v2310
        %v2312 = vrot.slane %v2303, %v2311
        %v2315 = vmul.f32 %v2296, %v2308
        %v2316 = vmul.f32 %v2298, %v2312
        %v2317 = vadd.f32 %v2239, %v2315
        %v2318 = vadd.f32 %v2240, %v2316
        %2319 = vrot.lane.b32.xlu0 %v525, 1
        %v2320 = vpop.permute.xlu0 %2319
        %2321 = vrot.lane.b32.xlu0 %v524, 1
        %v2322 = vpop.permute.xlu0 %2321
        %vm2323 = vcmask 7168
        %v2324 = vsel %vm2323, %v2322, %v2320
        %vm2325 = vcmask 7168
        %v2328 = vsel %vm2325, %v2320, %v2322
        %s2329 = scalar_lea.vmem %s3, 46
        %v2330 = vld [vmem:[%s2329] sm:$0x3]
        %v2332 = vsel %vm539, %v2330, 0
        %v2334 = vsel %vm385, %v2328, 0
        %v2337 = vsel %vm385, %v2324, 0
        %2339 = vmatprep.subr.bf16.mxu0 0
        %2340 = vmatpush1.bf16.msra.mxu0 0
        %2341 = vmatprep.subr.bf16.mxu0 0
        %2342 = vmatpush1.bf16.msra.mxu0 0
        %2343 = vmatprep.subr.bf16.mxu0 0
        %2344 = vmatpush1.bf16.msra.mxu0 0
        %2345 = vmatprep.subr.bf16.mxu0 0
        %2346 = vmatpush1.bf16.msra.mxu0 0
        %2347 = vmatprep.subr.bf16.mxu0 0
        %2348 = vmatpush1.bf16.msra.mxu0 0
        %2349 = vmatprep.subr.bf16.mxu0 0
        %2350 = vmatpush1.bf16.msra.mxu0 0
        %2351 = vmatprep.subr.bf16.mxu0 0
        %2352 = vmatpush1.bf16.msra.mxu0 0
        %2353 = vmatprep.subr.bf16.mxu0 %v2337
        %2354 = vmatpush1.bf16.msra.mxu0 %v2334
        %2355 = vmatprep.subr.bf16.mxu0 0
        %2356 = vmatpush2.bf16.msra.mxu0 0
        %2357 = vmatprep.subr.bf16.mxu0 0
        %2358 = vmatpush2.bf16.msra.mxu0 0
        %2359 = vmatprep.subr.bf16.mxu0 0
        %2360 = vmatpush2.bf16.msra.mxu0 0
        %2361 = vmatprep.subr.bf16.mxu0 0
        %2362 = vmatpush2.bf16.msra.mxu0 0
        %2363 = vmatprep.subr.bf16.mxu0 0
        %2364 = vmatpush2.bf16.msra.mxu0 0
        %2365 = vmatprep.subr.bf16.mxu0 0
        %2366 = vmatpush2.bf16.msra.mxu0 0
        %2367 = vmatprep.subr.bf16.mxu0 0
        %2368 = vmatpush2.bf16.msra.mxu0 0
        %2369 = vmatprep.subr.bf16.mxu0 0
        %2370 = vmatpush2.bf16.msra.mxu0 0
        %2371 = vmatprep.mubr.bf16.mxu0 0
        %2372 = vmatmul.mubr.bf16.gmra.mxu0 %v2332
        %v2373 = vpop.f32.mrf.mxu0
        %v2374 = vadd.f32 0.0, %v2373
        %v2375 = vpop.f32.mrf.mxu0
        %v2376 = vadd.f32 0.0, %v2375
        %v2377 = vpop.f32.mrf.mxu0
        %v2378 = vpop.f32.mrf.mxu0
        %2379 = vdwg.mxu0
        %s2380 = scalar_lea.vmem %s4, 39
        %v2381 = vld [vmem:[%s2380] ss:$8 sm:$0x3]
        %v2383 = vlaneseq
        %v2384 = vshrl.u32 %v2383, 7
        %v2385 = vsub.s32 0, %v2384
        %v2386 = vrot.slane %v2381, %v2385
        %v2387 = vlaneseq
        %v2388 = vshrl.u32 %v2387, 7
        %v2389 = vsub.s32 1, %v2388
        %v2390 = vrot.slane %v2381, %v2389
        %v2393 = vmul.f32 %v2374, %v2386
        %v2394 = vmul.f32 %v2376, %v2390
        %v2395 = vadd.f32 %v2317, %v2393
        %v2396 = vadd.f32 %v2318, %v2394
        %s2397 = scalar_lea.vmem %s3, 48
        %v2398 = vld [vmem:[%s2397] sm:$0x3]
        %v2400 = vsel %vm539, %v2398, 0
        %v2403 = vsel %vm385, %v524, 0
        %v2406 = vsel %vm385, %v525, 0
        %2408 = vmatprep.subr.bf16.mxu0 0
        %2409 = vmatpush1.bf16.msra.mxu0 0
        %2410 = vmatprep.subr.bf16.mxu0 0
        %2411 = vmatpush1.bf16.msra.mxu0 0
        %2412 = vmatprep.subr.bf16.mxu0 0
        %2413 = vmatpush1.bf16.msra.mxu0 0
        %2414 = vmatprep.subr.bf16.mxu0 0
        %2415 = vmatpush1.bf16.msra.mxu0 0
        %2416 = vmatprep.subr.bf16.mxu0 0
        %2417 = vmatpush1.bf16.msra.mxu0 0
        %2418 = vmatprep.subr.bf16.mxu0 0
        %2419 = vmatpush1.bf16.msra.mxu0 0
        %2420 = vmatprep.subr.bf16.mxu0 0
        %2421 = vmatpush1.bf16.msra.mxu0 0
        %2422 = vmatprep.subr.bf16.mxu0 %v2406
        %2423 = vmatpush1.bf16.msra.mxu0 %v2403
        %2424 = vmatprep.subr.bf16.mxu0 0
        %2425 = vmatpush2.bf16.msra.mxu0 0
        %2426 = vmatprep.subr.bf16.mxu0 0
        %2427 = vmatpush2.bf16.msra.mxu0 0
        %2428 = vmatprep.subr.bf16.mxu0 0
        %2429 = vmatpush2.bf16.msra.mxu0 0
        %2430 = vmatprep.subr.bf16.mxu0 0
        %2431 = vmatpush2.bf16.msra.mxu0 0
        %2432 = vmatprep.subr.bf16.mxu0 0
        %2433 = vmatpush2.bf16.msra.mxu0 0
        %2434 = vmatprep.subr.bf16.mxu0 0
        %2435 = vmatpush2.bf16.msra.mxu0 0
        %2436 = vmatprep.subr.bf16.mxu0 0
        %2437 = vmatpush2.bf16.msra.mxu0 0
        %2438 = vmatprep.subr.bf16.mxu0 0
        %2439 = vmatpush2.bf16.msra.mxu0 0
        %2440 = vmatprep.mubr.bf16.mxu0 0
        %2441 = vmatmul.mubr.bf16.gmra.mxu0 %v2400
        %v2442 = vpop.f32.mrf.mxu0
        %v2443 = vadd.f32 0.0, %v2442
        %v2444 = vpop.f32.mrf.mxu0
        %v2445 = vadd.f32 0.0, %v2444
        %v2446 = vpop.f32.mrf.mxu0
        %v2447 = vpop.f32.mrf.mxu0
        %2448 = vdwg.mxu0
        %v2449 = vadd.f32 %v2395, %v2443
        %v2450 = vadd.f32 %v2396, %v2445
        %2451 = vrot.lane.b32.xlu0 %v524, 127
        %v2452 = vpop.permute.xlu0 %2451
        %2453 = vrot.lane.b32.xlu0 %v525, 127
        %v2454 = vpop.permute.xlu0 %2453
        %vm2455 = vcmask 1039360
        %v2456 = vsel %vm2455, %v2452, %v2454
        %vm2457 = vcmask 1039360
        %v2460 = vsel %vm2457, %v2454, %v2452
        %s2461 = scalar_lea.vmem %s3, 50
        %v2462 = vld [vmem:[%s2461] sm:$0x3]
        %v2464 = vsel %vm539, %v2462, 0
        %v2467 = vsel %vm385, %v2456, 0
        %v2469 = vsel %vm385, %v2460, 0
        %2471 = vmatprep.subr.bf16.mxu0 0
        %2472 = vmatpush1.bf16.msra.mxu0 0
        %2473 = vmatprep.subr.bf16.mxu0 0
        %2474 = vmatpush1.bf16.msra.mxu0 0
        %2475 = vmatprep.subr.bf16.mxu0 0
        %2476 = vmatpush1.bf16.msra.mxu0 0
        %2477 = vmatprep.subr.bf16.mxu0 0
        %2478 = vmatpush1.bf16.msra.mxu0 0
        %2479 = vmatprep.subr.bf16.mxu0 0
        %2480 = vmatpush1.bf16.msra.mxu0 0
        %2481 = vmatprep.subr.bf16.mxu0 0
        %2482 = vmatpush1.bf16.msra.mxu0 0
        %2483 = vmatprep.subr.bf16.mxu0 0
        %2484 = vmatpush1.bf16.msra.mxu0 0
        %2485 = vmatprep.subr.bf16.mxu0 %v2469
        %2486 = vmatpush1.bf16.msra.mxu0 %v2467
        %2487 = vmatprep.subr.bf16.mxu0 0
        %2488 = vmatpush2.bf16.msra.mxu0 0
        %2489 = vmatprep.subr.bf16.mxu0 0
        %2490 = vmatpush2.bf16.msra.mxu0 0
        %2491 = vmatprep.subr.bf16.mxu0 0
        %2492 = vmatpush2.bf16.msra.mxu0 0
        %2493 = vmatprep.subr.bf16.mxu0 0
        %2494 = vmatpush2.bf16.msra.mxu0 0
        %2495 = vmatprep.subr.bf16.mxu0 0
        %2496 = vmatpush2.bf16.msra.mxu0 0
        %2497 = vmatprep.subr.bf16.mxu0 0
        %2498 = vmatpush2.bf16.msra.mxu0 0
        %2499 = vmatprep.subr.bf16.mxu0 0
        %2500 = vmatpush2.bf16.msra.mxu0 0
        %2501 = vmatprep.subr.bf16.mxu0 0
        %2502 = vmatpush2.bf16.msra.mxu0 0
        %2503 = vmatprep.mubr.bf16.mxu0 0
        %2504 = vmatmul.mubr.bf16.gmra.mxu0 %v2464
        %v2505 = vpop.f32.mrf.mxu0
        %v2506 = vadd.f32 0.0, %v2505
        %v2507 = vpop.f32.mrf.mxu0
        %v2508 = vadd.f32 0.0, %v2507
        %v2509 = vpop.f32.mrf.mxu0
        %v2510 = vpop.f32.mrf.mxu0
        %2511 = vdwg.mxu0
        %s2512 = scalar_lea.vmem %s4, 49
        %v2513 = vld [vmem:[%s2512] ss:$8 sm:$0x3]
        %v2515 = vlaneseq
        %v2516 = vshrl.u32 %v2515, 7
        %v2517 = vsub.s32 0, %v2516
        %v2518 = vrot.slane %v2513, %v2517
        %v2519 = vlaneseq
        %v2520 = vshrl.u32 %v2519, 7
        %v2521 = vsub.s32 1, %v2520
        %v2522 = vrot.slane %v2513, %v2521
        %v2525 = vmul.f32 %v2506, %v2518
        %v2526 = vmul.f32 %v2508, %v2522
        %v2527 = vadd.f32 %v2449, %v2525
        %v2528 = vadd.f32 %v2450, %v2526
        %2529 = vrot.lane.b32.xlu0 %v524, 126
        %v2530 = vpop.permute.xlu0 %2529
        %2531 = vrot.lane.b32.xlu0 %v525, 126
        %v2532 = vpop.permute.xlu0 %2531
        %vm2533 = vcmask 1031168
        %v2534 = vsel %vm2533, %v2530, %v2532
        %vm2535 = vcmask 1031168
        %v2538 = vsel %vm2535, %v2532, %v2530
        %s2539 = scalar_lea.vmem %s3, 52
        %v2540 = vld [vmem:[%s2539] sm:$0x3]
        %v2542 = vsel %vm539, %v2540, 0
        %v2545 = vsel %vm385, %v2534, 0
        %v2547 = vsel %vm385, %v2538, 0
        %2549 = vmatprep.subr.bf16.mxu0 0
        %2550 = vmatpush1.bf16.msra.mxu0 0
        %2551 = vmatprep.subr.bf16.mxu0 0
        %2552 = vmatpush1.bf16.msra.mxu0 0
        %2553 = vmatprep.subr.bf16.mxu0 0
        %2554 = vmatpush1.bf16.msra.mxu0 0
        %2555 = vmatprep.subr.bf16.mxu0 0
        %2556 = vmatpush1.bf16.msra.mxu0 0
        %2557 = vmatprep.subr.bf16.mxu0 0
        %2558 = vmatpush1.bf16.msra.mxu0 0
        %2559 = vmatprep.subr.bf16.mxu0 0
        %2560 = vmatpush1.bf16.msra.mxu0 0
        %2561 = vmatprep.subr.bf16.mxu0 0
        %2562 = vmatpush1.bf16.msra.mxu0 0
        %2563 = vmatprep.subr.bf16.mxu0 %v2547
        %2564 = vmatpush1.bf16.msra.mxu0 %v2545
        %2565 = vmatprep.subr.bf16.mxu0 0
        %2566 = vmatpush2.bf16.msra.mxu0 0
        %2567 = vmatprep.subr.bf16.mxu0 0
        %2568 = vmatpush2.bf16.msra.mxu0 0
        %2569 = vmatprep.subr.bf16.mxu0 0
        %2570 = vmatpush2.bf16.msra.mxu0 0
        %2571 = vmatprep.subr.bf16.mxu0 0
        %2572 = vmatpush2.bf16.msra.mxu0 0
        %2573 = vmatprep.subr.bf16.mxu0 0
        %2574 = vmatpush2.bf16.msra.mxu0 0
        %2575 = vmatprep.subr.bf16.mxu0 0
        %2576 = vmatpush2.bf16.msra.mxu0 0
        %2577 = vmatprep.subr.bf16.mxu0 0
        %2578 = vmatpush2.bf16.msra.mxu0 0
        %2579 = vmatprep.subr.bf16.mxu0 0
        %2580 = vmatpush2.bf16.msra.mxu0 0
        %2581 = vmatprep.mubr.bf16.mxu0 0
        %2582 = vmatmul.mubr.bf16.gmra.mxu0 %v2542
        %v2583 = vpop.f32.mrf.mxu0
        %v2584 = vadd.f32 0.0, %v2583
        %v2585 = vpop.f32.mrf.mxu0
        %v2586 = vadd.f32 0.0, %v2585
        %v2587 = vpop.f32.mrf.mxu0
        %v2588 = vpop.f32.mrf.mxu0
        %2589 = vdwg.mxu0
        %s2590 = scalar_lea.vmem %s4, 50
        %v2591 = vld [vmem:[%s2590] ss:$8 sm:$0x3]
        %v2593 = vlaneseq
        %v2594 = vshrl.u32 %v2593, 7
        %v2595 = vsub.s32 0, %v2594
        %v2596 = vrot.slane %v2591, %v2595
        %v2597 = vlaneseq
        %v2598 = vshrl.u32 %v2597, 7
        %v2599 = vsub.s32 1, %v2598
        %v2600 = vrot.slane %v2591, %v2599
        %v2603 = vmul.f32 %v2584, %v2596
        %v2604 = vmul.f32 %v2586, %v2600
        %v2605 = vadd.f32 %v2527, %v2603
        %v2606 = vadd.f32 %v2528, %v2604
        %2607 = vrot.lane.b32.xlu0 %v524, 125
        %v2608 = vpop.permute.xlu0 %2607
        %2609 = vrot.lane.b32.xlu0 %v525, 125
        %v2610 = vpop.permute.xlu0 %2609
        %vm2611 = vcmask 1022976
        %v2612 = vsel %vm2611, %v2608, %v2610
        %vm2613 = vcmask 1022976
        %v2616 = vsel %vm2613, %v2610, %v2608
        %s2617 = scalar_lea.vmem %s3, 54
        %v2618 = vld [vmem:[%s2617] sm:$0x3]
        %v2620 = vsel %vm539, %v2618, 0
        %v2623 = vsel %vm385, %v2612, 0
        %v2625 = vsel %vm385, %v2616, 0
        %2627 = vmatprep.subr.bf16.mxu0 0
        %2628 = vmatpush1.bf16.msra.mxu0 0
        %2629 = vmatprep.subr.bf16.mxu0 0
        %2630 = vmatpush1.bf16.msra.mxu0 0
        %2631 = vmatprep.subr.bf16.mxu0 0
        %2632 = vmatpush1.bf16.msra.mxu0 0
        %2633 = vmatprep.subr.bf16.mxu0 0
        %2634 = vmatpush1.bf16.msra.mxu0 0
        %2635 = vmatprep.subr.bf16.mxu0 0
        %2636 = vmatpush1.bf16.msra.mxu0 0
        %2637 = vmatprep.subr.bf16.mxu0 0
        %2638 = vmatpush1.bf16.msra.mxu0 0
        %2639 = vmatprep.subr.bf16.mxu0 0
        %2640 = vmatpush1.bf16.msra.mxu0 0
        %2641 = vmatprep.subr.bf16.mxu0 %v2625
        %2642 = vmatpush1.bf16.msra.mxu0 %v2623
        %2643 = vmatprep.subr.bf16.mxu0 0
        %2644 = vmatpush2.bf16.msra.mxu0 0
        %2645 = vmatprep.subr.bf16.mxu0 0
        %2646 = vmatpush2.bf16.msra.mxu0 0
        %2647 = vmatprep.subr.bf16.mxu0 0
        %2648 = vmatpush2.bf16.msra.mxu0 0
        %2649 = vmatprep.subr.bf16.mxu0 0
        %2650 = vmatpush2.bf16.msra.mxu0 0
        %2651 = vmatprep.subr.bf16.mxu0 0
        %2652 = vmatpush2.bf16.msra.mxu0 0
        %2653 = vmatprep.subr.bf16.mxu0 0
        %2654 = vmatpush2.bf16.msra.mxu0 0
        %2655 = vmatprep.subr.bf16.mxu0 0
        %2656 = vmatpush2.bf16.msra.mxu0 0
        %2657 = vmatprep.subr.bf16.mxu0 0
        %2658 = vmatpush2.bf16.msra.mxu0 0
        %2659 = vmatprep.mubr.bf16.mxu0 0
        %2660 = vmatmul.mubr.bf16.gmra.mxu0 %v2620
        %v2661 = vpop.f32.mrf.mxu0
        %v2662 = vadd.f32 0.0, %v2661
        %v2663 = vpop.f32.mrf.mxu0
        %v2664 = vadd.f32 0.0, %v2663
        %v2665 = vpop.f32.mrf.mxu0
        %v2666 = vpop.f32.mrf.mxu0
        %2667 = vdwg.mxu0
        %s2668 = scalar_lea.vmem %s4, 51
        %v2669 = vld [vmem:[%s2668] ss:$8 sm:$0x3]
        %v2671 = vlaneseq
        %v2672 = vshrl.u32 %v2671, 7
        %v2673 = vsub.s32 0, %v2672
        %v2674 = vrot.slane %v2669, %v2673
        %v2675 = vlaneseq
        %v2676 = vshrl.u32 %v2675, 7
        %v2677 = vsub.s32 1, %v2676
        %v2678 = vrot.slane %v2669, %v2677
        %v2681 = vmul.f32 %v2662, %v2674
        %v2682 = vmul.f32 %v2664, %v2678
        %v2683 = vadd.f32 %v2605, %v2681
        %v2684 = vadd.f32 %v2606, %v2682
        %2685 = vrot.lane.b32.xlu0 %v524, 115
        %v2686 = vpop.permute.xlu0 %2685
        %2687 = vrot.lane.b32.xlu0 %v525, 115
        %v2688 = vpop.permute.xlu0 %2687
        %vm2689 = vcmask 941056
        %v2690 = vsel %vm2689, %v2686, %v2688
        %vm2691 = vcmask 941056
        %v2694 = vsel %vm2691, %v2688, %v2686
        %s2695 = scalar_lea.vmem %s3, 56
        %v2696 = vld [vmem:[%s2695] sm:$0x3]
        %v2698 = vsel %vm539, %v2696, 0
        %v2701 = vsel %vm385, %v2690, 0
        %v2703 = vsel %vm385, %v2694, 0
        %2705 = vmatprep.subr.bf16.mxu0 0
        %2706 = vmatpush1.bf16.msra.mxu0 0
        %2707 = vmatprep.subr.bf16.mxu0 0
        %2708 = vmatpush1.bf16.msra.mxu0 0
        %2709 = vmatprep.subr.bf16.mxu0 0
        %2710 = vmatpush1.bf16.msra.mxu0 0
        %2711 = vmatprep.subr.bf16.mxu0 0
        %2712 = vmatpush1.bf16.msra.mxu0 0
        %2713 = vmatprep.subr.bf16.mxu0 0
        %2714 = vmatpush1.bf16.msra.mxu0 0
        %2715 = vmatprep.subr.bf16.mxu0 0
        %2716 = vmatpush1.bf16.msra.mxu0 0
        %2717 = vmatprep.subr.bf16.mxu0 0
        %2718 = vmatpush1.bf16.msra.mxu0 0
        %2719 = vmatprep.subr.bf16.mxu0 %v2703
        %2720 = vmatpush1.bf16.msra.mxu0 %v2701
        %2721 = vmatprep.subr.bf16.mxu0 0
        %2722 = vmatpush2.bf16.msra.mxu0 0
        %2723 = vmatprep.subr.bf16.mxu0 0
        %2724 = vmatpush2.bf16.msra.mxu0 0
        %2725 = vmatprep.subr.bf16.mxu0 0
        %2726 = vmatpush2.bf16.msra.mxu0 0
        %2727 = vmatprep.subr.bf16.mxu0 0
        %2728 = vmatpush2.bf16.msra.mxu0 0
        %2729 = vmatprep.subr.bf16.mxu0 0
        %2730 = vmatpush2.bf16.msra.mxu0 0
        %2731 = vmatprep.subr.bf16.mxu0 0
        %2732 = vmatpush2.bf16.msra.mxu0 0
        %2733 = vmatprep.subr.bf16.mxu0 0
        %2734 = vmatpush2.bf16.msra.mxu0 0
        %2735 = vmatprep.subr.bf16.mxu0 0
        %2736 = vmatpush2.bf16.msra.mxu0 0
        %2737 = vmatprep.mubr.bf16.mxu0 0
        %2738 = vmatmul.mubr.bf16.gmra.mxu0 %v2698
        %v2739 = vpop.f32.mrf.mxu0
        %v2740 = vadd.f32 0.0, %v2739
        %v2741 = vpop.f32.mrf.mxu0
        %v2742 = vadd.f32 0.0, %v2741
        %v2743 = vpop.f32.mrf.mxu0
        %v2744 = vpop.f32.mrf.mxu0
        %2745 = vdwg.mxu0
        %s2746 = scalar_lea.vmem %s4, 52
        %v2747 = vld [vmem:[%s2746] ss:$8 sm:$0x3]
        %v2749 = vlaneseq
        %v2750 = vshrl.u32 %v2749, 7
        %v2751 = vsub.s32 0, %v2750
        %v2752 = vrot.slane %v2747, %v2751
        %v2753 = vlaneseq
        %v2754 = vshrl.u32 %v2753, 7
        %v2755 = vsub.s32 1, %v2754
        %v2756 = vrot.slane %v2747, %v2755
        %v2759 = vmul.f32 %v2740, %v2752
        %v2760 = vmul.f32 %v2742, %v2756
        %v2761 = vadd.f32 %v2683, %v2759
        %v2762 = vadd.f32 %v2684, %v2760
        %2763 = vrot.lane.b32.xlu0 %v524, 114
        %v2764 = vpop.permute.xlu0 %2763
        %2765 = vrot.lane.b32.xlu0 %v525, 114
        %v2766 = vpop.permute.xlu0 %2765
        %vm2767 = vcmask 932864
        %v2768 = vsel %vm2767, %v2764, %v2766
        %vm2769 = vcmask 932864
        %v2772 = vsel %vm2769, %v2766, %v2764
        %s2773 = scalar_lea.vmem %s3, 58
        %v2774 = vld [vmem:[%s2773] sm:$0x3]
        %v2776 = vsel %vm539, %v2774, 0
        %v2779 = vsel %vm385, %v2768, 0
        %v2781 = vsel %vm385, %v2772, 0
        %2783 = vmatprep.subr.bf16.mxu0 0
        %2784 = vmatpush1.bf16.msra.mxu0 0
        %2785 = vmatprep.subr.bf16.mxu0 0
        %2786 = vmatpush1.bf16.msra.mxu0 0
        %2787 = vmatprep.subr.bf16.mxu0 0
        %2788 = vmatpush1.bf16.msra.mxu0 0
        %2789 = vmatprep.subr.bf16.mxu0 0
        %2790 = vmatpush1.bf16.msra.mxu0 0
        %2791 = vmatprep.subr.bf16.mxu0 0
        %2792 = vmatpush1.bf16.msra.mxu0 0
        %2793 = vmatprep.subr.bf16.mxu0 0
        %2794 = vmatpush1.bf16.msra.mxu0 0
        %2795 = vmatprep.subr.bf16.mxu0 0
        %2796 = vmatpush1.bf16.msra.mxu0 0
        %2797 = vmatprep.subr.bf16.mxu0 %v2781
        %2798 = vmatpush1.bf16.msra.mxu0 %v2779
        %2799 = vmatprep.subr.bf16.mxu0 0
        %2800 = vmatpush2.bf16.msra.mxu0 0
        %2801 = vmatprep.subr.bf16.mxu0 0
        %2802 = vmatpush2.bf16.msra.mxu0 0
        %2803 = vmatprep.subr.bf16.mxu0 0
        %2804 = vmatpush2.bf16.msra.mxu0 0
        %2805 = vmatprep.subr.bf16.mxu0 0
        %2806 = vmatpush2.bf16.msra.mxu0 0
        %2807 = vmatprep.subr.bf16.mxu0 0
        %2808 = vmatpush2.bf16.msra.mxu0 0
        %2809 = vmatprep.subr.bf16.mxu0 0
        %2810 = vmatpush2.bf16.msra.mxu0 0
        %2811 = vmatprep.subr.bf16.mxu0 0
        %2812 = vmatpush2.bf16.msra.mxu0 0
        %2813 = vmatprep.subr.bf16.mxu0 0
        %2814 = vmatpush2.bf16.msra.mxu0 0
        %2815 = vmatprep.mubr.bf16.mxu0 0
        %2816 = vmatmul.mubr.bf16.gmra.mxu0 %v2776
        %v2817 = vpop.f32.mrf.mxu0
        %v2818 = vadd.f32 0.0, %v2817
        %v2819 = vpop.f32.mrf.mxu0
        %v2820 = vadd.f32 0.0, %v2819
        %v2821 = vpop.f32.mrf.mxu0
        %v2822 = vpop.f32.mrf.mxu0
        %2823 = vdwg.mxu0
        %s2824 = scalar_lea.vmem %s4, 53
        %v2825 = vld [vmem:[%s2824] ss:$8 sm:$0x3]
        %v2827 = vlaneseq
        %v2828 = vshrl.u32 %v2827, 7
        %v2829 = vsub.s32 0, %v2828
        %v2830 = vrot.slane %v2825, %v2829
        %v2831 = vlaneseq
        %v2832 = vshrl.u32 %v2831, 7
        %v2833 = vsub.s32 1, %v2832
        %v2834 = vrot.slane %v2825, %v2833
        %v2837 = vmul.f32 %v2818, %v2830
        %v2838 = vmul.f32 %v2820, %v2834
        %v2839 = vadd.f32 %v2761, %v2837
        %v2840 = vadd.f32 %v2762, %v2838
        %2841 = vrot.lane.b32.xlu0 %v524, 113
        %v2842 = vpop.permute.xlu0 %2841
        %2843 = vrot.lane.b32.xlu0 %v525, 113
        %v2844 = vpop.permute.xlu0 %2843
        %vm2845 = vcmask 924672
        %v2846 = vsel %vm2845, %v2842, %v2844
        %vm2847 = vcmask 924672
        %v2850 = vsel %vm2847, %v2844, %v2842
        %s2851 = scalar_lea.vmem %s3, 60
        %v2852 = vld [vmem:[%s2851] sm:$0x3]
        %v2854 = vsel %vm539, %v2852, 0
        %v2857 = vsel %vm385, %v2846, 0
        %v2859 = vsel %vm385, %v2850, 0
        %2861 = vmatprep.subr.bf16.mxu0 0
        %2862 = vmatpush1.bf16.msra.mxu0 0
        %2863 = vmatprep.subr.bf16.mxu0 0
        %2864 = vmatpush1.bf16.msra.mxu0 0
        %2865 = vmatprep.subr.bf16.mxu0 0
        %2866 = vmatpush1.bf16.msra.mxu0 0
        %2867 = vmatprep.subr.bf16.mxu0 0
        %2868 = vmatpush1.bf16.msra.mxu0 0
        %2869 = vmatprep.subr.bf16.mxu0 0
        %2870 = vmatpush1.bf16.msra.mxu0 0
        %2871 = vmatprep.subr.bf16.mxu0 0
        %2872 = vmatpush1.bf16.msra.mxu0 0
        %2873 = vmatprep.subr.bf16.mxu0 0
        %2874 = vmatpush1.bf16.msra.mxu0 0
        %2875 = vmatprep.subr.bf16.mxu0 %v2859
        %2876 = vmatpush1.bf16.msra.mxu0 %v2857
        %2877 = vmatprep.subr.bf16.mxu0 0
        %2878 = vmatpush2.bf16.msra.mxu0 0
        %2879 = vmatprep.subr.bf16.mxu0 0
        %2880 = vmatpush2.bf16.msra.mxu0 0
        %2881 = vmatprep.subr.bf16.mxu0 0
        %2882 = vmatpush2.bf16.msra.mxu0 0
        %2883 = vmatprep.subr.bf16.mxu0 0
        %2884 = vmatpush2.bf16.msra.mxu0 0
        %2885 = vmatprep.subr.bf16.mxu0 0
        %2886 = vmatpush2.bf16.msra.mxu0 0
        %2887 = vmatprep.subr.bf16.mxu0 0
        %2888 = vmatpush2.bf16.msra.mxu0 0
        %2889 = vmatprep.subr.bf16.mxu0 0
        %2890 = vmatpush2.bf16.msra.mxu0 0
        %2891 = vmatprep.subr.bf16.mxu0 0
        %2892 = vmatpush2.bf16.msra.mxu0 0
        %2893 = vmatprep.mubr.bf16.mxu0 0
        %2894 = vmatmul.mubr.bf16.gmra.mxu0 %v2854
        %v2895 = vpop.f32.mrf.mxu0
        %v2896 = vadd.f32 0.0, %v2895
        %v2897 = vpop.f32.mrf.mxu0
        %v2898 = vadd.f32 0.0, %v2897
        %v2899 = vpop.f32.mrf.mxu0
        %v2900 = vpop.f32.mrf.mxu0
        %2901 = vdwg.mxu0
        %s2902 = scalar_lea.vmem %s4, 54
        %v2903 = vld [vmem:[%s2902] ss:$8 sm:$0x3]
        %v2905 = vlaneseq
        %v2906 = vshrl.u32 %v2905, 7
        %v2907 = vsub.s32 0, %v2906
        %v2908 = vrot.slane %v2903, %v2907
        %v2909 = vlaneseq
        %v2910 = vshrl.u32 %v2909, 7
        %v2911 = vsub.s32 1, %v2910
        %v2912 = vrot.slane %v2903, %v2911
        %v2915 = vmul.f32 %v2896, %v2908
        %v2916 = vmul.f32 %v2898, %v2912
        %v2917 = vadd.f32 %v2839, %v2915
        %v2918 = vadd.f32 %v2840, %v2916
        %2919 = vrot.lane.b32.xlu0 %v524, 112
        %v2920 = vpop.permute.xlu0 %2919
        %2921 = vrot.lane.b32.xlu0 %v525, 112
        %v2922 = vpop.permute.xlu0 %2921
        %vm2923 = vcmask 916480
        %v2924 = vsel %vm2923, %v2920, %v2922
        %vm2925 = vcmask 916480
        %v2928 = vsel %vm2925, %v2922, %v2920
        %s2929 = scalar_lea.vmem %s3, 62
        %v2930 = vld [vmem:[%s2929] sm:$0x3]
        %v2932 = vsel %vm539, %v2930, 0
        %v2935 = vsel %vm385, %v2924, 0
        %v2937 = vsel %vm385, %v2928, 0
        %2939 = vmatprep.subr.bf16.mxu0 0
        %2940 = vmatpush1.bf16.msra.mxu0 0
        %2941 = vmatprep.subr.bf16.mxu0 0
        %2942 = vmatpush1.bf16.msra.mxu0 0
        %2943 = vmatprep.subr.bf16.mxu0 0
        %2944 = vmatpush1.bf16.msra.mxu0 0
        %2945 = vmatprep.subr.bf16.mxu0 0
        %2946 = vmatpush1.bf16.msra.mxu0 0
        %2947 = vmatprep.subr.bf16.mxu0 0
        %2948 = vmatpush1.bf16.msra.mxu0 0
        %2949 = vmatprep.subr.bf16.mxu0 0
        %2950 = vmatpush1.bf16.msra.mxu0 0
        %2951 = vmatprep.subr.bf16.mxu0 0
        %2952 = vmatpush1.bf16.msra.mxu0 0
        %2953 = vmatprep.subr.bf16.mxu0 %v2937
        %2954 = vmatpush1.bf16.msra.mxu0 %v2935
        %2955 = vmatprep.subr.bf16.mxu0 0
        %2956 = vmatpush2.bf16.msra.mxu0 0
        %2957 = vmatprep.subr.bf16.mxu0 0
        %2958 = vmatpush2.bf16.msra.mxu0 0
        %2959 = vmatprep.subr.bf16.mxu0 0
        %2960 = vmatpush2.bf16.msra.mxu0 0
        %2961 = vmatprep.subr.bf16.mxu0 0
        %2962 = vmatpush2.bf16.msra.mxu0 0
        %2963 = vmatprep.subr.bf16.mxu0 0
        %2964 = vmatpush2.bf16.msra.mxu0 0
        %2965 = vmatprep.subr.bf16.mxu0 0
        %2966 = vmatpush2.bf16.msra.mxu0 0
        %2967 = vmatprep.subr.bf16.mxu0 0
        %2968 = vmatpush2.bf16.msra.mxu0 0
        %2969 = vmatprep.subr.bf16.mxu0 0
        %2970 = vmatpush2.bf16.msra.mxu0 0
        %2971 = vmatprep.mubr.bf16.mxu0 0
        %2972 = vmatmul.mubr.bf16.gmra.mxu0 %v2932
        %v2973 = vpop.f32.mrf.mxu0
        %v2974 = vadd.f32 0.0, %v2973
        %v2975 = vpop.f32.mrf.mxu0
        %v2976 = vadd.f32 0.0, %v2975
        %v2977 = vpop.f32.mrf.mxu0
        %v2978 = vpop.f32.mrf.mxu0
        %2979 = vdwg.mxu0
        %s2980 = scalar_lea.vmem %s4, 55
        %v2981 = vld [vmem:[%s2980] ss:$8 sm:$0x3]
        %v2983 = vlaneseq
        %v2984 = vshrl.u32 %v2983, 7
        %v2985 = vsub.s32 0, %v2984
        %v2986 = vrot.slane %v2981, %v2985
        %v2987 = vlaneseq
        %v2988 = vshrl.u32 %v2987, 7
        %v2989 = vsub.s32 1, %v2988
        %v2990 = vrot.slane %v2981, %v2989
        %v2993 = vmul.f32 %v2974, %v2986
        %v2994 = vmul.f32 %v2976, %v2990
        %v2995 = vadd.f32 %v2917, %v2993
        %v2996 = vadd.f32 %v2918, %v2994
        %2997 = vrot.lane.b32.xlu0 %v524, 111
        %v2998 = vpop.permute.xlu0 %2997
        %2999 = vrot.lane.b32.xlu0 %v525, 111
        %v3000 = vpop.permute.xlu0 %2999
        %vm3001 = vcmask 908288
        %v3002 = vsel %vm3001, %v2998, %v3000
        %vm3003 = vcmask 908288
        %v3006 = vsel %vm3003, %v3000, %v2998
        %s3007 = scalar_lea.vmem %s3, 64
        %v3008 = vld [vmem:[%s3007] sm:$0x3]
        %v3010 = vsel %vm539, %v3008, 0
        %v3013 = vsel %vm385, %v3002, 0
        %v3015 = vsel %vm385, %v3006, 0
        %3017 = vmatprep.subr.bf16.mxu0 0
        %3018 = vmatpush1.bf16.msra.mxu0 0
        %3019 = vmatprep.subr.bf16.mxu0 0
        %3020 = vmatpush1.bf16.msra.mxu0 0
        %3021 = vmatprep.subr.bf16.mxu0 0
        %3022 = vmatpush1.bf16.msra.mxu0 0
        %3023 = vmatprep.subr.bf16.mxu0 0
        %3024 = vmatpush1.bf16.msra.mxu0 0
        %3025 = vmatprep.subr.bf16.mxu0 0
        %3026 = vmatpush1.bf16.msra.mxu0 0
        %3027 = vmatprep.subr.bf16.mxu0 0
        %3028 = vmatpush1.bf16.msra.mxu0 0
        %3029 = vmatprep.subr.bf16.mxu0 0
        %3030 = vmatpush1.bf16.msra.mxu0 0
        %3031 = vmatprep.subr.bf16.mxu0 %v3015
        %3032 = vmatpush1.bf16.msra.mxu0 %v3013
        %3033 = vmatprep.subr.bf16.mxu0 0
        %3034 = vmatpush2.bf16.msra.mxu0 0
        %3035 = vmatprep.subr.bf16.mxu0 0
        %3036 = vmatpush2.bf16.msra.mxu0 0
        %3037 = vmatprep.subr.bf16.mxu0 0
        %3038 = vmatpush2.bf16.msra.mxu0 0
        %3039 = vmatprep.subr.bf16.mxu0 0
        %3040 = vmatpush2.bf16.msra.mxu0 0
        %3041 = vmatprep.subr.bf16.mxu0 0
        %3042 = vmatpush2.bf16.msra.mxu0 0
        %3043 = vmatprep.subr.bf16.mxu0 0
        %3044 = vmatpush2.bf16.msra.mxu0 0
        %3045 = vmatprep.subr.bf16.mxu0 0
        %3046 = vmatpush2.bf16.msra.mxu0 0
        %3047 = vmatprep.subr.bf16.mxu0 0
        %3048 = vmatpush2.bf16.msra.mxu0 0
        %3049 = vmatprep.mubr.bf16.mxu0 0
        %3050 = vmatmul.mubr.bf16.gmra.mxu0 %v3010
        %v3051 = vpop.f32.mrf.mxu0
        %v3052 = vadd.f32 0.0, %v3051
        %v3053 = vpop.f32.mrf.mxu0
        %v3054 = vadd.f32 0.0, %v3053
        %v3055 = vpop.f32.mrf.mxu0
        %v3056 = vpop.f32.mrf.mxu0
        %3057 = vdwg.mxu0
        %s3058 = scalar_lea.vmem %s4, 64
        %v3059 = vld [vmem:[%s3058] ss:$8 sm:$0x3]
        %v3061 = vlaneseq
        %v3062 = vshrl.u32 %v3061, 7
        %v3063 = vsub.s32 0, %v3062
        %v3064 = vrot.slane %v3059, %v3063
        %v3065 = vlaneseq
        %v3066 = vshrl.u32 %v3065, 7
        %v3067 = vsub.s32 1, %v3066
        %v3068 = vrot.slane %v3059, %v3067
        %v3071 = vmul.f32 %v3052, %v3064
        %v3072 = vmul.f32 %v3054, %v3068
        %v3073 = vadd.f32 %v2995, %v3071
        %v3074 = vadd.f32 %v2996, %v3072
        %3075 = vrot.lane.b32.xlu0 %v524, 110
        %v3076 = vpop.permute.xlu0 %3075
        %3077 = vrot.lane.b32.xlu0 %v525, 110
        %v3078 = vpop.permute.xlu0 %3077
        %vm3079 = vcmask 900096
        %v3080 = vsel %vm3079, %v3076, %v3078
        %vm3081 = vcmask 900096
        %v3084 = vsel %vm3081, %v3078, %v3076
        %s3085 = scalar_lea.vmem %s3, 66
        %v3086 = vld [vmem:[%s3085] sm:$0x3]
        %v3088 = vsel %vm539, %v3086, 0
        %v3091 = vsel %vm385, %v3080, 0
        %v3093 = vsel %vm385, %v3084, 0
        %3095 = vmatprep.subr.bf16.mxu0 0
        %3096 = vmatpush1.bf16.msra.mxu0 0
        %3097 = vmatprep.subr.bf16.mxu0 0
        %3098 = vmatpush1.bf16.msra.mxu0 0
        %3099 = vmatprep.subr.bf16.mxu0 0
        %3100 = vmatpush1.bf16.msra.mxu0 0
        %3101 = vmatprep.subr.bf16.mxu0 0
        %3102 = vmatpush1.bf16.msra.mxu0 0
        %3103 = vmatprep.subr.bf16.mxu0 0
        %3104 = vmatpush1.bf16.msra.mxu0 0
        %3105 = vmatprep.subr.bf16.mxu0 0
        %3106 = vmatpush1.bf16.msra.mxu0 0
        %3107 = vmatprep.subr.bf16.mxu0 0
        %3108 = vmatpush1.bf16.msra.mxu0 0
        %3109 = vmatprep.subr.bf16.mxu0 %v3093
        %3110 = vmatpush1.bf16.msra.mxu0 %v3091
        %3111 = vmatprep.subr.bf16.mxu0 0
        %3112 = vmatpush2.bf16.msra.mxu0 0
        %3113 = vmatprep.subr.bf16.mxu0 0
        %3114 = vmatpush2.bf16.msra.mxu0 0
        %3115 = vmatprep.subr.bf16.mxu0 0
        %3116 = vmatpush2.bf16.msra.mxu0 0
        %3117 = vmatprep.subr.bf16.mxu0 0
        %3118 = vmatpush2.bf16.msra.mxu0 0
        %3119 = vmatprep.subr.bf16.mxu0 0
        %3120 = vmatpush2.bf16.msra.mxu0 0
        %3121 = vmatprep.subr.bf16.mxu0 0
        %3122 = vmatpush2.bf16.msra.mxu0 0
        %3123 = vmatprep.subr.bf16.mxu0 0
        %3124 = vmatpush2.bf16.msra.mxu0 0
        %3125 = vmatprep.subr.bf16.mxu0 0
        %3126 = vmatpush2.bf16.msra.mxu0 0
        %3127 = vmatprep.mubr.bf16.mxu0 0
        %3128 = vmatmul.mubr.bf16.gmra.mxu0 %v3088
        %v3129 = vpop.f32.mrf.mxu0
        %v3130 = vadd.f32 0.0, %v3129
        %v3131 = vpop.f32.mrf.mxu0
        %v3132 = vadd.f32 0.0, %v3131
        %v3133 = vpop.f32.mrf.mxu0
        %v3134 = vpop.f32.mrf.mxu0
        %3135 = vdwg.mxu0
        %s3136 = scalar_lea.vmem %s4, 65
        %v3137 = vld [vmem:[%s3136] ss:$8 sm:$0x3]
        %v3139 = vlaneseq
        %v3140 = vshrl.u32 %v3139, 7
        %v3141 = vsub.s32 0, %v3140
        %v3142 = vrot.slane %v3137, %v3141
        %v3143 = vlaneseq
        %v3144 = vshrl.u32 %v3143, 7
        %v3145 = vsub.s32 1, %v3144
        %v3146 = vrot.slane %v3137, %v3145
        %v3149 = vmul.f32 %v3130, %v3142
        %v3150 = vmul.f32 %v3132, %v3146
        %v3151 = vadd.f32 %v3073, %v3149
        %v3152 = vadd.f32 %v3074, %v3150
        %3153 = vrot.lane.b32.xlu0 %v524, 109
        %v3154 = vpop.permute.xlu0 %3153
        %3155 = vrot.lane.b32.xlu0 %v525, 109
        %v3156 = vpop.permute.xlu0 %3155
        %vm3157 = vcmask 891904
        %v3158 = vsel %vm3157, %v3154, %v3156
        %vm3159 = vcmask 891904
        %v3162 = vsel %vm3159, %v3156, %v3154
        %s3163 = scalar_lea.vmem %s3, 68
        %v3164 = vld [vmem:[%s3163] sm:$0x3]
        %v3166 = vsel %vm539, %v3164, 0
        %v3169 = vsel %vm385, %v3158, 0
        %v3171 = vsel %vm385, %v3162, 0
        %3173 = vmatprep.subr.bf16.mxu0 0
        %3174 = vmatpush1.bf16.msra.mxu0 0
        %3175 = vmatprep.subr.bf16.mxu0 0
        %3176 = vmatpush1.bf16.msra.mxu0 0
        %3177 = vmatprep.subr.bf16.mxu0 0
        %3178 = vmatpush1.bf16.msra.mxu0 0
        %3179 = vmatprep.subr.bf16.mxu0 0
        %3180 = vmatpush1.bf16.msra.mxu0 0
        %3181 = vmatprep.subr.bf16.mxu0 0
        %3182 = vmatpush1.bf16.msra.mxu0 0
        %3183 = vmatprep.subr.bf16.mxu0 0
        %3184 = vmatpush1.bf16.msra.mxu0 0
        %3185 = vmatprep.subr.bf16.mxu0 0
        %3186 = vmatpush1.bf16.msra.mxu0 0
        %3187 = vmatprep.subr.bf16.mxu0 %v3171
        %3188 = vmatpush1.bf16.msra.mxu0 %v3169
        %3189 = vmatprep.subr.bf16.mxu0 0
        %3190 = vmatpush2.bf16.msra.mxu0 0
        %3191 = vmatprep.subr.bf16.mxu0 0
        %3192 = vmatpush2.bf16.msra.mxu0 0
        %3193 = vmatprep.subr.bf16.mxu0 0
        %3194 = vmatpush2.bf16.msra.mxu0 0
        %3195 = vmatprep.subr.bf16.mxu0 0
        %3196 = vmatpush2.bf16.msra.mxu0 0
        %3197 = vmatprep.subr.bf16.mxu0 0
        %3198 = vmatpush2.bf16.msra.mxu0 0
        %3199 = vmatprep.subr.bf16.mxu0 0
        %3200 = vmatpush2.bf16.msra.mxu0 0
        %3201 = vmatprep.subr.bf16.mxu0 0
        %3202 = vmatpush2.bf16.msra.mxu0 0
        %3203 = vmatprep.subr.bf16.mxu0 0
        %3204 = vmatpush2.bf16.msra.mxu0 0
        %3205 = vmatprep.mubr.bf16.mxu0 0
        %3206 = vmatmul.mubr.bf16.gmra.mxu0 %v3166
        %v3207 = vpop.f32.mrf.mxu0
        %v3208 = vadd.f32 0.0, %v3207
        %v3209 = vpop.f32.mrf.mxu0
        %v3210 = vadd.f32 0.0, %v3209
        %v3211 = vpop.f32.mrf.mxu0
        %v3212 = vpop.f32.mrf.mxu0
        %3213 = vdwg.mxu0
        %s3214 = scalar_lea.vmem %s4, 66
        %v3215 = vld [vmem:[%s3214] ss:$8 sm:$0x3]
        %v3217 = vlaneseq
        %v3218 = vshrl.u32 %v3217, 7
        %v3219 = vsub.s32 0, %v3218
        %v3220 = vrot.slane %v3215, %v3219
        %v3221 = vlaneseq
        %v3222 = vshrl.u32 %v3221, 7
        %v3223 = vsub.s32 1, %v3222
        %v3224 = vrot.slane %v3215, %v3223
        %v3227 = vmul.f32 %v3208, %v3220
        %v3228 = vmul.f32 %v3210, %v3224
        %v3229 = vadd.f32 %v3151, %v3227
        %v3230 = vadd.f32 %v3152, %v3228
        %3231 = vrot.lane.b32.xlu0 %v524, 99
        %v3232 = vpop.permute.xlu0 %3231
        %3233 = vrot.lane.b32.xlu0 %v525, 99
        %v3234 = vpop.permute.xlu0 %3233
        %vm3235 = vcmask 809984
        %v3236 = vsel %vm3235, %v3232, %v3234
        %vm3237 = vcmask 809984
        %v3240 = vsel %vm3237, %v3234, %v3232
        %s3241 = scalar_lea.vmem %s3, 70
        %v3242 = vld [vmem:[%s3241] sm:$0x3]
        %v3244 = vsel %vm539, %v3242, 0
        %v3247 = vsel %vm385, %v3236, 0
        %v3249 = vsel %vm385, %v3240, 0
        %3251 = vmatprep.subr.bf16.mxu0 0
        %3252 = vmatpush1.bf16.msra.mxu0 0
        %3253 = vmatprep.subr.bf16.mxu0 0
        %3254 = vmatpush1.bf16.msra.mxu0 0
        %3255 = vmatprep.subr.bf16.mxu0 0
        %3256 = vmatpush1.bf16.msra.mxu0 0
        %3257 = vmatprep.subr.bf16.mxu0 0
        %3258 = vmatpush1.bf16.msra.mxu0 0
        %3259 = vmatprep.subr.bf16.mxu0 0
        %3260 = vmatpush1.bf16.msra.mxu0 0
        %3261 = vmatprep.subr.bf16.mxu0 0
        %3262 = vmatpush1.bf16.msra.mxu0 0
        %3263 = vmatprep.subr.bf16.mxu0 0
        %3264 = vmatpush1.bf16.msra.mxu0 0
        %3265 = vmatprep.subr.bf16.mxu0 %v3249
        %3266 = vmatpush1.bf16.msra.mxu0 %v3247
        %3267 = vmatprep.subr.bf16.mxu0 0
        %3268 = vmatpush2.bf16.msra.mxu0 0
        %3269 = vmatprep.subr.bf16.mxu0 0
        %3270 = vmatpush2.bf16.msra.mxu0 0
        %3271 = vmatprep.subr.bf16.mxu0 0
        %3272 = vmatpush2.bf16.msra.mxu0 0
        %3273 = vmatprep.subr.bf16.mxu0 0
        %3274 = vmatpush2.bf16.msra.mxu0 0
        %3275 = vmatprep.subr.bf16.mxu0 0
        %3276 = vmatpush2.bf16.msra.mxu0 0
        %3277 = vmatprep.subr.bf16.mxu0 0
        %3278 = vmatpush2.bf16.msra.mxu0 0
        %3279 = vmatprep.subr.bf16.mxu0 0
        %3280 = vmatpush2.bf16.msra.mxu0 0
        %3281 = vmatprep.subr.bf16.mxu0 0
        %3282 = vmatpush2.bf16.msra.mxu0 0
        %3283 = vmatprep.mubr.bf16.mxu0 0
        %3284 = vmatmul.mubr.bf16.gmra.mxu0 %v3244
        %v3285 = vpop.f32.mrf.mxu0
        %v3286 = vadd.f32 0.0, %v3285
        %v3287 = vpop.f32.mrf.mxu0
        %v3288 = vadd.f32 0.0, %v3287
        %v3289 = vpop.f32.mrf.mxu0
        %v3290 = vpop.f32.mrf.mxu0
        %3291 = vdwg.mxu0
        %s3292 = scalar_lea.vmem %s4, 67
        %v3293 = vld [vmem:[%s3292] ss:$8 sm:$0x3]
        %v3295 = vlaneseq
        %v3296 = vshrl.u32 %v3295, 7
        %v3297 = vsub.s32 0, %v3296
        %v3298 = vrot.slane %v3293, %v3297
        %v3299 = vlaneseq
        %v3300 = vshrl.u32 %v3299, 7
        %v3301 = vsub.s32 1, %v3300
        %v3302 = vrot.slane %v3293, %v3301
        %v3305 = vmul.f32 %v3286, %v3298
        %v3306 = vmul.f32 %v3288, %v3302
        %v3307 = vadd.f32 %v3229, %v3305
        %v3308 = vadd.f32 %v3230, %v3306
        %3309 = vrot.lane.b32.xlu0 %v524, 98
        %v3310 = vpop.permute.xlu0 %3309
        %3311 = vrot.lane.b32.xlu0 %v525, 98
        %v3312 = vpop.permute.xlu0 %3311
        %vm3313 = vcmask 801792
        %v3314 = vsel %vm3313, %v3310, %v3312
        %vm3315 = vcmask 801792
        %v3318 = vsel %vm3315, %v3312, %v3310
        %s3319 = scalar_lea.vmem %s3, 72
        %v3320 = vld [vmem:[%s3319] sm:$0x3]
        %v3322 = vsel %vm539, %v3320, 0
        %v3325 = vsel %vm385, %v3314, 0
        %v3327 = vsel %vm385, %v3318, 0
        %3329 = vmatprep.subr.bf16.mxu0 0
        %3330 = vmatpush1.bf16.msra.mxu0 0
        %3331 = vmatprep.subr.bf16.mxu0 0
        %3332 = vmatpush1.bf16.msra.mxu0 0
        %3333 = vmatprep.subr.bf16.mxu0 0
        %3334 = vmatpush1.bf16.msra.mxu0 0
        %3335 = vmatprep.subr.bf16.mxu0 0
        %3336 = vmatpush1.bf16.msra.mxu0 0
        %3337 = vmatprep.subr.bf16.mxu0 0
        %3338 = vmatpush1.bf16.msra.mxu0 0
        %3339 = vmatprep.subr.bf16.mxu0 0
        %3340 = vmatpush1.bf16.msra.mxu0 0
        %3341 = vmatprep.subr.bf16.mxu0 0
        %3342 = vmatpush1.bf16.msra.mxu0 0
        %3343 = vmatprep.subr.bf16.mxu0 %v3327
        %3344 = vmatpush1.bf16.msra.mxu0 %v3325
        %3345 = vmatprep.subr.bf16.mxu0 0
        %3346 = vmatpush2.bf16.msra.mxu0 0
        %3347 = vmatprep.subr.bf16.mxu0 0
        %3348 = vmatpush2.bf16.msra.mxu0 0
        %3349 = vmatprep.subr.bf16.mxu0 0
        %3350 = vmatpush2.bf16.msra.mxu0 0
        %3351 = vmatprep.subr.bf16.mxu0 0
        %3352 = vmatpush2.bf16.msra.mxu0 0
        %3353 = vmatprep.subr.bf16.mxu0 0
        %3354 = vmatpush2.bf16.msra.mxu0 0
        %3355 = vmatprep.subr.bf16.mxu0 0
        %3356 = vmatpush2.bf16.msra.mxu0 0
        %3357 = vmatprep.subr.bf16.mxu0 0
        %3358 = vmatpush2.bf16.msra.mxu0 0
        %3359 = vmatprep.subr.bf16.mxu0 0
        %3360 = vmatpush2.bf16.msra.mxu0 0
        %3361 = vmatprep.mubr.bf16.mxu0 0
        %3362 = vmatmul.mubr.bf16.gmra.mxu0 %v3322
        %v3363 = vpop.f32.mrf.mxu0
        %v3364 = vadd.f32 0.0, %v3363
        %v3365 = vpop.f32.mrf.mxu0
        %v3366 = vadd.f32 0.0, %v3365
        %v3367 = vpop.f32.mrf.mxu0
        %v3368 = vpop.f32.mrf.mxu0
        %3369 = vdwg.mxu0
        %s3370 = scalar_lea.vmem %s4, 68
        %v3371 = vld [vmem:[%s3370] ss:$8 sm:$0x3]
        %v3373 = vlaneseq
        %v3374 = vshrl.u32 %v3373, 7
        %v3375 = vsub.s32 0, %v3374
        %v3376 = vrot.slane %v3371, %v3375
        %v3377 = vlaneseq
        %v3378 = vshrl.u32 %v3377, 7
        %v3379 = vsub.s32 1, %v3378
        %v3380 = vrot.slane %v3371, %v3379
        %v3383 = vmul.f32 %v3364, %v3376
        %v3384 = vmul.f32 %v3366, %v3380
        %v3385 = vadd.f32 %v3307, %v3383
        %v3386 = vadd.f32 %v3308, %v3384
        %3387 = vrot.lane.b32.xlu0 %v524, 97
        %v3388 = vpop.permute.xlu0 %3387
        %3389 = vrot.lane.b32.xlu0 %v525, 97
        %v3390 = vpop.permute.xlu0 %3389
        %vm3391 = vcmask 793600
        %v3392 = vsel %vm3391, %v3388, %v3390
        %vm3393 = vcmask 793600
        %v3396 = vsel %vm3393, %v3390, %v3388
        %s3397 = scalar_lea.vmem %s3, 74
        %v3398 = vld [vmem:[%s3397] sm:$0x3]
        %v3400 = vsel %vm539, %v3398, 0
        %v3403 = vsel %vm385, %v3392, 0
        %v3405 = vsel %vm385, %v3396, 0
        %3407 = vmatprep.subr.bf16.mxu0 0
        %3408 = vmatpush1.bf16.msra.mxu0 0
        %3409 = vmatprep.subr.bf16.mxu0 0
        %3410 = vmatpush1.bf16.msra.mxu0 0
        %3411 = vmatprep.subr.bf16.mxu0 0
        %3412 = vmatpush1.bf16.msra.mxu0 0
        %3413 = vmatprep.subr.bf16.mxu0 0
        %3414 = vmatpush1.bf16.msra.mxu0 0
        %3415 = vmatprep.subr.bf16.mxu0 0
        %3416 = vmatpush1.bf16.msra.mxu0 0
        %3417 = vmatprep.subr.bf16.mxu0 0
        %3418 = vmatpush1.bf16.msra.mxu0 0
        %3419 = vmatprep.subr.bf16.mxu0 0
        %3420 = vmatpush1.bf16.msra.mxu0 0
        %3421 = vmatprep.subr.bf16.mxu0 %v3405
        %3422 = vmatpush1.bf16.msra.mxu0 %v3403
        %3423 = vmatprep.subr.bf16.mxu0 0
        %3424 = vmatpush2.bf16.msra.mxu0 0
        %3425 = vmatprep.subr.bf16.mxu0 0
        %3426 = vmatpush2.bf16.msra.mxu0 0
        %3427 = vmatprep.subr.bf16.mxu0 0
        %3428 = vmatpush2.bf16.msra.mxu0 0
        %3429 = vmatprep.subr.bf16.mxu0 0
        %3430 = vmatpush2.bf16.msra.mxu0 0
        %3431 = vmatprep.subr.bf16.mxu0 0
        %3432 = vmatpush2.bf16.msra.mxu0 0
        %3433 = vmatprep.subr.bf16.mxu0 0
        %3434 = vmatpush2.bf16.msra.mxu0 0
        %3435 = vmatprep.subr.bf16.mxu0 0
        %3436 = vmatpush2.bf16.msra.mxu0 0
        %3437 = vmatprep.subr.bf16.mxu0 0
        %3438 = vmatpush2.bf16.msra.mxu0 0
        %3439 = vmatprep.mubr.bf16.mxu0 0
        %3440 = vmatmul.mubr.bf16.gmra.mxu0 %v3400
        %v3441 = vpop.f32.mrf.mxu0
        %v3442 = vadd.f32 0.0, %v3441
        %v3443 = vpop.f32.mrf.mxu0
        %v3444 = vadd.f32 0.0, %v3443
        %v3445 = vpop.f32.mrf.mxu0
        %v3446 = vpop.f32.mrf.mxu0
        %3447 = vdwg.mxu0
        %s3448 = scalar_lea.vmem %s4, 69
        %v3449 = vld [vmem:[%s3448] ss:$8 sm:$0x3]
        %v3451 = vlaneseq
        %v3452 = vshrl.u32 %v3451, 7
        %v3453 = vsub.s32 0, %v3452
        %v3454 = vrot.slane %v3449, %v3453
        %v3455 = vlaneseq
        %v3456 = vshrl.u32 %v3455, 7
        %v3457 = vsub.s32 1, %v3456
        %v3458 = vrot.slane %v3449, %v3457
        %v3461 = vmul.f32 %v3442, %v3454
        %v3462 = vmul.f32 %v3444, %v3458
        %v3463 = vadd.f32 %v3385, %v3461
        %v3464 = vadd.f32 %v3386, %v3462
        %3465 = vrot.lane.b32.xlu0 %v524, 96
        %v3466 = vpop.permute.xlu0 %3465
        %3467 = vrot.lane.b32.xlu0 %v525, 96
        %v3468 = vpop.permute.xlu0 %3467
        %vm3469 = vcmask 785408
        %v3470 = vsel %vm3469, %v3466, %v3468
        %vm3471 = vcmask 785408
        %v3474 = vsel %vm3471, %v3468, %v3466
        %s3475 = scalar_lea.vmem %s3, 76
        %v3476 = vld [vmem:[%s3475] sm:$0x3]
        %v3478 = vsel %vm539, %v3476, 0
        %v3481 = vsel %vm385, %v3470, 0
        %v3483 = vsel %vm385, %v3474, 0
        %3485 = vmatprep.subr.bf16.mxu0 0
        %3486 = vmatpush1.bf16.msra.mxu0 0
        %3487 = vmatprep.subr.bf16.mxu0 0
        %3488 = vmatpush1.bf16.msra.mxu0 0
        %3489 = vmatprep.subr.bf16.mxu0 0
        %3490 = vmatpush1.bf16.msra.mxu0 0
        %3491 = vmatprep.subr.bf16.mxu0 0
        %3492 = vmatpush1.bf16.msra.mxu0 0
        %3493 = vmatprep.subr.bf16.mxu0 0
        %3494 = vmatpush1.bf16.msra.mxu0 0
        %3495 = vmatprep.subr.bf16.mxu0 0
        %3496 = vmatpush1.bf16.msra.mxu0 0
        %3497 = vmatprep.subr.bf16.mxu0 0
        %3498 = vmatpush1.bf16.msra.mxu0 0
        %3499 = vmatprep.subr.bf16.mxu0 %v3483
        %3500 = vmatpush1.bf16.msra.mxu0 %v3481
        %3501 = vmatprep.subr.bf16.mxu0 0
        %3502 = vmatpush2.bf16.msra.mxu0 0
        %3503 = vmatprep.subr.bf16.mxu0 0
        %3504 = vmatpush2.bf16.msra.mxu0 0
        %3505 = vmatprep.subr.bf16.mxu0 0
        %3506 = vmatpush2.bf16.msra.mxu0 0
        %3507 = vmatprep.subr.bf16.mxu0 0
        %3508 = vmatpush2.bf16.msra.mxu0 0
        %3509 = vmatprep.subr.bf16.mxu0 0
        %3510 = vmatpush2.bf16.msra.mxu0 0
        %3511 = vmatprep.subr.bf16.mxu0 0
        %3512 = vmatpush2.bf16.msra.mxu0 0
        %3513 = vmatprep.subr.bf16.mxu0 0
        %3514 = vmatpush2.bf16.msra.mxu0 0
        %3515 = vmatprep.subr.bf16.mxu0 0
        %3516 = vmatpush2.bf16.msra.mxu0 0
        %3517 = vmatprep.mubr.bf16.mxu0 0
        %3518 = vmatmul.mubr.bf16.gmra.mxu0 %v3478
        %v3519 = vpop.f32.mrf.mxu0
        %v3520 = vadd.f32 0.0, %v3519
        %v3521 = vpop.f32.mrf.mxu0
        %v3522 = vadd.f32 0.0, %v3521
        %v3523 = vpop.f32.mrf.mxu0
        %v3524 = vpop.f32.mrf.mxu0
        %3525 = vdwg.mxu0
        %s3526 = scalar_lea.vmem %s4, 70
        %v3527 = vld [vmem:[%s3526] ss:$8 sm:$0x3]
        %v3529 = vlaneseq
        %v3530 = vshrl.u32 %v3529, 7
        %v3531 = vsub.s32 0, %v3530
        %v3532 = vrot.slane %v3527, %v3531
        %v3533 = vlaneseq
        %v3534 = vshrl.u32 %v3533, 7
        %v3535 = vsub.s32 1, %v3534
        %v3536 = vrot.slane %v3527, %v3535
        %v3539 = vmul.f32 %v3520, %v3532
        %v3540 = vmul.f32 %v3522, %v3536
        %v3541 = vadd.f32 %v3463, %v3539
        %v3542 = vadd.f32 %v3464, %v3540
        %3543 = vrot.lane.b32.xlu0 %v524, 95
        %v3544 = vpop.permute.xlu0 %3543
        %3545 = vrot.lane.b32.xlu0 %v525, 95
        %v3546 = vpop.permute.xlu0 %3545
        %vm3547 = vcmask 777216
        %v3548 = vsel %vm3547, %v3544, %v3546
        %vm3549 = vcmask 777216
        %v3552 = vsel %vm3549, %v3546, %v3544
        %s3553 = scalar_lea.vmem %s3, 78
        %v3554 = vld [vmem:[%s3553] sm:$0x3]
        %v3556 = vsel %vm539, %v3554, 0
        %v3559 = vsel %vm385, %v3548, 0
        %v3561 = vsel %vm385, %v3552, 0
        %3563 = vmatprep.subr.bf16.mxu0 0
        %3564 = vmatpush1.bf16.msra.mxu0 0
        %3565 = vmatprep.subr.bf16.mxu0 0
        %3566 = vmatpush1.bf16.msra.mxu0 0
        %3567 = vmatprep.subr.bf16.mxu0 0
        %3568 = vmatpush1.bf16.msra.mxu0 0
        %3569 = vmatprep.subr.bf16.mxu0 0
        %3570 = vmatpush1.bf16.msra.mxu0 0
        %3571 = vmatprep.subr.bf16.mxu0 0
        %3572 = vmatpush1.bf16.msra.mxu0 0
        %3573 = vmatprep.subr.bf16.mxu0 0
        %3574 = vmatpush1.bf16.msra.mxu0 0
        %3575 = vmatprep.subr.bf16.mxu0 0
        %3576 = vmatpush1.bf16.msra.mxu0 0
        %3577 = vmatprep.subr.bf16.mxu0 %v3561
        %3578 = vmatpush1.bf16.msra.mxu0 %v3559
        %3579 = vmatprep.subr.bf16.mxu0 0
        %3580 = vmatpush2.bf16.msra.mxu0 0
        %3581 = vmatprep.subr.bf16.mxu0 0
        %3582 = vmatpush2.bf16.msra.mxu0 0
        %3583 = vmatprep.subr.bf16.mxu0 0
        %3584 = vmatpush2.bf16.msra.mxu0 0
        %3585 = vmatprep.subr.bf16.mxu0 0
        %3586 = vmatpush2.bf16.msra.mxu0 0
        %3587 = vmatprep.subr.bf16.mxu0 0
        %3588 = vmatpush2.bf16.msra.mxu0 0
        %3589 = vmatprep.subr.bf16.mxu0 0
        %3590 = vmatpush2.bf16.msra.mxu0 0
        %3591 = vmatprep.subr.bf16.mxu0 0
        %3592 = vmatpush2.bf16.msra.mxu0 0
        %3593 = vmatprep.subr.bf16.mxu0 0
        %3594 = vmatpush2.bf16.msra.mxu0 0
        %3595 = vmatprep.mubr.bf16.mxu0 0
        %3596 = vmatmul.mubr.bf16.gmra.mxu0 %v3556
        %v3597 = vpop.f32.mrf.mxu0
        %v3598 = vadd.f32 0.0, %v3597
        %v3599 = vpop.f32.mrf.mxu0
        %v3600 = vadd.f32 0.0, %v3599
        %v3601 = vpop.f32.mrf.mxu0
        %v3602 = vpop.f32.mrf.mxu0
        %3603 = vdwg.mxu0
        %s3604 = scalar_lea.vmem %s4, 71
        %v3605 = vld [vmem:[%s3604] ss:$8 sm:$0x3]
        %v3607 = vlaneseq
        %v3608 = vshrl.u32 %v3607, 7
        %v3609 = vsub.s32 0, %v3608
        %v3610 = vrot.slane %v3605, %v3609
        %v3611 = vlaneseq
        %v3612 = vshrl.u32 %v3611, 7
        %v3613 = vsub.s32 1, %v3612
        %v3614 = vrot.slane %v3605, %v3613
        %v3617 = vmul.f32 %v3598, %v3610
        %v3618 = vmul.f32 %v3600, %v3614
        %v3619 = vadd.f32 %v3541, %v3617
        %v3620 = vadd.f32 %v3542, %v3618
        %3621 = vrot.lane.b32.xlu0 %v524, 94
        %v3622 = vpop.permute.xlu0 %3621
        %3623 = vrot.lane.b32.xlu0 %v525, 94
        %v3624 = vpop.permute.xlu0 %3623
        %vm3625 = vcmask 769024
        %v3626 = vsel %vm3625, %v3622, %v3624
        %vm3627 = vcmask 769024
        %v3630 = vsel %vm3627, %v3624, %v3622
        %s3631 = scalar_lea.vmem %s3, 80
        %v3632 = vld [vmem:[%s3631] sm:$0x3]
        %v3634 = vsel %vm539, %v3632, 0
        %v3637 = vsel %vm385, %v3626, 0
        %v3639 = vsel %vm385, %v3630, 0
        %3641 = vmatprep.subr.bf16.mxu0 0
        %3642 = vmatpush1.bf16.msra.mxu0 0
        %3643 = vmatprep.subr.bf16.mxu0 0
        %3644 = vmatpush1.bf16.msra.mxu0 0
        %3645 = vmatprep.subr.bf16.mxu0 0
        %3646 = vmatpush1.bf16.msra.mxu0 0
        %3647 = vmatprep.subr.bf16.mxu0 0
        %3648 = vmatpush1.bf16.msra.mxu0 0
        %3649 = vmatprep.subr.bf16.mxu0 0
        %3650 = vmatpush1.bf16.msra.mxu0 0
        %3651 = vmatprep.subr.bf16.mxu0 0
        %3652 = vmatpush1.bf16.msra.mxu0 0
        %3653 = vmatprep.subr.bf16.mxu0 0
        %3654 = vmatpush1.bf16.msra.mxu0 0
        %3655 = vmatprep.subr.bf16.mxu0 %v3639
        %3656 = vmatpush1.bf16.msra.mxu0 %v3637
        %3657 = vmatprep.subr.bf16.mxu0 0
        %3658 = vmatpush2.bf16.msra.mxu0 0
        %3659 = vmatprep.subr.bf16.mxu0 0
        %3660 = vmatpush2.bf16.msra.mxu0 0
        %3661 = vmatprep.subr.bf16.mxu0 0
        %3662 = vmatpush2.bf16.msra.mxu0 0
        %3663 = vmatprep.subr.bf16.mxu0 0
        %3664 = vmatpush2.bf16.msra.mxu0 0
        %3665 = vmatprep.subr.bf16.mxu0 0
        %3666 = vmatpush2.bf16.msra.mxu0 0
        %3667 = vmatprep.subr.bf16.mxu0 0
        %3668 = vmatpush2.bf16.msra.mxu0 0
        %3669 = vmatprep.subr.bf16.mxu0 0
        %3670 = vmatpush2.bf16.msra.mxu0 0
        %3671 = vmatprep.subr.bf16.mxu0 0
        %3672 = vmatpush2.bf16.msra.mxu0 0
        %3673 = vmatprep.mubr.bf16.mxu0 0
        %3674 = vmatmul.mubr.bf16.gmra.mxu0 %v3634
        %v3675 = vpop.f32.mrf.mxu0
        %v3676 = vadd.f32 0.0, %v3675
        %v3677 = vpop.f32.mrf.mxu0
        %v3678 = vadd.f32 0.0, %v3677
        %v3679 = vpop.f32.mrf.mxu0
        %v3680 = vpop.f32.mrf.mxu0
        %3681 = vdwg.mxu0
        %s3682 = scalar_lea.vmem %s4, 80
        %v3683 = vld [vmem:[%s3682] ss:$8 sm:$0x3]
        %v3685 = vlaneseq
        %v3686 = vshrl.u32 %v3685, 7
        %v3687 = vsub.s32 0, %v3686
        %v3688 = vrot.slane %v3683, %v3687
        %v3689 = vlaneseq
        %v3690 = vshrl.u32 %v3689, 7
        %v3691 = vsub.s32 1, %v3690
        %v3692 = vrot.slane %v3683, %v3691
        %v3695 = vmul.f32 %v3676, %v3688
        %v3696 = vmul.f32 %v3678, %v3692
        %v3697 = vadd.f32 %v3619, %v3695
        %v3698 = vadd.f32 %v3620, %v3696
        %3699 = vrot.lane.b32.xlu0 %v524, 93
        %v3700 = vpop.permute.xlu0 %3699
        %3701 = vrot.lane.b32.xlu0 %v525, 93
        %v3702 = vpop.permute.xlu0 %3701
        %vm3703 = vcmask 760832
        %v3704 = vsel %vm3703, %v3700, %v3702
        %vm3705 = vcmask 760832
        %v3708 = vsel %vm3705, %v3702, %v3700
        %s3709 = scalar_lea.vmem %s3, 82
        %v3710 = vld [vmem:[%s3709] sm:$0x3]
        %v3712 = vsel %vm539, %v3710, 0
        %v3715 = vsel %vm385, %v3704, 0
        %v3717 = vsel %vm385, %v3708, 0
        %3719 = vmatprep.subr.bf16.mxu0 0
        %3720 = vmatpush1.bf16.msra.mxu0 0
        %3721 = vmatprep.subr.bf16.mxu0 0
        %3722 = vmatpush1.bf16.msra.mxu0 0
        %3723 = vmatprep.subr.bf16.mxu0 0
        %3724 = vmatpush1.bf16.msra.mxu0 0
        %3725 = vmatprep.subr.bf16.mxu0 0
        %3726 = vmatpush1.bf16.msra.mxu0 0
        %3727 = vmatprep.subr.bf16.mxu0 0
        %3728 = vmatpush1.bf16.msra.mxu0 0
        %3729 = vmatprep.subr.bf16.mxu0 0
        %3730 = vmatpush1.bf16.msra.mxu0 0
        %3731 = vmatprep.subr.bf16.mxu0 0
        %3732 = vmatpush1.bf16.msra.mxu0 0
        %3733 = vmatprep.subr.bf16.mxu0 %v3717
        %3734 = vmatpush1.bf16.msra.mxu0 %v3715
        %3735 = vmatprep.subr.bf16.mxu0 0
        %3736 = vmatpush2.bf16.msra.mxu0 0
        %3737 = vmatprep.subr.bf16.mxu0 0
        %3738 = vmatpush2.bf16.msra.mxu0 0
        %3739 = vmatprep.subr.bf16.mxu0 0
        %3740 = vmatpush2.bf16.msra.mxu0 0
        %3741 = vmatprep.subr.bf16.mxu0 0
        %3742 = vmatpush2.bf16.msra.mxu0 0
        %3743 = vmatprep.subr.bf16.mxu0 0
        %3744 = vmatpush2.bf16.msra.mxu0 0
        %3745 = vmatprep.subr.bf16.mxu0 0
        %3746 = vmatpush2.bf16.msra.mxu0 0
        %3747 = vmatprep.subr.bf16.mxu0 0
        %3748 = vmatpush2.bf16.msra.mxu0 0
        %3749 = vmatprep.subr.bf16.mxu0 0
        %3750 = vmatpush2.bf16.msra.mxu0 0
        %3751 = vmatprep.mubr.bf16.mxu0 0
        %3752 = vmatmul.mubr.bf16.gmra.mxu0 %v3712
        %v3753 = vpop.f32.mrf.mxu0
        %v3754 = vadd.f32 0.0, %v3753
        %v3755 = vpop.f32.mrf.mxu0
        %v3756 = vadd.f32 0.0, %v3755
        %v3757 = vpop.f32.mrf.mxu0
        %v3758 = vpop.f32.mrf.mxu0
        %3759 = vdwg.mxu0
        %s3760 = scalar_lea.vmem %s4, 81
        %v3761 = vld [vmem:[%s3760] ss:$8 sm:$0x3]
        %v3763 = vlaneseq
        %v3764 = vshrl.u32 %v3763, 7
        %v3765 = vsub.s32 0, %v3764
        %v3766 = vrot.slane %v3761, %v3765
        %v3767 = vlaneseq
        %v3768 = vshrl.u32 %v3767, 7
        %v3769 = vsub.s32 1, %v3768
        %v3770 = vrot.slane %v3761, %v3769
        %v3773 = vmul.f32 %v3754, %v3766
        %v3774 = vmul.f32 %v3756, %v3770
        %v3775 = vadd.f32 %v3697, %v3773
        %v3776 = vadd.f32 %v3698, %v3774
        %3777 = vrot.lane.b32.xlu0 %v524, 83
        %v3778 = vpop.permute.xlu0 %3777
        %3779 = vrot.lane.b32.xlu0 %v525, 83
        %v3780 = vpop.permute.xlu0 %3779
        %vm3781 = vcmask 678912
        %v3782 = vsel %vm3781, %v3778, %v3780
        %vm3783 = vcmask 678912
        %v3786 = vsel %vm3783, %v3780, %v3778
        %s3787 = scalar_lea.vmem %s3, 84
        %v3788 = vld [vmem:[%s3787] sm:$0x3]
        %v3790 = vsel %vm539, %v3788, 0
        %v3793 = vsel %vm385, %v3782, 0
        %v3795 = vsel %vm385, %v3786, 0
        %3797 = vmatprep.subr.bf16.mxu0 0
        %3798 = vmatpush1.bf16.msra.mxu0 0
        %3799 = vmatprep.subr.bf16.mxu0 0
        %3800 = vmatpush1.bf16.msra.mxu0 0
        %3801 = vmatprep.subr.bf16.mxu0 0
        %3802 = vmatpush1.bf16.msra.mxu0 0
        %3803 = vmatprep.subr.bf16.mxu0 0
        %3804 = vmatpush1.bf16.msra.mxu0 0
        %3805 = vmatprep.subr.bf16.mxu0 0
        %3806 = vmatpush1.bf16.msra.mxu0 0
        %3807 = vmatprep.subr.bf16.mxu0 0
        %3808 = vmatpush1.bf16.msra.mxu0 0
        %3809 = vmatprep.subr.bf16.mxu0 0
        %3810 = vmatpush1.bf16.msra.mxu0 0
        %3811 = vmatprep.subr.bf16.mxu0 %v3795
        %3812 = vmatpush1.bf16.msra.mxu0 %v3793
        %3813 = vmatprep.subr.bf16.mxu0 0
        %3814 = vmatpush2.bf16.msra.mxu0 0
        %3815 = vmatprep.subr.bf16.mxu0 0
        %3816 = vmatpush2.bf16.msra.mxu0 0
        %3817 = vmatprep.subr.bf16.mxu0 0
        %3818 = vmatpush2.bf16.msra.mxu0 0
        %3819 = vmatprep.subr.bf16.mxu0 0
        %3820 = vmatpush2.bf16.msra.mxu0 0
        %3821 = vmatprep.subr.bf16.mxu0 0
        %3822 = vmatpush2.bf16.msra.mxu0 0
        %3823 = vmatprep.subr.bf16.mxu0 0
        %3824 = vmatpush2.bf16.msra.mxu0 0
        %3825 = vmatprep.subr.bf16.mxu0 0
        %3826 = vmatpush2.bf16.msra.mxu0 0
        %3827 = vmatprep.subr.bf16.mxu0 0
        %3828 = vmatpush2.bf16.msra.mxu0 0
        %3829 = vmatprep.mubr.bf16.mxu0 0
        %3830 = vmatmul.mubr.bf16.gmra.mxu0 %v3790
        %v3831 = vpop.f32.mrf.mxu0
        %v3832 = vadd.f32 0.0, %v3831
        %v3833 = vpop.f32.mrf.mxu0
        %v3834 = vadd.f32 0.0, %v3833
        %v3835 = vpop.f32.mrf.mxu0
        %v3836 = vpop.f32.mrf.mxu0
        %3837 = vdwg.mxu0
        %s3838 = scalar_lea.vmem %s4, 82
        %v3839 = vld [vmem:[%s3838] ss:$8 sm:$0x3]
        %v3841 = vlaneseq
        %v3842 = vshrl.u32 %v3841, 7
        %v3843 = vsub.s32 0, %v3842
        %v3844 = vrot.slane %v3839, %v3843
        %v3845 = vlaneseq
        %v3846 = vshrl.u32 %v3845, 7
        %v3847 = vsub.s32 1, %v3846
        %v3848 = vrot.slane %v3839, %v3847
        %v3851 = vmul.f32 %v3832, %v3844
        %v3852 = vmul.f32 %v3834, %v3848
        %v3853 = vadd.f32 %v3775, %v3851
        %v3854 = vadd.f32 %v3776, %v3852
        %3855 = vrot.lane.b32.xlu0 %v524, 82
        %v3856 = vpop.permute.xlu0 %3855
        %3857 = vrot.lane.b32.xlu0 %v525, 82
        %v3858 = vpop.permute.xlu0 %3857
        %vm3859 = vcmask 670720
        %v3860 = vsel %vm3859, %v3856, %v3858
        %vm3861 = vcmask 670720
        %v3864 = vsel %vm3861, %v3858, %v3856
        %s3865 = scalar_lea.vmem %s3, 86
        %v3866 = vld [vmem:[%s3865] sm:$0x3]
        %v3868 = vsel %vm539, %v3866, 0
        %v3871 = vsel %vm385, %v3860, 0
        %v3873 = vsel %vm385, %v3864, 0
        %3875 = vmatprep.subr.bf16.mxu0 0
        %3876 = vmatpush1.bf16.msra.mxu0 0
        %3877 = vmatprep.subr.bf16.mxu0 0
        %3878 = vmatpush1.bf16.msra.mxu0 0
        %3879 = vmatprep.subr.bf16.mxu0 0
        %3880 = vmatpush1.bf16.msra.mxu0 0
        %3881 = vmatprep.subr.bf16.mxu0 0
        %3882 = vmatpush1.bf16.msra.mxu0 0
        %3883 = vmatprep.subr.bf16.mxu0 0
        %3884 = vmatpush1.bf16.msra.mxu0 0
        %3885 = vmatprep.subr.bf16.mxu0 0
        %3886 = vmatpush1.bf16.msra.mxu0 0
        %3887 = vmatprep.subr.bf16.mxu0 0
        %3888 = vmatpush1.bf16.msra.mxu0 0
        %3889 = vmatprep.subr.bf16.mxu0 %v3873
        %3890 = vmatpush1.bf16.msra.mxu0 %v3871
        %3891 = vmatprep.subr.bf16.mxu0 0
        %3892 = vmatpush2.bf16.msra.mxu0 0
        %3893 = vmatprep.subr.bf16.mxu0 0
        %3894 = vmatpush2.bf16.msra.mxu0 0
        %3895 = vmatprep.subr.bf16.mxu0 0
        %3896 = vmatpush2.bf16.msra.mxu0 0
        %3897 = vmatprep.subr.bf16.mxu0 0
        %3898 = vmatpush2.bf16.msra.mxu0 0
        %3899 = vmatprep.subr.bf16.mxu0 0
        %3900 = vmatpush2.bf16.msra.mxu0 0
        %3901 = vmatprep.subr.bf16.mxu0 0
        %3902 = vmatpush2.bf16.msra.mxu0 0
        %3903 = vmatprep.subr.bf16.mxu0 0
        %3904 = vmatpush2.bf16.msra.mxu0 0
        %3905 = vmatprep.subr.bf16.mxu0 0
        %3906 = vmatpush2.bf16.msra.mxu0 0
        %3907 = vmatprep.mubr.bf16.mxu0 0
        %3908 = vmatmul.mubr.bf16.gmra.mxu0 %v3868
        %v3909 = vpop.f32.mrf.mxu0
        %v3910 = vadd.f32 0.0, %v3909
        %v3911 = vpop.f32.mrf.mxu0
        %v3912 = vadd.f32 0.0, %v3911
        %v3913 = vpop.f32.mrf.mxu0
        %v3914 = vpop.f32.mrf.mxu0
        %3915 = vdwg.mxu0
        %s3916 = scalar_lea.vmem %s4, 83
        %v3917 = vld [vmem:[%s3916] ss:$8 sm:$0x3]
        %v3919 = vlaneseq
        %v3920 = vshrl.u32 %v3919, 7
        %v3921 = vsub.s32 0, %v3920
        %v3922 = vrot.slane %v3917, %v3921
        %v3923 = vlaneseq
        %v3924 = vshrl.u32 %v3923, 7
        %v3925 = vsub.s32 1, %v3924
        %v3926 = vrot.slane %v3917, %v3925
        %v3929 = vmul.f32 %v3910, %v3922
        %v3930 = vmul.f32 %v3912, %v3926
        %v3931 = vadd.f32 %v3853, %v3929
        %v3932 = vadd.f32 %v3854, %v3930
        %3933 = vrot.lane.b32.xlu0 %v524, 81
        %v3934 = vpop.permute.xlu0 %3933
        %3935 = vrot.lane.b32.xlu0 %v525, 81
        %v3936 = vpop.permute.xlu0 %3935
        %vm3937 = vcmask 662528
        %v3938 = vsel %vm3937, %v3934, %v3936
        %vm3939 = vcmask 662528
        %v3942 = vsel %vm3939, %v3936, %v3934
        %s3943 = scalar_lea.vmem %s3, 88
        %v3944 = vld [vmem:[%s3943] sm:$0x3]
        %v3946 = vsel %vm539, %v3944, 0
        %v3949 = vsel %vm385, %v3938, 0
        %v3951 = vsel %vm385, %v3942, 0
        %3953 = vmatprep.subr.bf16.mxu0 0
        %3954 = vmatpush1.bf16.msra.mxu0 0
        %3955 = vmatprep.subr.bf16.mxu0 0
        %3956 = vmatpush1.bf16.msra.mxu0 0
        %3957 = vmatprep.subr.bf16.mxu0 0
        %3958 = vmatpush1.bf16.msra.mxu0 0
        %3959 = vmatprep.subr.bf16.mxu0 0
        %3960 = vmatpush1.bf16.msra.mxu0 0
        %3961 = vmatprep.subr.bf16.mxu0 0
        %3962 = vmatpush1.bf16.msra.mxu0 0
        %3963 = vmatprep.subr.bf16.mxu0 0
        %3964 = vmatpush1.bf16.msra.mxu0 0
        %3965 = vmatprep.subr.bf16.mxu0 0
        %3966 = vmatpush1.bf16.msra.mxu0 0
        %3967 = vmatprep.subr.bf16.mxu0 %v3951
        %3968 = vmatpush1.bf16.msra.mxu0 %v3949
        %3969 = vmatprep.subr.bf16.mxu0 0
        %3970 = vmatpush2.bf16.msra.mxu0 0
        %3971 = vmatprep.subr.bf16.mxu0 0
        %3972 = vmatpush2.bf16.msra.mxu0 0
        %3973 = vmatprep.subr.bf16.mxu0 0
        %3974 = vmatpush2.bf16.msra.mxu0 0
        %3975 = vmatprep.subr.bf16.mxu0 0
        %3976 = vmatpush2.bf16.msra.mxu0 0
        %3977 = vmatprep.subr.bf16.mxu0 0
        %3978 = vmatpush2.bf16.msra.mxu0 0
        %3979 = vmatprep.subr.bf16.mxu0 0
        %3980 = vmatpush2.bf16.msra.mxu0 0
        %3981 = vmatprep.subr.bf16.mxu0 0
        %3982 = vmatpush2.bf16.msra.mxu0 0
        %3983 = vmatprep.subr.bf16.mxu0 0
        %3984 = vmatpush2.bf16.msra.mxu0 0
        %3985 = vmatprep.mubr.bf16.mxu0 0
        %3986 = vmatmul.mubr.bf16.gmra.mxu0 %v3946
        %v3987 = vpop.f32.mrf.mxu0
        %v3988 = vadd.f32 0.0, %v3987
        %v3989 = vpop.f32.mrf.mxu0
        %v3990 = vadd.f32 0.0, %v3989
        %v3991 = vpop.f32.mrf.mxu0
        %v3992 = vpop.f32.mrf.mxu0
        %3993 = vdwg.mxu0
        %s3994 = scalar_lea.vmem %s4, 84
        %v3995 = vld [vmem:[%s3994] ss:$8 sm:$0x3]
        %v3997 = vlaneseq
        %v3998 = vshrl.u32 %v3997, 7
        %v3999 = vsub.s32 0, %v3998
        %v4000 = vrot.slane %v3995, %v3999
        %v4001 = vlaneseq
        %v4002 = vshrl.u32 %v4001, 7
        %v4003 = vsub.s32 1, %v4002
        %v4004 = vrot.slane %v3995, %v4003
        %v4007 = vmul.f32 %v3988, %v4000
        %v4008 = vmul.f32 %v3990, %v4004
        %v4009 = vadd.f32 %v3931, %v4007
        %v4010 = vadd.f32 %v3932, %v4008
        %4011 = vrot.lane.b32.xlu0 %v524, 80
        %v4012 = vpop.permute.xlu0 %4011
        %4013 = vrot.lane.b32.xlu0 %v525, 80
        %v4014 = vpop.permute.xlu0 %4013
        %vm4015 = vcmask 654336
        %v4016 = vsel %vm4015, %v4012, %v4014
        %vm4017 = vcmask 654336
        %v4020 = vsel %vm4017, %v4014, %v4012
        %s4021 = scalar_lea.vmem %s3, 90
        %v4022 = vld [vmem:[%s4021] sm:$0x3]
        %v4024 = vsel %vm539, %v4022, 0
        %v4027 = vsel %vm385, %v4016, 0
        %v4029 = vsel %vm385, %v4020, 0
        %4031 = vmatprep.subr.bf16.mxu0 0
        %4032 = vmatpush1.bf16.msra.mxu0 0
        %4033 = vmatprep.subr.bf16.mxu0 0
        %4034 = vmatpush1.bf16.msra.mxu0 0
        %4035 = vmatprep.subr.bf16.mxu0 0
        %4036 = vmatpush1.bf16.msra.mxu0 0
        %4037 = vmatprep.subr.bf16.mxu0 0
        %4038 = vmatpush1.bf16.msra.mxu0 0
        %4039 = vmatprep.subr.bf16.mxu0 0
        %4040 = vmatpush1.bf16.msra.mxu0 0
        %4041 = vmatprep.subr.bf16.mxu0 0
        %4042 = vmatpush1.bf16.msra.mxu0 0
        %4043 = vmatprep.subr.bf16.mxu0 0
        %4044 = vmatpush1.bf16.msra.mxu0 0
        %4045 = vmatprep.subr.bf16.mxu0 %v4029
        %4046 = vmatpush1.bf16.msra.mxu0 %v4027
        %4047 = vmatprep.subr.bf16.mxu0 0
        %4048 = vmatpush2.bf16.msra.mxu0 0
        %4049 = vmatprep.subr.bf16.mxu0 0
        %4050 = vmatpush2.bf16.msra.mxu0 0
        %4051 = vmatprep.subr.bf16.mxu0 0
        %4052 = vmatpush2.bf16.msra.mxu0 0
        %4053 = vmatprep.subr.bf16.mxu0 0
        %4054 = vmatpush2.bf16.msra.mxu0 0
        %4055 = vmatprep.subr.bf16.mxu0 0
        %4056 = vmatpush2.bf16.msra.mxu0 0
        %4057 = vmatprep.subr.bf16.mxu0 0
        %4058 = vmatpush2.bf16.msra.mxu0 0
        %4059 = vmatprep.subr.bf16.mxu0 0
        %4060 = vmatpush2.bf16.msra.mxu0 0
        %4061 = vmatprep.subr.bf16.mxu0 0
        %4062 = vmatpush2.bf16.msra.mxu0 0
        %4063 = vmatprep.mubr.bf16.mxu0 0
        %4064 = vmatmul.mubr.bf16.gmra.mxu0 %v4024
        %v4065 = vpop.f32.mrf.mxu0
        %v4066 = vadd.f32 0.0, %v4065
        %v4067 = vpop.f32.mrf.mxu0
        %v4068 = vadd.f32 0.0, %v4067
        %v4069 = vpop.f32.mrf.mxu0
        %v4070 = vpop.f32.mrf.mxu0
        %4071 = vdwg.mxu0
        %s4072 = scalar_lea.vmem %s4, 85
        %v4073 = vld [vmem:[%s4072] ss:$8 sm:$0x3]
        %v4075 = vlaneseq
        %v4076 = vshrl.u32 %v4075, 7
        %v4077 = vsub.s32 0, %v4076
        %v4078 = vrot.slane %v4073, %v4077
        %v4079 = vlaneseq
        %v4080 = vshrl.u32 %v4079, 7
        %v4081 = vsub.s32 1, %v4080
        %v4082 = vrot.slane %v4073, %v4081
        %v4085 = vmul.f32 %v4066, %v4078
        %v4086 = vmul.f32 %v4068, %v4082
        %v4087 = vadd.f32 %v4009, %v4085
        %v4088 = vadd.f32 %v4010, %v4086
        %4089 = vrot.lane.b32.xlu0 %v524, 79
        %v4090 = vpop.permute.xlu0 %4089
        %4091 = vrot.lane.b32.xlu0 %v525, 79
        %v4092 = vpop.permute.xlu0 %4091
        %vm4093 = vcmask 646144
        %v4094 = vsel %vm4093, %v4090, %v4092
        %vm4095 = vcmask 646144
        %v4098 = vsel %vm4095, %v4092, %v4090
        %s4099 = scalar_lea.vmem %s3, 92
        %v4100 = vld [vmem:[%s4099] sm:$0x3]
        %v4102 = vsel %vm539, %v4100, 0
        %v4105 = vsel %vm385, %v4094, 0
        %v4107 = vsel %vm385, %v4098, 0
        %4109 = vmatprep.subr.bf16.mxu0 0
        %4110 = vmatpush1.bf16.msra.mxu0 0
        %4111 = vmatprep.subr.bf16.mxu0 0
        %4112 = vmatpush1.bf16.msra.mxu0 0
        %4113 = vmatprep.subr.bf16.mxu0 0
        %4114 = vmatpush1.bf16.msra.mxu0 0
        %4115 = vmatprep.subr.bf16.mxu0 0
        %4116 = vmatpush1.bf16.msra.mxu0 0
        %4117 = vmatprep.subr.bf16.mxu0 0
        %4118 = vmatpush1.bf16.msra.mxu0 0
        %4119 = vmatprep.subr.bf16.mxu0 0
        %4120 = vmatpush1.bf16.msra.mxu0 0
        %4121 = vmatprep.subr.bf16.mxu0 0
        %4122 = vmatpush1.bf16.msra.mxu0 0
        %4123 = vmatprep.subr.bf16.mxu0 %v4107
        %4124 = vmatpush1.bf16.msra.mxu0 %v4105
        %4125 = vmatprep.subr.bf16.mxu0 0
        %4126 = vmatpush2.bf16.msra.mxu0 0
        %4127 = vmatprep.subr.bf16.mxu0 0
        %4128 = vmatpush2.bf16.msra.mxu0 0
        %4129 = vmatprep.subr.bf16.mxu0 0
        %4130 = vmatpush2.bf16.msra.mxu0 0
        %4131 = vmatprep.subr.bf16.mxu0 0
        %4132 = vmatpush2.bf16.msra.mxu0 0
        %4133 = vmatprep.subr.bf16.mxu0 0
        %4134 = vmatpush2.bf16.msra.mxu0 0
        %4135 = vmatprep.subr.bf16.mxu0 0
        %4136 = vmatpush2.bf16.msra.mxu0 0
        %4137 = vmatprep.subr.bf16.mxu0 0
        %4138 = vmatpush2.bf16.msra.mxu0 0
        %4139 = vmatprep.subr.bf16.mxu0 0
        %4140 = vmatpush2.bf16.msra.mxu0 0
        %4141 = vmatprep.mubr.bf16.mxu0 0
        %4142 = vmatmul.mubr.bf16.gmra.mxu0 %v4102
        %v4143 = vpop.f32.mrf.mxu0
        %v4144 = vadd.f32 0.0, %v4143
        %v4145 = vpop.f32.mrf.mxu0
        %v4146 = vadd.f32 0.0, %v4145
        %v4147 = vpop.f32.mrf.mxu0
        %v4148 = vpop.f32.mrf.mxu0
        %4149 = vdwg.mxu0
        %s4150 = scalar_lea.vmem %s4, 86
        %v4151 = vld [vmem:[%s4150] ss:$8 sm:$0x3]
        %v4153 = vlaneseq
        %v4154 = vshrl.u32 %v4153, 7
        %v4155 = vsub.s32 0, %v4154
        %v4156 = vrot.slane %v4151, %v4155
        %v4157 = vlaneseq
        %v4158 = vshrl.u32 %v4157, 7
        %v4159 = vsub.s32 1, %v4158
        %v4160 = vrot.slane %v4151, %v4159
        %v4163 = vmul.f32 %v4144, %v4156
        %v4164 = vmul.f32 %v4146, %v4160
        %v4165 = vadd.f32 %v4087, %v4163
        %v4166 = vadd.f32 %v4088, %v4164
        %4167 = vrot.lane.b32.xlu0 %v524, 78
        %v4168 = vpop.permute.xlu0 %4167
        %4169 = vrot.lane.b32.xlu0 %v525, 78
        %v4170 = vpop.permute.xlu0 %4169
        %vm4171 = vcmask 637952
        %v4172 = vsel %vm4171, %v4168, %v4170
        %vm4173 = vcmask 637952
        %v4176 = vsel %vm4173, %v4170, %v4168
        %s4177 = scalar_lea.vmem %s3, 94
        %v4178 = vld [vmem:[%s4177] sm:$0x3]
        %v4180 = vsel %vm539, %v4178, 0
        %v4183 = vsel %vm385, %v4172, 0
        %v4185 = vsel %vm385, %v4176, 0
        %4187 = vmatprep.subr.bf16.mxu0 0
        %4188 = vmatpush1.bf16.msra.mxu0 0
        %4189 = vmatprep.subr.bf16.mxu0 0
        %4190 = vmatpush1.bf16.msra.mxu0 0
        %4191 = vmatprep.subr.bf16.mxu0 0
        %4192 = vmatpush1.bf16.msra.mxu0 0
        %4193 = vmatprep.subr.bf16.mxu0 0
        %4194 = vmatpush1.bf16.msra.mxu0 0
        %4195 = vmatprep.subr.bf16.mxu0 0
        %4196 = vmatpush1.bf16.msra.mxu0 0
        %4197 = vmatprep.subr.bf16.mxu0 0
        %4198 = vmatpush1.bf16.msra.mxu0 0
        %4199 = vmatprep.subr.bf16.mxu0 0
        %4200 = vmatpush1.bf16.msra.mxu0 0
        %4201 = vmatprep.subr.bf16.mxu0 %v4185
        %4202 = vmatpush1.bf16.msra.mxu0 %v4183
        %4203 = vmatprep.subr.bf16.mxu0 0
        %4204 = vmatpush2.bf16.msra.mxu0 0
        %4205 = vmatprep.subr.bf16.mxu0 0
        %4206 = vmatpush2.bf16.msra.mxu0 0
        %4207 = vmatprep.subr.bf16.mxu0 0
        %4208 = vmatpush2.bf16.msra.mxu0 0
        %4209 = vmatprep.subr.bf16.mxu0 0
        %4210 = vmatpush2.bf16.msra.mxu0 0
        %4211 = vmatprep.subr.bf16.mxu0 0
        %4212 = vmatpush2.bf16.msra.mxu0 0
        %4213 = vmatprep.subr.bf16.mxu0 0
        %4214 = vmatpush2.bf16.msra.mxu0 0
        %4215 = vmatprep.subr.bf16.mxu0 0
        %4216 = vmatpush2.bf16.msra.mxu0 0
        %4217 = vmatprep.subr.bf16.mxu0 0
        %4218 = vmatpush2.bf16.msra.mxu0 0
        %4219 = vmatprep.mubr.bf16.mxu0 0
        %4220 = vmatmul.mubr.bf16.gmra.mxu0 %v4180
        %v4221 = vpop.f32.mrf.mxu0
        %v4222 = vadd.f32 0.0, %v4221
        %v4223 = vpop.f32.mrf.mxu0
        %v4224 = vadd.f32 0.0, %v4223
        %v4225 = vpop.f32.mrf.mxu0
        %v4226 = vpop.f32.mrf.mxu0
        %4227 = vdwg.mxu0
        %s4228 = scalar_lea.vmem %s4, 87
        %v4229 = vld [vmem:[%s4228] ss:$8 sm:$0x3]
        %v4231 = vlaneseq
        %v4232 = vshrl.u32 %v4231, 7
        %v4233 = vsub.s32 0, %v4232
        %v4234 = vrot.slane %v4229, %v4233
        %v4235 = vlaneseq
        %v4236 = vshrl.u32 %v4235, 7
        %v4237 = vsub.s32 1, %v4236
        %v4238 = vrot.slane %v4229, %v4237
        %v4241 = vmul.f32 %v4222, %v4234
        %v4242 = vmul.f32 %v4224, %v4238
        %v4243 = vadd.f32 %v4165, %v4241
        %v4244 = vadd.f32 %v4166, %v4242
        %4245 = vrot.lane.b32.xlu0 %v524, 77
        %v4246 = vpop.permute.xlu0 %4245
        %4247 = vrot.lane.b32.xlu0 %v525, 77
        %v4248 = vpop.permute.xlu0 %4247
        %vm4249 = vcmask 629760
        %v4250 = vsel %vm4249, %v4246, %v4248
        %vm4251 = vcmask 629760
        %v4254 = vsel %vm4251, %v4248, %v4246
        %s4255 = scalar_lea.vmem %s3, 96
        %v4256 = vld [vmem:[%s4255] sm:$0x3]
        %v4258 = vsel %vm539, %v4256, 0
        %v4261 = vsel %vm385, %v4250, 0
        %v4263 = vsel %vm385, %v4254, 0
        %4265 = vmatprep.subr.bf16.mxu0 0
        %4266 = vmatpush1.bf16.msra.mxu0 0
        %4267 = vmatprep.subr.bf16.mxu0 0
        %4268 = vmatpush1.bf16.msra.mxu0 0
        %4269 = vmatprep.subr.bf16.mxu0 0
        %4270 = vmatpush1.bf16.msra.mxu0 0
        %4271 = vmatprep.subr.bf16.mxu0 0
        %4272 = vmatpush1.bf16.msra.mxu0 0
        %4273 = vmatprep.subr.bf16.mxu0 0
        %4274 = vmatpush1.bf16.msra.mxu0 0
        %4275 = vmatprep.subr.bf16.mxu0 0
        %4276 = vmatpush1.bf16.msra.mxu0 0
        %4277 = vmatprep.subr.bf16.mxu0 0
        %4278 = vmatpush1.bf16.msra.mxu0 0
        %4279 = vmatprep.subr.bf16.mxu0 %v4263
        %4280 = vmatpush1.bf16.msra.mxu0 %v4261
        %4281 = vmatprep.subr.bf16.mxu0 0
        %4282 = vmatpush2.bf16.msra.mxu0 0
        %4283 = vmatprep.subr.bf16.mxu0 0
        %4284 = vmatpush2.bf16.msra.mxu0 0
        %4285 = vmatprep.subr.bf16.mxu0 0
        %4286 = vmatpush2.bf16.msra.mxu0 0
        %4287 = vmatprep.subr.bf16.mxu0 0
        %4288 = vmatpush2.bf16.msra.mxu0 0
        %4289 = vmatprep.subr.bf16.mxu0 0
        %4290 = vmatpush2.bf16.msra.mxu0 0
        %4291 = vmatprep.subr.bf16.mxu0 0
        %4292 = vmatpush2.bf16.msra.mxu0 0
        %4293 = vmatprep.subr.bf16.mxu0 0
        %4294 = vmatpush2.bf16.msra.mxu0 0
        %4295 = vmatprep.subr.bf16.mxu0 0
        %4296 = vmatpush2.bf16.msra.mxu0 0
        %4297 = vmatprep.mubr.bf16.mxu0 0
        %4298 = vmatmul.mubr.bf16.gmra.mxu0 %v4258
        %v4299 = vpop.f32.mrf.mxu0
        %v4300 = vadd.f32 0.0, %v4299
        %v4301 = vpop.f32.mrf.mxu0
        %v4302 = vadd.f32 0.0, %v4301
        %v4303 = vpop.f32.mrf.mxu0
        %v4304 = vpop.f32.mrf.mxu0
        %4305 = vdwg.mxu0
        %s4306 = scalar_lea.vmem %s4, 96
        %v4307 = vld [vmem:[%s4306] ss:$8 sm:$0x3]
        %v4309 = vlaneseq
        %v4310 = vshrl.u32 %v4309, 7
        %v4311 = vsub.s32 0, %v4310
        %v4312 = vrot.slane %v4307, %v4311
        %v4313 = vlaneseq
        %v4314 = vshrl.u32 %v4313, 7
        %v4315 = vsub.s32 1, %v4314
        %v4316 = vrot.slane %v4307, %v4315
        %v4319 = vmul.f32 %v4300, %v4312
        %v4320 = vmul.f32 %v4302, %v4316
        %v4321 = vadd.f32 %v4243, %v4319
        %v4322 = vadd.f32 %v4244, %v4320
        %v4323 = vadd.f32 %v4321, %v380
        %v4324 = vadd.f32 %v4322, %v383
        %4325 = vset.pattern.permute.xlu0 2
        %4326 = vperm.xlu0 %4325, %v378
        %v4327 = vpop.permute.xlu0 %4326
        %v4329 = vadd.f32 %v4323, %v4327
        %v4330 = vadd.f32 %v4324, %v4327
        %v4331 = vld [vmem:[%s5] sm:$0xf]
        %v4332 = vsel %vm385, %v4329, 0.0
        %v4333 = vrot.slane %v4332, 4
        %v4334 = vadd.f32 %v4332, %v4333
        %v4335 = vrot.slane %v4334, 2
        %v4336 = vadd.f32 %v4334, %v4335
        %v4337 = vrot.slane %v4336, 1
        %v4338 = vadd.f32 %v4336, %v4337
        %v4339 = vsel %vm385, %v4330, 0.0
        %v4340 = vrot.slane %v4339, 4
        %v4341 = vadd.f32 %v4339, %v4340
        %v4342 = vrot.slane %v4341, 2
        %v4343 = vadd.f32 %v4341, %v4342
        %v4344 = vrot.slane %v4343, 1
        %v4345 = vadd.f32 %v4343, %v4344
        %v4346 = vmul.f32 %v4338, %v400
        %v4347 = vmul.f32 %v4345, %v400
        %v4348 = vsub.f32 %v4329, %v4346
        %v4349 = vsub.f32 %v4330, %v4347
        %v4350 = vmul.f32 %v4348, %v4348
        %v4351 = vmul.f32 %v4349, %v4349
        %v4352 = vsel %vm385, %v4350, 0.0
        %v4353 = vrot.slane %v4352, 4
        %v4354 = vadd.f32 %v4352, %v4353
        %v4355 = vrot.slane %v4354, 2
        %v4356 = vadd.f32 %v4354, %v4355
        %v4357 = vrot.slane %v4356, 1
        %v4358 = vadd.f32 %v4356, %v4357
        %v4359 = vsel %vm385, %v4351, 0.0
        %v4360 = vrot.slane %v4359, 4
        %v4361 = vadd.f32 %v4359, %v4360
        %v4362 = vrot.slane %v4361, 2
        %v4363 = vadd.f32 %v4361, %v4362
        %v4364 = vrot.slane %v4363, 1
        %v4365 = vadd.f32 %v4363, %v4364
        %v4366 = vmul.f32 %v4358, %v400
        %v4367 = vmul.f32 %v4365, %v400
        %v4368 = vadd.f32 %v4366, 1e-06
        %v4369 = vadd.f32 %v4367, 1e-06
        %v4370 = vrsqrt.pop %v4368
        %v4371 = vrsqrt.pop %v4369
        %v4372 = vmul.f32 %v4348, %v4370
        %v4373 = vmul.f32 %v4349, %v4371
        %4374 = vset.pattern.permute.xlu0 3
        %4375 = vperm.xlu0 %4374, %v378
        %v4376 = vpop.permute.xlu0 %4375
        %v4378 = vmul.f32 %v4372, %v4376
        %v4379 = vmul.f32 %v4373, %v4376
        %4380 = vset.pattern.permute.xlu0 4
        %4381 = vperm.xlu0 %4380, %v378
        %v4382 = vpop.permute.xlu0 %4381
        %v4384 = vadd.f32 %v4378, %v4382
        %v4385 = vadd.f32 %v4379, %v4382
        %v4386 = vpack.c.bf16 %v4384, %v4384
        %v4387 = vpack.c.bf16 %v4385, %v4385
        %4388 = vset.pattern.permute.xlu0 1
        %4389 = vperm.xlu0 %4388, %v379
        %v4390 = vpop.permute.xlu0 %4389
        %v4393 = vsel %vm472, %v4331, 0
        %v4396 = vsel %vm476, %v4386, 0
        %v4399 = vsel %vm476, %v4387, 0
        %4401 = vmatprep.subr.bf16.mxu0 0
        %4402 = vmatpush1.bf16.msra.mxu0 0
        %4403 = vmatprep.subr.bf16.mxu0 0
        %4404 = vmatpush1.bf16.msra.mxu0 0
        %4405 = vmatprep.subr.bf16.mxu0 0
        %4406 = vmatpush1.bf16.msra.mxu0 0
        %4407 = vmatprep.subr.bf16.mxu0 0
        %4408 = vmatpush1.bf16.msra.mxu0 0
        %4409 = vmatprep.subr.bf16.mxu0 0
        %4410 = vmatpush1.bf16.msra.mxu0 0
        %4411 = vmatprep.subr.bf16.mxu0 0
        %4412 = vmatpush1.bf16.msra.mxu0 0
        %4413 = vmatprep.subr.bf16.mxu0 0
        %4414 = vmatpush1.bf16.msra.mxu0 0
        %4415 = vmatprep.subr.bf16.mxu0 %v4399
        %4416 = vmatpush1.bf16.msra.mxu0 %v4396
        %4417 = vmatprep.subr.bf16.mxu0 0
        %4418 = vmatpush2.bf16.msra.mxu0 0
        %4419 = vmatprep.subr.bf16.mxu0 0
        %4420 = vmatpush2.bf16.msra.mxu0 0
        %4421 = vmatprep.subr.bf16.mxu0 0
        %4422 = vmatpush2.bf16.msra.mxu0 0
        %4423 = vmatprep.subr.bf16.mxu0 0
        %4424 = vmatpush2.bf16.msra.mxu0 0
        %4425 = vmatprep.subr.bf16.mxu0 0
        %4426 = vmatpush2.bf16.msra.mxu0 0
        %4427 = vmatprep.subr.bf16.mxu0 0
        %4428 = vmatpush2.bf16.msra.mxu0 0
        %4429 = vmatprep.subr.bf16.mxu0 0
        %4430 = vmatpush2.bf16.msra.mxu0 0
        %4431 = vmatprep.subr.bf16.mxu0 0
        %4432 = vmatpush2.bf16.msra.mxu0 0
        %4433 = vmatprep.mubr.bf16.mxu0 0
        %4434 = vmatmul.mubr.bf16.gmra.mxu0 %v4393
        %v4435 = vpop.f32.mrf.mxu0
        %v4436 = vadd.f32 %v4390, %v4435
        %v4437 = vpop.f32.mrf.mxu0
        %v4438 = vadd.f32 %v4390, %v4437
        %v4439 = vpop.f32.mrf.mxu0
        %v4440 = vpop.f32.mrf.mxu0
        %4441 = vdwg.mxu0
        %v4442 = vld [vmem:[%s6] sm:$0x3]
        %v4443 = vmul.f32 %v4436, 0.5
        %v4444 = vmul.f32 %v4438, 0.5
        %v4445 = vmul.f32 %v4436, 0.044715
        %v4446 = vmul.f32 %v4438, 0.044715
        %v4447 = vmul.f32 %v4445, %v4436
        %v4448 = vmul.f32 %v4446, %v4438
        %v4449 = vmul.f32 %v4447, %v4436
        %v4450 = vmul.f32 %v4448, %v4438
        %v4451 = vadd.f32 %v4436, %v4449
        %v4452 = vadd.f32 %v4438, %v4450
        %v4453 = vmul.f32 %v4451, 0.7978846
        %v4454 = vmul.f32 %v4452, 0.7978846
        %v4455 = vtanh.pop %v4453
        %v4456 = vtanh.pop %v4454
        %v4457 = vadd.f32 %v4455, 1.0
        %v4458 = vadd.f32 %v4456, 1.0
        %v4459 = vmul.f32 %v4443, %v4457
        %v4460 = vmul.f32 %v4444, %v4458
        %v4461 = vpack.c.bf16 %v4459, %v4459
        %v4462 = vpack.c.bf16 %v4460, %v4460
        %4463 = vset.pattern.permute.xlu0 5
        %4464 = vperm.xlu0 %4463, %v378
        %v4465 = vpop.permute.xlu0 %4464
        %v4468 = vsel %vm539, %v4442, 0
        %v4471 = vsel %vm385, %v4461, 0
        %v4474 = vsel %vm385, %v4462, 0
        %4476 = vmatprep.subr.bf16.mxu0 0
        %4477 = vmatpush1.bf16.msra.mxu0 0
        %4478 = vmatprep.subr.bf16.mxu0 0
        %4479 = vmatpush1.bf16.msra.mxu0 0
        %4480 = vmatprep.subr.bf16.mxu0 0
        %4481 = vmatpush1.bf16.msra.mxu0 0
        %4482 = vmatprep.subr.bf16.mxu0 0
        %4483 = vmatpush1.bf16.msra.mxu0 0
        %4484 = vmatprep.subr.bf16.mxu0 0
        %4485 = vmatpush1.bf16.msra.mxu0 0
        %4486 = vmatprep.subr.bf16.mxu0 0
        %4487 = vmatpush1.bf16.msra.mxu0 0
        %4488 = vmatprep.subr.bf16.mxu0 0
        %4489 = vmatpush1.bf16.msra.mxu0 0
        %4490 = vmatprep.subr.bf16.mxu0 %v4474
        %4491 = vmatpush1.bf16.msra.mxu0 %v4471
        %4492 = vmatprep.subr.bf16.mxu0 0
        %4493 = vmatpush2.bf16.msra.mxu0 0
        %4494 = vmatprep.subr.bf16.mxu0 0
        %4495 = vmatpush2.bf16.msra.mxu0 0
        %4496 = vmatprep.subr.bf16.mxu0 0
        %4497 = vmatpush2.bf16.msra.mxu0 0
        %4498 = vmatprep.subr.bf16.mxu0 0
        %4499 = vmatpush2.bf16.msra.mxu0 0
        %4500 = vmatprep.subr.bf16.mxu0 0
        %4501 = vmatpush2.bf16.msra.mxu0 0
        %4502 = vmatprep.subr.bf16.mxu0 0
        %4503 = vmatpush2.bf16.msra.mxu0 0
        %4504 = vmatprep.subr.bf16.mxu0 0
        %4505 = vmatpush2.bf16.msra.mxu0 0
        %4506 = vmatprep.subr.bf16.mxu0 0
        %4507 = vmatpush2.bf16.msra.mxu0 0
        %4508 = vmatprep.mubr.bf16.mxu0 0
        %4509 = vmatmul.mubr.bf16.gmra.mxu0 %v4468
        %v4510 = vpop.f32.mrf.mxu0
        %v4511 = vadd.f32 %v4465, %v4510
        %v4512 = vpop.f32.mrf.mxu0
        %v4513 = vadd.f32 %v4465, %v4512
        %v4514 = vpop.f32.mrf.mxu0
        %v4515 = vpop.f32.mrf.mxu0
        %4516 = vdwg.mxu0
        %v4517 = vadd.f32 %v4511, %v4329
        %v4518 = vadd.f32 %v4513, %v4330
        %v4521 = vcombine.low %v4517, %v4518
        %4523 = vst [vmem:[%s362] sm:$0xff] %v4521
        %s4524 = sand.u32 %s246, 1
        %s4525 = scalar_lea.sflag [#allocation3], %s4524
        %s4526 = sand.u32 %s246, 1
        %s4527 = smul.addr %s4526, 8
        %s4528 = scalar_lea.vmem [#allocation2], %s4527
        // Predicated region
        $region57: #{tpu_custom_call.1} parent=55 // pred_check
          %p4529 = pneg %p256
        $region58: #{tpu_custom_call.1} parent=55 // pred_check_branch
          %4531 = sbr.rel (%p4529) target = $region60
        $region59: #{tpu_custom_call.1} parent=55 // pred_region
          %s4532 = smul.u32 2, %s28
          %s4534 = ssub.s32 128, 128
          %4535 = vsyncadd %s4525, %s4534
          %s4536 = smul.addr %s27, 2
          %s4537 = sadd.s32 %s4532, %s4536
          %s4538 = smul.addr %s4537, 64
          %s4539 = scalar_lea.hbm %s9, %s4538
          %s4541 = sshll.u32 %s4528, 4
          %s4542 = int_to_ptr.vmem [resolvable:$true] %s4541
          %4544 = dma.vmem_to_hbm [thread:$0]  %s4542, 128, %s4539, %s4525
        $region60: #{tpu_custom_call.1} parent=55 // pred_fallthru
          _
      $region56: #{tpu_custom_call.1} parent=5 // pred_fallthru
        _
      %p4545 = scmp.le.s32.totalorder 2, %s18
      // Predicated region
      $region61: #{tpu_custom_call.1} parent=5 // pred_check
        %p4546 = pneg %p4545
      $region62: #{tpu_custom_call.1} parent=5 // pred_check_branch
        %4548 = sbr.rel (%p4546) target = $region64
      $region63: #{tpu_custom_call.1} parent=5 // pred_region
        %s4549 = ssub.s32 %s18, 2
        // Predicated region
        $region65: #{tpu_custom_call.1} parent=63 // pred_check
          %p4550 = pneg %p262
        $region66: #{tpu_custom_call.1} parent=63 // pred_check_branch
          %4552 = sbr.rel (%p4550) target = $region68
        $region67: #{tpu_custom_call.1} parent=63 // pred_region
          %s4553 = sand.u32 %s247, 1
          %s4554 = scalar_lea.sflag [#allocation3], %s4553
          %s4555 = sand.u32 %s247, 1
          %s4556 = smul.addr %s4555, 8
          %s4557 = scalar_lea.vmem [#allocation2], %s4556
          %4558 = dma.done %s4554, 128
        $region68: #{tpu_custom_call.1} parent=63 // pred_fallthru
          _
      $region64: #{tpu_custom_call.1} parent=5 // pred_fallthru
        _
    $region6: #{tpu_custom_call.1} parent=1 // loop_footer
      %s22 = sadd.s32 1, %s18
    $region7: #{tpu_custom_call.1} parent=1 // loop_footer_branch
      %17 = sbr.rel target = $region3
    $region8: #{tpu_custom_call.1} parent=1 // loop_exit
      _
    %4559 = vsyncpa [#allocation3], 1
    %s4560 = scalar_lea.sflag [#allocation3], 1
    %4561 = vsyncpa %s4560, 1

</llo_original>
